<compile_context>
chip_gen: v7x
topology: tpu7x:2x2x1
jax: 0.10.0
libtpu: 0.0.40
codegen_flags: <defaults>
</compile_context>

<pallas_src>
import functools

import jax
import jax.numpy as jnp
from jax import lax
from jax.experimental import pallas as pl
from jax.experimental.pallas import tpu as pltpu


# ----------------------------------------------------------------------------
# Fused kernel: online-softmax multi-head attention + output projection fc_o.
#   q_ref : (tq, d_model)        k_ref/v_ref : (tk, d_model)
#   wt_ref: (d_model, d_model)   -- fc_o weight already transposed (W^T)
#   b_ref : (1, d_model)         o_ref : (tq, d_model)
#   m_sc/l_sc : (tq, h) fp32     acc_sc : (tq, d_model) fp32
# ----------------------------------------------------------------------------
def _flash_attn_fc_kernel(q_ref, k_ref, v_ref, wt_ref, b_ref, o_ref,
                          m_sc, l_sc, acc_sc, *, h, d_k, d_v, scale):
    ki = pl.program_id(2)

    @pl.when(ki == 0)
    def _init():
        m_sc[...] = jnp.full_like(m_sc, -jnp.inf)
        l_sc[...] = jnp.zeros_like(l_sc)
        acc_sc[...] = jnp.zeros_like(acc_sc)

    # 1/sqrt(d_k) folded into q once (one full-width VPU pass, not h strided ones).
    q = q_ref[...]
    q = q * jnp.asarray(scale, q.dtype)
    k = k_ref[...]
    v = v_ref[...]

    for hd in range(h):  # small static head count -> unrolled
        qh = q[:, hd * d_k:(hd + 1) * d_k]
        kh = k[:, hd * d_k:(hd + 1) * d_k]
        vh = v[:, hd * d_v:(hd + 1) * d_v]

        # scores (tq, tk): contract last dims, no materialized K^T in VMEM.
        # TODO(synk): if the Mosaic dump shows a per-head vxpose of kh here,
        #             present K pre-transposed as (d_model, nk) blocks instead.
        s = lax.dot_general(qh, kh, (((1,), (1,)), ((), ())),
                            preferred_element_type=jnp.float32)

        m_prev = m_sc[:, hd:hd + 1]                        # (tq, 1) fp32
        l_prev = l_sc[:, hd:hd + 1]
        m_new = jnp.maximum(m_prev, jnp.max(s, axis=-1, keepdims=True))
        alpha = jnp.exp(m_prev - m_new)
        p = jnp.exp(s - m_new)                             # unnormalized probabilities
        # dropout(p) -> identity in eval mode.
        l_sc[:, hd:hd + 1] = alpha * l_prev + jnp.sum(p, axis=-1, keepdims=True)
        m_sc[:, hd:hd + 1] = m_new

        pv = jnp.dot(p.astype(v.dtype), vh,
                     preferred_element_type=jnp.float32)   # (tq, d_v) fp32
        sl = slice(hd * d_v, (hd + 1) * d_v)
        acc_sc[:, sl] = alpha * acc_sc[:, sl] + pv         # per-head column slab

    @pl.when(ki == pl.num_programs(2) - 1)
    def _finalize():
        # Normalize AFTER P@V: tq*d_model muls total instead of tq*nk per head,
        # using the EUP approximate reciprocal (frees the VPU slot).
        inv = pl.reciprocal(l_sc[...], approx=True)        # (tq, h) fp32
        for hd in range(h):
            sl = slice(hd * d_v, (hd + 1) * d_v)
            acc_sc[:, sl] = acc_sc[:, sl] * inv[:, hd:hd + 1]
        # fused fc_o: y = out @ W^T + b  (wt_ref already holds W^T).
        out = acc_sc[...].astype(wt_ref.dtype)             # lane-dense (tq, d_model)
        y = jnp.dot(out, wt_ref[...], preferred_element_type=jnp.float32)
        y = y + b_ref[...].astype(jnp.float32)
        o_ref[...] = y.astype(o_ref.dtype)


# ----------------------------------------------------------------------------
# Wrapper: tiling choices, VMEM budgeting, pallas_call.
# ----------------------------------------------------------------------------
def _pick_tile(n, candidates):
    for c in candidates:
        if c <= n and n % c == 0:
            return c
    return n


def _vmem_capacity_bytes():
    try:
        return int(pltpu.get_tpu_info().vmem_capacity_bytes)
    except Exception:
        return 128 * 1024 * 1024


def simplified_attention(queries, keys, values, w_t, bias, *, h, tq=None, tk=None):
    """queries/keys/values: (b_s, seq, d_model); w_t: (h*d_v, d_model) = W^T; bias: (d_model,)."""
    b_s, nq, d_model = queries.shape
    nk = keys.shape[1]
    assert d_model % h == 0
    d_k = d_model // h
    d_v = d_model // h
    scale = 1.0 / float(d_k) ** 0.5

    vmem_cap = _vmem_capacity_bytes()
    if tq is None:
        # <=256 on 64 MiB-VMEM chips (v7x), up to 512 on 128 MiB chips (v5e/v6e).
        q_cands = (256, 128) if vmem_cap <= 80 * 1024 * 1024 else (512, 256, 128)
        tq = _pick_tile(nq, q_cands)
    if tk is None:
        tk = _pick_tile(nk, (512, 256, 128))   # must divide nk exactly (no tail mask)
    n_qt = pl.cdiv(nq, tq)
    n_kt = pl.cdiv(nk, tk)

    bias2 = bias.reshape(1, d_model)

    # VMEM budget from the actual resident set (+25% headroom, >=32 MiB default).
    in_b = jnp.dtype(queries.dtype).itemsize
    w_b = jnp.dtype(w_t.dtype).itemsize
    resident = (
        2 * tq * d_model * in_b              # q tiles (double-buffered)
        + 2 * tq * d_model * in_b            # output tiles
        + 2 * 2 * tk * d_model * in_b        # k and v tiles
        + 2 * d_model * d_model * w_b        # fc_o weight (worst case double-buffered)
        + 2 * max(d_model, 128) * w_b        # bias
        + tq * d_model * 4                   # fp32 accumulator scratch
        + 2 * tq * 128 * 4                   # m / l stats scratch (lane padded)
        + 2 * tq * tk * 4                    # per-head fp32 scores / probs
        + 2 * tq * d_model * 4               # fp32 fc_o epilogue temporaries
    )
    vmem_limit = min(max(int(resident * 1.25), 32 * 1024 * 1024),
                     int(vmem_cap * 0.9))

    kernel = functools.partial(_flash_attn_fc_kernel, h=h, d_k=d_k, d_v=d_v, scale=scale)

    def build(single_buffer_invariants):
        inv_kwargs = {}
        if single_buffer_invariants:
            # fc_o weight/bias are grid-invariant: no need to double-buffer them.
            inv_kwargs = dict(pipeline_mode=pl.Buffered(1))
        return pl.pallas_call(
            kernel,
            out_shape=jax.ShapeDtypeStruct((b_s, nq, d_model), queries.dtype),
            grid_spec=pltpu.PrefetchScalarGridSpec(
                num_scalar_prefetch=0,
                grid=(b_s, n_qt, n_kt),
                in_specs=[
                    pl.BlockSpec((None, tq, d_model), lambda bb, qi, ki: (bb, qi, 0)),
                    pl.BlockSpec((None, tk, d_model), lambda bb, qi, ki: (bb, ki, 0)),
                    pl.BlockSpec((None, tk, d_model), lambda bb, qi, ki: (bb, ki, 0)),
                    pl.BlockSpec((d_model, d_model), lambda bb, qi, ki: (0, 0), **inv_kwargs),
                    pl.BlockSpec((1, d_model), lambda bb, qi, ki: (0, 0), **inv_kwargs),
                ],
                out_specs=pl.BlockSpec((None, tq, d_model), lambda bb, qi, ki: (bb, qi, 0)),
                scratch_shapes=[
                    pltpu.VMEM((tq, h), jnp.float32),        # running max per head
                    pltpu.VMEM((tq, h), jnp.float32),        # running denom per head
                    pltpu.VMEM((tq, d_model), jnp.float32),  # unnormalized P@V accumulator
                ],
            ),
            compiler_params=pltpu.CompilerParams(
                dimension_semantics=("parallel", "parallel", "arbitrary"),
                vmem_limit_bytes=vmem_limit),
        )

    try:
        return build(True)(queries, keys, values, w_t, bias2)
    except Exception:
        # pipeline_mode / pl.Buffered(1) unsupported on this JAX version:
        # fall back to default buffering of the invariant operands.
        return build(False)(queries, keys, values, w_t, bias2)


# ----------------------------------------------------------------------------
# Module wrapper (glue JAX only: parameter setup)
# ----------------------------------------------------------------------------
class SimplifiedScaledDotProductAttentionPallas:
    """Eval-mode forward of the PyTorch SimplifiedScaledDotProductAttention."""

    def __init__(self, d_model, h, key, param_dtype=jnp.float32):
        assert d_model % h == 0
        self.d_model = d_model
        self.h = h
        self.d_k = d_model // h
        self.d_v = d_model // h
        # nn.Linear(h*d_v, d_model): weight (d_model, h*d_v) ~ N(0, 0.001), bias = 0.
        w = jax.random.normal(key, (d_model, h * self.d_v), jnp.float32) * 0.001
        self.w = w
        # Stored pre-transposed (and pre-cast) ONCE at init: no per-call w.T in HBM,
        # and bf16 callers get a native bf16 MXU matmul for fc_o (pass param_dtype=bf16).
        self.w_t = jnp.asarray(w.T, dtype=param_dtype)
        self.b = jnp.zeros((d_model,), param_dtype)

    def __call__(self, queries, keys, values):
        return simplified_attention(queries, keys, values, self.w_t, self.b, h=self.h)


if __name__ == "__main__":
    # small shapes: batch=2, seq=8, d_model=32, heads=4 (d_k = d_v = 8)
    b_s, nq, nk, d_model, h = 2, 8, 8, 32, 4

    key = jax.random.PRNGKey(0)
    kq, kk, kv, kw = jax.random.split(key, 4)
    queries = jax.random.normal(kq, (b_s, nq, d_model), jnp.float32)
    keys = jax.random.normal(kk, (b_s, nk, d_model), jnp.float32)
    values = jax.random.normal(kv, (b_s, nk, d_model), jnp.float32)

    mod = SimplifiedScaledDotProductAttentionPallas(d_model, h, kw)
    out = mod(queries, keys, values)
    jax.block_until_ready(out)

    # pure-JAX reference (matches the PyTorch forward in eval mode)
    def ref(q_in, k_in, v_in, w, b):
        d_k = d_model // h
        q = q_in.reshape(b_s, nq, h, d_k).transpose(0, 2, 1, 3)
        k = k_in.reshape(b_s, nk, h, d_k).transpose(0, 2, 3, 1)
        v = v_in.reshape(b_s, nk, h, d_k).transpose(0, 2, 1, 3)
        att = jnp.matmul(q, k) / jnp.sqrt(jnp.float32(d_k))
        att = jax.nn.softmax(att, axis=-1)
        o = jnp.matmul(att, v).transpose(0, 2, 1, 3).reshape(b_s, nq, h * d_k)
        return o @ w.T + b

    expected = ref(queries, keys, values, mod.w, jnp.zeros((d_model,), jnp.float32))
    err = float(jnp.max(jnp.abs(out - expected)))
    # tolerance accounts for the EUP approximate reciprocal in the softmax epilogue
    assert jnp.allclose(out, expected, atol=2e-4, rtol=2e-3), err
    print("KERNEL_OK")
</pallas_src>

<mosaic_0001>
module attributes {stable_mosaic.version = 11 : i64} {
  func.func @_flash_attn_fc_kernel(%arg0: i32, %arg1: i32, %arg2: i32, %arg3: memref<1x8x32xf32, #tpu.memory_space<vmem>>, %arg4: memref<1x8x32xf32, #tpu.memory_space<vmem>>, %arg5: memref<1x8x32xf32, #tpu.memory_space<vmem>>, %arg6: memref<32x32xf32, #tpu.memory_space<vmem>>, %arg7: memref<1x32xf32, #tpu.memory_space<vmem>>, %arg8: memref<1x8x32xf32, #tpu.memory_space<vmem>>, %arg9: memref<8x4xf32, #tpu.memory_space<vmem>>, %arg10: memref<8x4xf32, #tpu.memory_space<vmem>>, %arg11: memref<8x32xf32, #tpu.memory_space<vmem>>) attributes {dimension_semantics = [#tpu.dimension_semantics<parallel>, #tpu.dimension_semantics<parallel>, #tpu.dimension_semantics<arbitrary>], iteration_bounds = array<i64: 2, 1, 1>, scalar_prefetch = 0 : i64, scratch_operands = 3 : i64, tpu.core_type = #tpu.core_type<tc>, window_params = [{transform_indices = @transform_0, window_bounds = array<i64: 1, 8, 32>}, {transform_indices = @transform_1, window_bounds = array<i64: 1, 8, 32>}, {transform_indices = @transform_2, window_bounds = array<i64: 1, 8, 32>}, {pipeline_mode = #tpu.pipeline_mode<synchronous>, transform_indices = @transform_3, window_bounds = array<i64: 32, 32>}, {pipeline_mode = #tpu.pipeline_mode<synchronous>, transform_indices = @transform_4, window_bounds = array<i64: 1, 32>}, {transform_indices = @transform_5, window_bounds = array<i64: 1, 8, 32>}]} {
    %c0_i32 = arith.constant 0 : i32
    %0 = arith.cmpi eq, %arg2, %c0_i32 : i32
    %1 = arith.extui %0 : i1 to i32
    %c0_i32_0 = arith.constant 0 : i32
    %2 = arith.cmpi ne, %1, %c0_i32_0 : i32
    scf.if %2 {
      %cst_69 = arith.constant 0xFF800000 : f32
      %118 = vector.broadcast %cst_69 : f32 to vector<8x4xf32>
      %c0_70 = arith.constant 0 : index
      %c0_71 = arith.constant 0 : index
      %119 = vector.load %arg9[%c0_70, %c0_71] : memref<8x4xf32, #tpu.memory_space<vmem>>, vector<8x4xf32>
      tpu.vector_store %arg9[%c0_70, %c0_71], %118 {strides = array<i32>} : memref<8x4xf32, #tpu.memory_space<vmem>>, vector<8x4xf32>,
      %cst_72 = arith.constant 0.000000e+00 : f32
      %120 = vector.broadcast %cst_72 : f32 to vector<8x4xf32>
      %c0_73 = arith.constant 0 : index
      %c0_74 = arith.constant 0 : index
      %121 = vector.load %arg10[%c0_73, %c0_74] : memref<8x4xf32, #tpu.memory_space<vmem>>, vector<8x4xf32>
      tpu.vector_store %arg10[%c0_73, %c0_74], %120 {strides = array<i32>} : memref<8x4xf32, #tpu.memory_space<vmem>>, vector<8x4xf32>,
      %cst_75 = arith.constant 0.000000e+00 : f32
      %122 = vector.broadcast %cst_75 : f32 to vector<8x32xf32>
      %c0_76 = arith.constant 0 : index
      %c0_77 = arith.constant 0 : index
      %123 = vector.load %arg11[%c0_76, %c0_77] : memref<8x32xf32, #tpu.memory_space<vmem>>, vector<8x32xf32>
      tpu.vector_store %arg11[%c0_76, %c0_77], %122 {strides = array<i32>} : memref<8x32xf32, #tpu.memory_space<vmem>>, vector<8x32xf32>,
    } else {
    }
    %c0 = arith.constant 0 : index
    %c0_1 = arith.constant 0 : index
    %c0_2 = arith.constant 0 : index
    %3 = vector.load %arg3[%c0, %c0_1, %c0_2] : memref<1x8x32xf32, #tpu.memory_space<vmem>>, vector<1x8x32xf32>
    %4 = vector.shape_cast %3 : vector<1x8x32xf32> to vector<8x32xf32>
    %cst = arith.constant 0.353553385 : f32
    %5 = vector.broadcast %cst : f32 to vector<8x32xf32>
    %6 = arith.mulf %4, %5 : vector<8x32xf32>
    %c0_3 = arith.constant 0 : index
    %c0_4 = arith.constant 0 : index
    %c0_5 = arith.constant 0 : index
    %7 = vector.load %arg4[%c0_3, %c0_4, %c0_5] : memref<1x8x32xf32, #tpu.memory_space<vmem>>, vector<1x8x32xf32>
    %8 = vector.shape_cast %7 : vector<1x8x32xf32> to vector<8x32xf32>
    %c0_6 = arith.constant 0 : index
    %c0_7 = arith.constant 0 : index
    %c0_8 = arith.constant 0 : index
    %9 = vector.load %arg5[%c0_6, %c0_7, %c0_8] : memref<1x8x32xf32, #tpu.memory_space<vmem>>, vector<1x8x32xf32>
    %10 = vector.shape_cast %9 : vector<1x8x32xf32> to vector<8x32xf32>
    %11 = vector.extract_strided_slice %6 {offsets = [0, 0], sizes = [8, 8], strides = [1, 1]} : vector<8x32xf32> to vector<8x8xf32>
    %12 = vector.extract_strided_slice %8 {offsets = [0, 0], sizes = [8, 8], strides = [1, 1]} : vector<8x32xf32> to vector<8x8xf32>
    %13 = vector.extract_strided_slice %10 {offsets = [0, 0], sizes = [8, 8], strides = [1, 1]} : vector<8x32xf32> to vector<8x8xf32>
    %cst_9 = arith.constant dense<0.000000e+00> : vector<8x8xf32>
    %14 = tpu.matmul %11, %12, %cst_9 {dimension_numbers = #tpu.dot_dimension_numbers<[1], [1], [0], [0], [0, 0, 1, 0], [], []>} : vector<8x8xf32>, vector<8x8xf32>, vector<8x8xf32> -> vector<8x8xf32>
    %c0_10 = arith.constant 0 : index
    %c0_11 = arith.constant 0 : index
    %15 = vector.load %arg9[%c0_10, %c0_11] : memref<8x4xf32, #tpu.memory_space<vmem>>, vector<8x1xf32>
    %c0_12 = arith.constant 0 : index
    %c0_13 = arith.constant 0 : index
    %16 = vector.load %arg10[%c0_12, %c0_13] : memref<8x4xf32, #tpu.memory_space<vmem>>, vector<8x1xf32>
    %cst_14 = arith.constant dense<0xFF800000> : vector<8xf32>
    %17 = vector.multi_reduction <maximumf>, %14, %cst_14 [1] : vector<8x8xf32> to vector<8xf32>
    %18 = vector.shape_cast %17 : vector<8xf32> to vector<8x1xf32>
    %19 = arith.maximumf %15, %18 : vector<8x1xf32>
    %20 = arith.subf %15, %19 : vector<8x1xf32>
    %21 = math.exp %20 : vector<8x1xf32>
    %22 = vector.broadcast %19 : vector<8x1xf32> to vector<8x8xf32>
    %23 = arith.subf %14, %22 : vector<8x8xf32>
    %24 = math.exp %23 : vector<8x8xf32>
    %25 = arith.mulf %21, %16 : vector<8x1xf32>
    %cst_15 = arith.constant dense<0.000000e+00> : vector<8xf32>
    %26 = vector.multi_reduction <add>, %24, %cst_15 [1] : vector<8x8xf32> to vector<8xf32>
    %27 = vector.shape_cast %26 : vector<8xf32> to vector<8x1xf32>
    %28 = arith.addf %25, %27 : vector<8x1xf32>
    %c0_16 = arith.constant 0 : index
    %c0_17 = arith.constant 0 : index
    %29 = vector.load %arg10[%c0_16, %c0_17] : memref<8x4xf32, #tpu.memory_space<vmem>>, vector<8x1xf32>
    tpu.vector_store %arg10[%c0_16, %c0_17], %28 {strides = array<i32>} : memref<8x4xf32, #tpu.memory_space<vmem>>, vector<8x1xf32>,
    %c0_18 = arith.constant 0 : index
    %c0_19 = arith.constant 0 : index
    %30 = vector.load %arg9[%c0_18, %c0_19] : memref<8x4xf32, #tpu.memory_space<vmem>>, vector<8x1xf32>
    tpu.vector_store %arg9[%c0_18, %c0_19], %19 {strides = array<i32>} : memref<8x4xf32, #tpu.memory_space<vmem>>, vector<8x1xf32>,
    %cst_20 = arith.constant dense<0.000000e+00> : vector<8x8xf32>
    %31 = tpu.matmul %24, %13, %cst_20 {dimension_numbers = #tpu.dot_dimension_numbers<[1], [0], [0], [1], [0, 0, 1, 1], [], []>} : vector<8x8xf32>, vector<8x8xf32>, vector<8x8xf32> -> vector<8x8xf32>
    %c0_21 = arith.constant 0 : index
    %c0_22 = arith.constant 0 : index
    %32 = vector.load %arg11[%c0_21, %c0_22] : memref<8x32xf32, #tpu.memory_space<vmem>>, vector<8x8xf32>
    %33 = vector.broadcast %21 : vector<8x1xf32> to vector<8x8xf32>
    %34 = arith.mulf %33, %32 : vector<8x8xf32>
    %35 = arith.addf %34, %31 : vector<8x8xf32>
    %c0_23 = arith.constant 0 : index
    %c0_24 = arith.constant 0 : index
    %36 = vector.load %arg11[%c0_23, %c0_24] : memref<8x32xf32, #tpu.memory_space<vmem>>, vector<8x8xf32>
    tpu.vector_store %arg11[%c0_23, %c0_24], %35 {strides = array<i32>} : memref<8x32xf32, #tpu.memory_space<vmem>>, vector<8x8xf32>,
    %37 = vector.extract_strided_slice %6 {offsets = [0, 8], sizes = [8, 8], strides = [1, 1]} : vector<8x32xf32> to vector<8x8xf32>
    %38 = vector.extract_strided_slice %8 {offsets = [0, 8], sizes = [8, 8], strides = [1, 1]} : vector<8x32xf32> to vector<8x8xf32>
    %39 = vector.extract_strided_slice %10 {offsets = [0, 8], sizes = [8, 8], strides = [1, 1]} : vector<8x32xf32> to vector<8x8xf32>
    %cst_25 = arith.constant dense<0.000000e+00> : vector<8x8xf32>
    %40 = tpu.matmul %37, %38, %cst_25 {dimension_numbers = #tpu.dot_dimension_numbers<[1], [1], [0], [0], [0, 0, 1, 0], [], []>} : vector<8x8xf32>, vector<8x8xf32>, vector<8x8xf32> -> vector<8x8xf32>
    %c0_26 = arith.constant 0 : index
    %c1 = arith.constant 1 : index
    %41 = vector.load %arg9[%c0_26, %c1] : memref<8x4xf32, #tpu.memory_space<vmem>>, vector<8x1xf32>
    %c0_27 = arith.constant 0 : index
    %c1_28 = arith.constant 1 : index
    %42 = vector.load %arg10[%c0_27, %c1_28] : memref<8x4xf32, #tpu.memory_space<vmem>>, vector<8x1xf32>
    %cst_29 = arith.constant dense<0xFF800000> : vector<8xf32>
    %43 = vector.multi_reduction <maximumf>, %40, %cst_29 [1] : vector<8x8xf32> to vector<8xf32>
    %44 = vector.shape_cast %43 : vector<8xf32> to vector<8x1xf32>
    %45 = arith.maximumf %41, %44 : vector<8x1xf32>
    %46 = arith.subf %41, %45 : vector<8x1xf32>
    %47 = math.exp %46 : vector<8x1xf32>
    %48 = vector.broadcast %45 : vector<8x1xf32> to vector<8x8xf32>
    %49 = arith.subf %40, %48 : vector<8x8xf32>
    %50 = math.exp %49 : vector<8x8xf32>
    %51 = arith.mulf %47, %42 : vector<8x1xf32>
    %cst_30 = arith.constant dense<0.000000e+00> : vector<8xf32>
    %52 = vector.multi_reduction <add>, %50, %cst_30 [1] : vector<8x8xf32> to vector<8xf32>
    %53 = vector.shape_cast %52 : vector<8xf32> to vector<8x1xf32>
    %54 = arith.addf %51, %53 : vector<8x1xf32>
    %c0_31 = arith.constant 0 : index
    %c1_32 = arith.constant 1 : index
    %55 = vector.load %arg10[%c0_31, %c1_32] : memref<8x4xf32, #tpu.memory_space<vmem>>, vector<8x1xf32>
    tpu.vector_store %arg10[%c0_31, %c1_32], %54 {strides = array<i32>} : memref<8x4xf32, #tpu.memory_space<vmem>>, vector<8x1xf32>,
    %c0_33 = arith.constant 0 : index
    %c1_34 = arith.constant 1 : index
    %56 = vector.load %arg9[%c0_33, %c1_34] : memref<8x4xf32, #tpu.memory_space<vmem>>, vector<8x1xf32>
    tpu.vector_store %arg9[%c0_33, %c1_34], %45 {strides = array<i32>} : memref<8x4xf32, #tpu.memory_space<vmem>>, vector<8x1xf32>,
    %cst_35 = arith.constant dense<0.000000e+00> : vector<8x8xf32>
    %57 = tpu.matmul %50, %39, %cst_35 {dimension_numbers = #tpu.dot_dimension_numbers<[1], [0], [0], [1], [0, 0, 1, 1], [], []>} : vector<8x8xf32>, vector<8x8xf32>, vector<8x8xf32> -> vector<8x8xf32>
    %c0_36 = arith.constant 0 : index
    %c8 = arith.constant 8 : index
    %58 = vector.load %arg11[%c0_36, %c8] : memref<8x32xf32, #tpu.memory_space<vmem>>, vector<8x8xf32>
    %59 = vector.broadcast %47 : vector<8x1xf32> to vector<8x8xf32>
    %60 = arith.mulf %59, %58 : vector<8x8xf32>
    %61 = arith.addf %60, %57 : vector<8x8xf32>
    %c0_37 = arith.constant 0 : index
    %c8_38 = arith.constant 8 : index
    %62 = vector.load %arg11[%c0_37, %c8_38] : memref<8x32xf32, #tpu.memory_space<vmem>>, vector<8x8xf32>
    tpu.vector_store %arg11[%c0_37, %c8_38], %61 {strides = array<i32>} : memref<8x32xf32, #tpu.memory_space<vmem>>, vector<8x8xf32>,
    %63 = vector.extract_strided_slice %6 {offsets = [0, 16], sizes = [8, 8], strides = [1, 1]} : vector<8x32xf32> to vector<8x8xf32>
    %64 = vector.extract_strided_slice %8 {offsets = [0, 16], sizes = [8, 8], strides = [1, 1]} : vector<8x32xf32> to vector<8x8xf32>
    %65 = vector.extract_strided_slice %10 {offsets = [0, 16], sizes = [8, 8], strides = [1, 1]} : vector<8x32xf32> to vector<8x8xf32>
    %cst_39 = arith.constant dense<0.000000e+00> : vector<8x8xf32>
    %66 = tpu.matmul %63, %64, %cst_39 {dimension_numbers = #tpu.dot_dimension_numbers<[1], [1], [0], [0], [0, 0, 1, 0], [], []>} : vector<8x8xf32>, vector<8x8xf32>, vector<8x8xf32> -> vector<8x8xf32>
    %c0_40 = arith.constant 0 : index
    %c2 = arith.constant 2 : index
    %67 = vector.load %arg9[%c0_40, %c2] : memref<8x4xf32, #tpu.memory_space<vmem>>, vector<8x1xf32>
    %c0_41 = arith.constant 0 : index
    %c2_42 = arith.constant 2 : index
    %68 = vector.load %arg10[%c0_41, %c2_42] : memref<8x4xf32, #tpu.memory_space<vmem>>, vector<8x1xf32>
    %cst_43 = arith.constant dense<0xFF800000> : vector<8xf32>
    %69 = vector.multi_reduction <maximumf>, %66, %cst_43 [1] : vector<8x8xf32> to vector<8xf32>
    %70 = vector.shape_cast %69 : vector<8xf32> to vector<8x1xf32>
    %71 = arith.maximumf %67, %70 : vector<8x1xf32>
    %72 = arith.subf %67, %71 : vector<8x1xf32>
    %73 = math.exp %72 : vector<8x1xf32>
    %74 = vector.broadcast %71 : vector<8x1xf32> to vector<8x8xf32>
    %75 = arith.subf %66, %74 : vector<8x8xf32>
    %76 = math.exp %75 : vector<8x8xf32>
    %77 = arith.mulf %73, %68 : vector<8x1xf32>
    %cst_44 = arith.constant dense<0.000000e+00> : vector<8xf32>
    %78 = vector.multi_reduction <add>, %76, %cst_44 [1] : vector<8x8xf32> to vector<8xf32>
    %79 = vector.shape_cast %78 : vector<8xf32> to vector<8x1xf32>
    %80 = arith.addf %77, %79 : vector<8x1xf32>
    %c0_45 = arith.constant 0 : index
    %c2_46 = arith.constant 2 : index
    %81 = vector.load %arg10[%c0_45, %c2_46] : memref<8x4xf32, #tpu.memory_space<vmem>>, vector<8x1xf32>
    tpu.vector_store %arg10[%c0_45, %c2_46], %80 {strides = array<i32>} : memref<8x4xf32, #tpu.memory_space<vmem>>, vector<8x1xf32>,
    %c0_47 = arith.constant 0 : index
    %c2_48 = arith.constant 2 : index
    %82 = vector.load %arg9[%c0_47, %c2_48] : memref<8x4xf32, #tpu.memory_space<vmem>>, vector<8x1xf32>
    tpu.vector_store %arg9[%c0_47, %c2_48], %71 {strides = array<i32>} : memref<8x4xf32, #tpu.memory_space<vmem>>, vector<8x1xf32>,
    %cst_49 = arith.constant dense<0.000000e+00> : vector<8x8xf32>
    %83 = tpu.matmul %76, %65, %cst_49 {dimension_numbers = #tpu.dot_dimension_numbers<[1], [0], [0], [1], [0, 0, 1, 1], [], []>} : vector<8x8xf32>, vector<8x8xf32>, vector<8x8xf32> -> vector<8x8xf32>
    %c0_50 = arith.constant 0 : index
    %c16 = arith.constant 16 : index
    %84 = vector.load %arg11[%c0_50, %c16] : memref<8x32xf32, #tpu.memory_space<vmem>>, vector<8x8xf32>
    %85 = vector.broadcast %73 : vector<8x1xf32> to vector<8x8xf32>
    %86 = arith.mulf %85, %84 : vector<8x8xf32>
    %87 = arith.addf %86, %83 : vector<8x8xf32>
    %c0_51 = arith.constant 0 : index
    %c16_52 = arith.constant 16 : index
    %88 = vector.load %arg11[%c0_51, %c16_52] : memref<8x32xf32, #tpu.memory_space<vmem>>, vector<8x8xf32>
    tpu.vector_store %arg11[%c0_51, %c16_52], %87 {strides = array<i32>} : memref<8x32xf32, #tpu.memory_space<vmem>>, vector<8x8xf32>,
    %89 = vector.extract_strided_slice %6 {offsets = [0, 24], sizes = [8, 8], strides = [1, 1]} : vector<8x32xf32> to vector<8x8xf32>
    %90 = vector.extract_strided_slice %8 {offsets = [0, 24], sizes = [8, 8], strides = [1, 1]} : vector<8x32xf32> to vector<8x8xf32>
    %91 = vector.extract_strided_slice %10 {offsets = [0, 24], sizes = [8, 8], strides = [1, 1]} : vector<8x32xf32> to vector<8x8xf32>
    %cst_53 = arith.constant dense<0.000000e+00> : vector<8x8xf32>
    %92 = tpu.matmul %89, %90, %cst_53 {dimension_numbers = #tpu.dot_dimension_numbers<[1], [1], [0], [0], [0, 0, 1, 0], [], []>} : vector<8x8xf32>, vector<8x8xf32>, vector<8x8xf32> -> vector<8x8xf32>
    %c0_54 = arith.constant 0 : index
    %c3 = arith.constant 3 : index
    %93 = vector.load %arg9[%c0_54, %c3] : memref<8x4xf32, #tpu.memory_space<vmem>>, vector<8x1xf32>
    %c0_55 = arith.constant 0 : index
    %c3_56 = arith.constant 3 : index
    %94 = vector.load %arg10[%c0_55, %c3_56] : memref<8x4xf32, #tpu.memory_space<vmem>>, vector<8x1xf32>
    %cst_57 = arith.constant dense<0xFF800000> : vector<8xf32>
    %95 = vector.multi_reduction <maximumf>, %92, %cst_57 [1] : vector<8x8xf32> to vector<8xf32>
    %96 = vector.shape_cast %95 : vector<8xf32> to vector<8x1xf32>
    %97 = arith.maximumf %93, %96 : vector<8x1xf32>
    %98 = arith.subf %93, %97 : vector<8x1xf32>
    %99 = math.exp %98 : vector<8x1xf32>
    %100 = vector.broadcast %97 : vector<8x1xf32> to vector<8x8xf32>
    %101 = arith.subf %92, %100 : vector<8x8xf32>
    %102 = math.exp %101 : vector<8x8xf32>
    %103 = arith.mulf %99, %94 : vector<8x1xf32>
    %cst_58 = arith.constant dense<0.000000e+00> : vector<8xf32>
    %104 = vector.multi_reduction <add>, %102, %cst_58 [1] : vector<8x8xf32> to vector<8xf32>
    %105 = vector.shape_cast %104 : vector<8xf32> to vector<8x1xf32>
    %106 = arith.addf %103, %105 : vector<8x1xf32>
    %c0_59 = arith.constant 0 : index
    %c3_60 = arith.constant 3 : index
    %107 = vector.load %arg10[%c0_59, %c3_60] : memref<8x4xf32, #tpu.memory_space<vmem>>, vector<8x1xf32>
    tpu.vector_store %arg10[%c0_59, %c3_60], %106 {strides = array<i32>} : memref<8x4xf32, #tpu.memory_space<vmem>>, vector<8x1xf32>,
    %c0_61 = arith.constant 0 : index
    %c3_62 = arith.constant 3 : index
    %108 = vector.load %arg9[%c0_61, %c3_62] : memref<8x4xf32, #tpu.memory_space<vmem>>, vector<8x1xf32>
    tpu.vector_store %arg9[%c0_61, %c3_62], %97 {strides = array<i32>} : memref<8x4xf32, #tpu.memory_space<vmem>>, vector<8x1xf32>,
    %cst_63 = arith.constant dense<0.000000e+00> : vector<8x8xf32>
    %109 = tpu.matmul %102, %91, %cst_63 {dimension_numbers = #tpu.dot_dimension_numbers<[1], [0], [0], [1], [0, 0, 1, 1], [], []>} : vector<8x8xf32>, vector<8x8xf32>, vector<8x8xf32> -> vector<8x8xf32>
    %c0_64 = arith.constant 0 : index
    %c24 = arith.constant 24 : index
    %110 = vector.load %arg11[%c0_64, %c24] : memref<8x32xf32, #tpu.memory_space<vmem>>, vector<8x8xf32>
    %111 = vector.broadcast %99 : vector<8x1xf32> to vector<8x8xf32>
    %112 = arith.mulf %111, %110 : vector<8x8xf32>
    %113 = arith.addf %112, %109 : vector<8x8xf32>
    %c0_65 = arith.constant 0 : index
    %c24_66 = arith.constant 24 : index
    %114 = vector.load %arg11[%c0_65, %c24_66] : memref<8x32xf32, #tpu.memory_space<vmem>>, vector<8x8xf32>
    tpu.vector_store %arg11[%c0_65, %c24_66], %113 {strides = array<i32>} : memref<8x32xf32, #tpu.memory_space<vmem>>, vector<8x8xf32>,
    %c0_i32_67 = arith.constant 0 : i32
    %115 = arith.cmpi eq, %arg2, %c0_i32_67 : i32
    %116 = arith.extui %115 : i1 to i32
    %c0_i32_68 = arith.constant 0 : i32
    %117 = arith.cmpi ne, %116, %c0_i32_68 : i32
    scf.if %117 {
      %c0_69 = arith.constant 0 : index
      %c0_70 = arith.constant 0 : index
      %118 = vector.load %arg10[%c0_69, %c0_70] : memref<8x4xf32, #tpu.memory_space<vmem>>, vector<8x4xf32>
      %119 = tpu.reciprocal %118 {approx = true} : vector<8x4xf32> -> vector<8x4xf32>
      %c0_71 = arith.constant 0 : index
      %c0_72 = arith.constant 0 : index
      %120 = vector.load %arg11[%c0_71, %c0_72] : memref<8x32xf32, #tpu.memory_space<vmem>>, vector<8x8xf32>
      %121 = vector.extract_strided_slice %119 {offsets = [0, 0], sizes = [8, 1], strides = [1, 1]} : vector<8x4xf32> to vector<8x1xf32>
      %122 = vector.broadcast %121 : vector<8x1xf32> to vector<8x8xf32>
      %123 = arith.mulf %120, %122 : vector<8x8xf32>
      %c0_73 = arith.constant 0 : index
      %c0_74 = arith.constant 0 : index
      %124 = vector.load %arg11[%c0_73, %c0_74] : memref<8x32xf32, #tpu.memory_space<vmem>>, vector<8x8xf32>
      tpu.vector_store %arg11[%c0_73, %c0_74], %123 {strides = array<i32>} : memref<8x32xf32, #tpu.memory_space<vmem>>, vector<8x8xf32>,
      %c0_75 = arith.constant 0 : index
      %c8_76 = arith.constant 8 : index
      %125 = vector.load %arg11[%c0_75, %c8_76] : memref<8x32xf32, #tpu.memory_space<vmem>>, vector<8x8xf32>
      %126 = vector.extract_strided_slice %119 {offsets = [0, 1], sizes = [8, 1], strides = [1, 1]} : vector<8x4xf32> to vector<8x1xf32>
      %127 = vector.broadcast %126 : vector<8x1xf32> to vector<8x8xf32>
      %128 = arith.mulf %125, %127 : vector<8x8xf32>
      %c0_77 = arith.constant 0 : index
      %c8_78 = arith.constant 8 : index
      %129 = vector.load %arg11[%c0_77, %c8_78] : memref<8x32xf32, #tpu.memory_space<vmem>>, vector<8x8xf32>
      tpu.vector_store %arg11[%c0_77, %c8_78], %128 {strides = array<i32>} : memref<8x32xf32, #tpu.memory_space<vmem>>, vector<8x8xf32>,
      %c0_79 = arith.constant 0 : index
      %c16_80 = arith.constant 16 : index
      %130 = vector.load %arg11[%c0_79, %c16_80] : memref<8x32xf32, #tpu.memory_space<vmem>>, vector<8x8xf32>
      %131 = vector.extract_strided_slice %119 {offsets = [0, 2], sizes = [8, 1], strides = [1, 1]} : vector<8x4xf32> to vector<8x1xf32>
      %132 = vector.broadcast %131 : vector<8x1xf32> to vector<8x8xf32>
      %133 = arith.mulf %130, %132 : vector<8x8xf32>
      %c0_81 = arith.constant 0 : index
      %c16_82 = arith.constant 16 : index
      %134 = vector.load %arg11[%c0_81, %c16_82] : memref<8x32xf32, #tpu.memory_space<vmem>>, vector<8x8xf32>
      tpu.vector_store %arg11[%c0_81, %c16_82], %133 {strides = array<i32>} : memref<8x32xf32, #tpu.memory_space<vmem>>, vector<8x8xf32>,
      %c0_83 = arith.constant 0 : index
      %c24_84 = arith.constant 24 : index
      %135 = vector.load %arg11[%c0_83, %c24_84] : memref<8x32xf32, #tpu.memory_space<vmem>>, vector<8x8xf32>
      %136 = vector.extract_strided_slice %119 {offsets = [0, 3], sizes = [8, 1], strides = [1, 1]} : vector<8x4xf32> to vector<8x1xf32>
      %137 = vector.broadcast %136 : vector<8x1xf32> to vector<8x8xf32>
      %138 = arith.mulf %135, %137 : vector<8x8xf32>
      %c0_85 = arith.constant 0 : index
      %c24_86 = arith.constant 24 : index
      %139 = vector.load %arg11[%c0_85, %c24_86] : memref<8x32xf32, #tpu.memory_space<vmem>>, vector<8x8xf32>
      tpu.vector_store %arg11[%c0_85, %c24_86], %138 {strides = array<i32>} : memref<8x32xf32, #tpu.memory_space<vmem>>, vector<8x8xf32>,
      %c0_87 = arith.constant 0 : index
      %c0_88 = arith.constant 0 : index
      %140 = vector.load %arg11[%c0_87, %c0_88] : memref<8x32xf32, #tpu.memory_space<vmem>>, vector<8x32xf32>
      %c0_89 = arith.constant 0 : index
      %c0_90 = arith.constant 0 : index
      %141 = vector.load %arg6[%c0_89, %c0_90] : memref<32x32xf32, #tpu.memory_space<vmem>>, vector<32x32xf32>
      %cst_91 = arith.constant dense<0.000000e+00> : vector<8x32xf32>
      %142 = tpu.matmul %140, %141, %cst_91 {dimension_numbers = #tpu.dot_dimension_numbers<[1], [0], [0], [1], [0, 0, 1, 1], [], []>} : vector<8x32xf32>, vector<32x32xf32>, vector<8x32xf32> -> vector<8x32xf32>
      %c0_92 = arith.constant 0 : index
      %c0_93 = arith.constant 0 : index
      %143 = vector.load %arg7[%c0_92, %c0_93] : memref<1x32xf32, #tpu.memory_space<vmem>>, vector<1x32xf32>
      %144 = vector.broadcast %143 : vector<1x32xf32> to vector<8x32xf32>
      %145 = arith.addf %142, %144 : vector<8x32xf32>
      %c0_94 = arith.constant 0 : index
      %c0_95 = arith.constant 0 : index
      %c0_96 = arith.constant 0 : index
      %146 = vector.load %arg8[%c0_94, %c0_95, %c0_96] : memref<1x8x32xf32, #tpu.memory_space<vmem>>, vector<1x8x32xf32>
      %147 = vector.shape_cast %146 : vector<1x8x32xf32> to vector<8x32xf32>
      %148 = vector.shape_cast %145 : vector<8x32xf32> to vector<1x8x32xf32>
      tpu.vector_store %arg8[%c0_94, %c0_95, %c0_96], %148 {strides = array<i32>} : memref<1x8x32xf32, #tpu.memory_space<vmem>>, vector<1x8x32xf32>,
    } else {
    }
    return
  }
  func.func @transform_0(%arg0: i32, %arg1: i32, %arg2: i32) -> (i32, i32, i32) {
    %c0_i32 = arith.constant 0 : i32
    %c0_i32_0 = arith.constant 0 : i32
    return %arg0, %arg1, %c0_i32 : i32, i32, i32
  }
  func.func @transform_1(%arg0: i32, %arg1: i32, %arg2: i32) -> (i32, i32, i32) {
    %c0_i32 = arith.constant 0 : i32
    %c0_i32_0 = arith.constant 0 : i32
    return %arg0, %arg2, %c0_i32 : i32, i32, i32
  }
  func.func @transform_2(%arg0: i32, %arg1: i32, %arg2: i32) -> (i32, i32, i32) {
    %c0_i32 = arith.constant 0 : i32
    %c0_i32_0 = arith.constant 0 : i32
    return %arg0, %arg2, %c0_i32 : i32, i32, i32
  }
  func.func @transform_3(%arg0: i32, %arg1: i32, %arg2: i32) -> (i32, i32) {
    %c0_i32 = arith.constant 0 : i32
    %c0_i32_0 = arith.constant 0 : i32
    %c0_i32_1 = arith.constant 0 : i32
    return %c0_i32, %c0_i32_0 : i32, i32
  }
  func.func @transform_4(%arg0: i32, %arg1: i32, %arg2: i32) -> (i32, i32) {
    %c0_i32 = arith.constant 0 : i32
    %c0_i32_0 = arith.constant 0 : i32
    %c0_i32_1 = arith.constant 0 : i32
    return %c0_i32, %c0_i32_0 : i32, i32
  }
  func.func @transform_5(%arg0: i32, %arg1: i32, %arg2: i32) -> (i32, i32, i32) {
    %c0_i32 = arith.constant 0 : i32
    %c0_i32_0 = arith.constant 0 : i32
    return %arg0, %arg1, %c0_i32 : i32, i32, i32
  }
}

module attributes {stable_mosaic.version = 11 : i64} {
  func.func @_flash_attn_fc_kernel(%arg0: i32, %arg1: i32, %arg2: i32, %arg3: memref<1x8x32xf32, #tpu.memory_space<vmem>>, %arg4: memref<1x8x32xf32, #tpu.memory_space<vmem>>, %arg5: memref<1x8x32xf32, #tpu.memory_space<vmem>>, %arg6: memref<32x32xf32, #tpu.memory_space<vmem>>, %arg7: memref<1x32xf32, #tpu.memory_space<vmem>>, %arg8: memref<1x8x32xf32, #tpu.memory_space<vmem>>, %arg9: memref<8x4xf32, #tpu.memory_space<vmem>>, %arg10: memref<8x4xf32, #tpu.memory_space<vmem>>, %arg11: memref<8x32xf32, #tpu.memory_space<vmem>>) attributes {dimension_semantics = [#tpu.dimension_semantics<parallel>, #tpu.dimension_semantics<parallel>, #tpu.dimension_semantics<arbitrary>], iteration_bounds = array<i64: 2, 1, 1>, scalar_prefetch = 0 : i64, scratch_operands = 3 : i64, tpu.core_type = #tpu.core_type<tc>, window_params = [{transform_indices = @transform_0, window_bounds = array<i64: 1, 8, 32>}, {transform_indices = @transform_1, window_bounds = array<i64: 1, 8, 32>}, {transform_indices = @transform_2, window_bounds = array<i64: 1, 8, 32>}, {pipeline_mode = #tpu.pipeline_mode<synchronous>, transform_indices = @transform_3, window_bounds = array<i64: 32, 32>}, {pipeline_mode = #tpu.pipeline_mode<synchronous>, transform_indices = @transform_4, window_bounds = array<i64: 1, 32>}, {transform_indices = @transform_5, window_bounds = array<i64: 1, 8, 32>}]} {
    %c0_i32 = arith.constant 0 : i32
    %0 = arith.cmpi eq, %arg2, %c0_i32 : i32
    %1 = arith.extui %0 : i1 to i32
    %c0_i32_0 = arith.constant 0 : i32
    %2 = arith.cmpi ne, %1, %c0_i32_0 : i32
    scf.if %2 {
      %cst_69 = arith.constant 0xFF800000 : f32
      %118 = vector.broadcast %cst_69 : f32 to vector<8x4xf32>
      %c0_70 = arith.constant 0 : index
      %c0_71 = arith.constant 0 : index
      %119 = vector.load %arg9[%c0_70, %c0_71] : memref<8x4xf32, #tpu.memory_space<vmem>>, vector<8x4xf32>
      tpu.vector_store %arg9[%c0_70, %c0_71], %118 {strides = array<i32>} : memref<8x4xf32, #tpu.memory_space<vmem>>, vector<8x4xf32>,
      %cst_72 = arith.constant 0.000000e+00 : f32
      %120 = vector.broadcast %cst_72 : f32 to vector<8x4xf32>
      %c0_73 = arith.constant 0 : index
      %c0_74 = arith.constant 0 : index
      %121 = vector.load %arg10[%c0_73, %c0_74] : memref<8x4xf32, #tpu.memory_space<vmem>>, vector<8x4xf32>
      tpu.vector_store %arg10[%c0_73, %c0_74], %120 {strides = array<i32>} : memref<8x4xf32, #tpu.memory_space<vmem>>, vector<8x4xf32>,
      %cst_75 = arith.constant 0.000000e+00 : f32
      %122 = vector.broadcast %cst_75 : f32 to vector<8x32xf32>
      %c0_76 = arith.constant 0 : index
      %c0_77 = arith.constant 0 : index
      %123 = vector.load %arg11[%c0_76, %c0_77] : memref<8x32xf32, #tpu.memory_space<vmem>>, vector<8x32xf32>
      tpu.vector_store %arg11[%c0_76, %c0_77], %122 {strides = array<i32>} : memref<8x32xf32, #tpu.memory_space<vmem>>, vector<8x32xf32>,
    } else {
    }
    %c0 = arith.constant 0 : index
    %c0_1 = arith.constant 0 : index
    %c0_2 = arith.constant 0 : index
    %3 = vector.load %arg3[%c0, %c0_1, %c0_2] : memref<1x8x32xf32, #tpu.memory_space<vmem>>, vector<1x8x32xf32>
    %4 = vector.shape_cast %3 : vector<1x8x32xf32> to vector<8x32xf32>
    %cst = arith.constant 0.353553385 : f32
    %5 = vector.broadcast %cst : f32 to vector<8x32xf32>
    %6 = arith.mulf %4, %5 : vector<8x32xf32>
    %c0_3 = arith.constant 0 : index
    %c0_4 = arith.constant 0 : index
    %c0_5 = arith.constant 0 : index
    %7 = vector.load %arg4[%c0_3, %c0_4, %c0_5] : memref<1x8x32xf32, #tpu.memory_space<vmem>>, vector<1x8x32xf32>
    %8 = vector.shape_cast %7 : vector<1x8x32xf32> to vector<8x32xf32>
    %c0_6 = arith.constant 0 : index
    %c0_7 = arith.constant 0 : index
    %c0_8 = arith.constant 0 : index
    %9 = vector.load %arg5[%c0_6, %c0_7, %c0_8] : memref<1x8x32xf32, #tpu.memory_space<vmem>>, vector<1x8x32xf32>
    %10 = vector.shape_cast %9 : vector<1x8x32xf32> to vector<8x32xf32>
    %11 = vector.extract_strided_slice %6 {offsets = [0, 0], sizes = [8, 8], strides = [1, 1]} : vector<8x32xf32> to vector<8x8xf32>
    %12 = vector.extract_strided_slice %8 {offsets = [0, 0], sizes = [8, 8], strides = [1, 1]} : vector<8x32xf32> to vector<8x8xf32>
    %13 = vector.extract_strided_slice %10 {offsets = [0, 0], sizes = [8, 8], strides = [1, 1]} : vector<8x32xf32> to vector<8x8xf32>
    %cst_9 = arith.constant dense<0.000000e+00> : vector<8x8xf32>
    %14 = tpu.matmul %11, %12, %cst_9 {dimension_numbers = #tpu.dot_dimension_numbers<[1], [1], [0], [0], [0, 0, 1, 0], [], []>} : vector<8x8xf32>, vector<8x8xf32>, vector<8x8xf32> -> vector<8x8xf32>
    %c0_10 = arith.constant 0 : index
    %c0_11 = arith.constant 0 : index
    %15 = vector.load %arg9[%c0_10, %c0_11] : memref<8x4xf32, #tpu.memory_space<vmem>>, vector<8x1xf32>
    %c0_12 = arith.constant 0 : index
    %c0_13 = arith.constant 0 : index
    %16 = vector.load %arg10[%c0_12, %c0_13] : memref<8x4xf32, #tpu.memory_space<vmem>>, vector<8x1xf32>
    %cst_14 = arith.constant dense<0xFF800000> : vector<8xf32>
    %17 = vector.multi_reduction <maximumf>, %14, %cst_14 [1] : vector<8x8xf32> to vector<8xf32>
    %18 = vector.shape_cast %17 : vector<8xf32> to vector<8x1xf32>
    %19 = arith.maximumf %15, %18 : vector<8x1xf32>
    %20 = arith.subf %15, %19 : vector<8x1xf32>
    %21 = math.exp %20 : vector<8x1xf32>
    %22 = vector.broadcast %19 : vector<8x1xf32> to vector<8x8xf32>
    %23 = arith.subf %14, %22 : vector<8x8xf32>
    %24 = math.exp %23 : vector<8x8xf32>
    %25 = arith.mulf %21, %16 : vector<8x1xf32>
    %cst_15 = arith.constant dense<0.000000e+00> : vector<8xf32>
    %26 = vector.multi_reduction <add>, %24, %cst_15 [1] : vector<8x8xf32> to vector<8xf32>
    %27 = vector.shape_cast %26 : vector<8xf32> to vector<8x1xf32>
    %28 = arith.addf %25, %27 : vector<8x1xf32>
    %c0_16 = arith.constant 0 : index
    %c0_17 = arith.constant 0 : index
    %29 = vector.load %arg10[%c0_16, %c0_17] : memref<8x4xf32, #tpu.memory_space<vmem>>, vector<8x1xf32>
    tpu.vector_store %arg10[%c0_16, %c0_17], %28 {strides = array<i32>} : memref<8x4xf32, #tpu.memory_space<vmem>>, vector<8x1xf32>,
    %c0_18 = arith.constant 0 : index
    %c0_19 = arith.constant 0 : index
    %30 = vector.load %arg9[%c0_18, %c0_19] : memref<8x4xf32, #tpu.memory_space<vmem>>, vector<8x1xf32>
    tpu.vector_store %arg9[%c0_18, %c0_19], %19 {strides = array<i32>} : memref<8x4xf32, #tpu.memory_space<vmem>>, vector<8x1xf32>,
    %cst_20 = arith.constant dense<0.000000e+00> : vector<8x8xf32>
    %31 = tpu.matmul %24, %13, %cst_20 {dimension_numbers = #tpu.dot_dimension_numbers<[1], [0], [0], [1], [0, 0, 1, 1], [], []>} : vector<8x8xf32>, vector<8x8xf32>, vector<8x8xf32> -> vector<8x8xf32>
    %c0_21 = arith.constant 0 : index
    %c0_22 = arith.constant 0 : index
    %32 = vector.load %arg11[%c0_21, %c0_22] : memref<8x32xf32, #tpu.memory_space<vmem>>, vector<8x8xf32>
    %33 = vector.broadcast %21 : vector<8x1xf32> to vector<8x8xf32>
    %34 = arith.mulf %33, %32 : vector<8x8xf32>
    %35 = arith.addf %34, %31 : vector<8x8xf32>
    %c0_23 = arith.constant 0 : index
    %c0_24 = arith.constant 0 : index
    %36 = vector.load %arg11[%c0_23, %c0_24] : memref<8x32xf32, #tpu.memory_space<vmem>>, vector<8x8xf32>
    tpu.vector_store %arg11[%c0_23, %c0_24], %35 {strides = array<i32>} : memref<8x32xf32, #tpu.memory_space<vmem>>, vector<8x8xf32>,
    %37 = vector.extract_strided_slice %6 {offsets = [0, 8], sizes = [8, 8], strides = [1, 1]} : vector<8x32xf32> to vector<8x8xf32>
    %38 = vector.extract_strided_slice %8 {offsets = [0, 8], sizes = [8, 8], strides = [1, 1]} : vector<8x32xf32> to vector<8x8xf32>
    %39 = vector.extract_strided_slice %10 {offsets = [0, 8], sizes = [8, 8], strides = [1, 1]} : vector<8x32xf32> to vector<8x8xf32>
    %cst_25 = arith.constant dense<0.000000e+00> : vector<8x8xf32>
    %40 = tpu.matmul %37, %38, %cst_25 {dimension_numbers = #tpu.dot_dimension_numbers<[1], [1], [0], [0], [0, 0, 1, 0], [], []>} : vector<8x8xf32>, vector<8x8xf32>, vector<8x8xf32> -> vector<8x8xf32>
    %c0_26 = arith.constant 0 : index
    %c1 = arith.constant 1 : index
    %41 = vector.load %arg9[%c0_26, %c1] : memref<8x4xf32, #tpu.memory_space<vmem>>, vector<8x1xf32>
    %c0_27 = arith.constant 0 : index
    %c1_28 = arith.constant 1 : index
    %42 = vector.load %arg10[%c0_27, %c1_28] : memref<8x4xf32, #tpu.memory_space<vmem>>, vector<8x1xf32>
    %cst_29 = arith.constant dense<0xFF800000> : vector<8xf32>
    %43 = vector.multi_reduction <maximumf>, %40, %cst_29 [1] : vector<8x8xf32> to vector<8xf32>
    %44 = vector.shape_cast %43 : vector<8xf32> to vector<8x1xf32>
    %45 = arith.maximumf %41, %44 : vector<8x1xf32>
    %46 = arith.subf %41, %45 : vector<8x1xf32>
    %47 = math.exp %46 : vector<8x1xf32>
    %48 = vector.broadcast %45 : vector<8x1xf32> to vector<8x8xf32>
    %49 = arith.subf %40, %48 : vector<8x8xf32>
    %50 = math.exp %49 : vector<8x8xf32>
    %51 = arith.mulf %47, %42 : vector<8x1xf32>
    %cst_30 = arith.constant dense<0.000000e+00> : vector<8xf32>
    %52 = vector.multi_reduction <add>, %50, %cst_30 [1] : vector<8x8xf32> to vector<8xf32>
    %53 = vector.shape_cast %52 : vector<8xf32> to vector<8x1xf32>
    %54 = arith.addf %51, %53 : vector<8x1xf32>
    %c0_31 = arith.constant 0 : index
    %c1_32 = arith.constant 1 : index
    %55 = vector.load %arg10[%c0_31, %c1_32] : memref<8x4xf32, #tpu.memory_space<vmem>>, vector<8x1xf32>
    tpu.vector_store %arg10[%c0_31, %c1_32], %54 {strides = array<i32>} : memref<8x4xf32, #tpu.memory_space<vmem>>, vector<8x1xf32>,
    %c0_33 = arith.constant 0 : index
    %c1_34 = arith.constant 1 : index
    %56 = vector.load %arg9[%c0_33, %c1_34] : memref<8x4xf32, #tpu.memory_space<vmem>>, vector<8x1xf32>
    tpu.vector_store %arg9[%c0_33, %c1_34], %45 {strides = array<i32>} : memref<8x4xf32, #tpu.memory_space<vmem>>, vector<8x1xf32>,
    %cst_35 = arith.constant dense<0.000000e+00> : vector<8x8xf32>
    %57 = tpu.matmul %50, %39, %cst_35 {dimension_numbers = #tpu.dot_dimension_numbers<[1], [0], [0], [1], [0, 0, 1, 1], [], []>} : vector<8x8xf32>, vector<8x8xf32>, vector<8x8xf32> -> vector<8x8xf32>
    %c0_36 = arith.constant 0 : index
    %c8 = arith.constant 8 : index
    %58 = vector.load %arg11[%c0_36, %c8] : memref<8x32xf32, #tpu.memory_space<vmem>>, vector<8x8xf32>
    %59 = vector.broadcast %47 : vector<8x1xf32> to vector<8x8xf32>
    %60 = arith.mulf %59, %58 : vector<8x8xf32>
    %61 = arith.addf %60, %57 : vector<8x8xf32>
    %c0_37 = arith.constant 0 : index
    %c8_38 = arith.constant 8 : index
    %62 = vector.load %arg11[%c0_37, %c8_38] : memref<8x32xf32, #tpu.memory_space<vmem>>, vector<8x8xf32>
    tpu.vector_store %arg11[%c0_37, %c8_38], %61 {strides = array<i32>} : memref<8x32xf32, #tpu.memory_space<vmem>>, vector<8x8xf32>,
    %63 = vector.extract_strided_slice %6 {offsets = [0, 16], sizes = [8, 8], strides = [1, 1]} : vector<8x32xf32> to vector<8x8xf32>
    %64 = vector.extract_strided_slice %8 {offsets = [0, 16], sizes = [8, 8], strides = [1, 1]} : vector<8x32xf32> to vector<8x8xf32>
    %65 = vector.extract_strided_slice %10 {offsets = [0, 16], sizes = [8, 8], strides = [1, 1]} : vector<8x32xf32> to vector<8x8xf32>
    %cst_39 = arith.constant dense<0.000000e+00> : vector<8x8xf32>
    %66 = tpu.matmul %63, %64, %cst_39 {dimension_numbers = #tpu.dot_dimension_numbers<[1], [1], [0], [0], [0, 0, 1, 0], [], []>} : vector<8x8xf32>, vector<8x8xf32>, vector<8x8xf32> -> vector<8x8xf32>
    %c0_40 = arith.constant 0 : index
    %c2 = arith.constant 2 : index
    %67 = vector.load %arg9[%c0_40, %c2] : memref<8x4xf32, #tpu.memory_space<vmem>>, vector<8x1xf32>
    %c0_41 = arith.constant 0 : index
    %c2_42 = arith.constant 2 : index
    %68 = vector.load %arg10[%c0_41, %c2_42] : memref<8x4xf32, #tpu.memory_space<vmem>>, vector<8x1xf32>
    %cst_43 = arith.constant dense<0xFF800000> : vector<8xf32>
    %69 = vector.multi_reduction <maximumf>, %66, %cst_43 [1] : vector<8x8xf32> to vector<8xf32>
    %70 = vector.shape_cast %69 : vector<8xf32> to vector<8x1xf32>
    %71 = arith.maximumf %67, %70 : vector<8x1xf32>
    %72 = arith.subf %67, %71 : vector<8x1xf32>
    %73 = math.exp %72 : vector<8x1xf32>
    %74 = vector.broadcast %71 : vector<8x1xf32> to vector<8x8xf32>
    %75 = arith.subf %66, %74 : vector<8x8xf32>
    %76 = math.exp %75 : vector<8x8xf32>
    %77 = arith.mulf %73, %68 : vector<8x1xf32>
    %cst_44 = arith.constant dense<0.000000e+00> : vector<8xf32>
    %78 = vector.multi_reduction <add>, %76, %cst_44 [1] : vector<8x8xf32> to vector<8xf32>
    %79 = vector.shape_cast %78 : vector<8xf32> to vector<8x1xf32>
    %80 = arith.addf %77, %79 : vector<8x1xf32>
    %c0_45 = arith.constant 0 : index
    %c2_46 = arith.constant 2 : index
    %81 = vector.load %arg10[%c0_45, %c2_46] : memref<8x4xf32, #tpu.memory_space<vmem>>, vector<8x1xf32>
    tpu.vector_store %arg10[%c0_45, %c2_46], %80 {strides = array<i32>} : memref<8x4xf32, #tpu.memory_space<vmem>>, vector<8x1xf32>,
    %c0_47 = arith.constant 0 : index
    %c2_48 = arith.constant 2 : index
    %82 = vector.load %arg9[%c0_47, %c2_48] : memref<8x4xf32, #tpu.memory_space<vmem>>, vector<8x1xf32>
    tpu.vector_store %arg9[%c0_47, %c2_48], %71 {strides = array<i32>} : memref<8x4xf32, #tpu.memory_space<vmem>>, vector<8x1xf32>,
    %cst_49 = arith.constant dense<0.000000e+00> : vector<8x8xf32>
    %83 = tpu.matmul %76, %65, %cst_49 {dimension_numbers = #tpu.dot_dimension_numbers<[1], [0], [0], [1], [0, 0, 1, 1], [], []>} : vector<8x8xf32>, vector<8x8xf32>, vector<8x8xf32> -> vector<8x8xf32>
    %c0_50 = arith.constant 0 : index
    %c16 = arith.constant 16 : index
    %84 = vector.load %arg11[%c0_50, %c16] : memref<8x32xf32, #tpu.memory_space<vmem>>, vector<8x8xf32>
    %85 = vector.broadcast %73 : vector<8x1xf32> to vector<8x8xf32>
    %86 = arith.mulf %85, %84 : vector<8x8xf32>
    %87 = arith.addf %86, %83 : vector<8x8xf32>
    %c0_51 = arith.constant 0 : index
    %c16_52 = arith.constant 16 : index
    %88 = vector.load %arg11[%c0_51, %c16_52] : memref<8x32xf32, #tpu.memory_space<vmem>>, vector<8x8xf32>
    tpu.vector_store %arg11[%c0_51, %c16_52], %87 {strides = array<i32>} : memref<8x32xf32, #tpu.memory_space<vmem>>, vector<8x8xf32>,
    %89 = vector.extract_strided_slice %6 {offsets = [0, 24], sizes = [8, 8], strides = [1, 1]} : vector<8x32xf32> to vector<8x8xf32>
    %90 = vector.extract_strided_slice %8 {offsets = [0, 24], sizes = [8, 8], strides = [1, 1]} : vector<8x32xf32> to vector<8x8xf32>
    %91 = vector.extract_strided_slice %10 {offsets = [0, 24], sizes = [8, 8], strides = [1, 1]} : vector<8x32xf32> to vector<8x8xf32>
    %cst_53 = arith.constant dense<0.000000e+00> : vector<8x8xf32>
    %92 = tpu.matmul %89, %90, %cst_53 {dimension_numbers = #tpu.dot_dimension_numbers<[1], [1], [0], [0], [0, 0, 1, 0], [], []>} : vector<8x8xf32>, vector<8x8xf32>, vector<8x8xf32> -> vector<8x8xf32>
    %c0_54 = arith.constant 0 : index
    %c3 = arith.constant 3 : index
    %93 = vector.load %arg9[%c0_54, %c3] : memref<8x4xf32, #tpu.memory_space<vmem>>, vector<8x1xf32>
    %c0_55 = arith.constant 0 : index
    %c3_56 = arith.constant 3 : index
    %94 = vector.load %arg10[%c0_55, %c3_56] : memref<8x4xf32, #tpu.memory_space<vmem>>, vector<8x1xf32>
    %cst_57 = arith.constant dense<0xFF800000> : vector<8xf32>
    %95 = vector.multi_reduction <maximumf>, %92, %cst_57 [1] : vector<8x8xf32> to vector<8xf32>
    %96 = vector.shape_cast %95 : vector<8xf32> to vector<8x1xf32>
    %97 = arith.maximumf %93, %96 : vector<8x1xf32>
    %98 = arith.subf %93, %97 : vector<8x1xf32>
    %99 = math.exp %98 : vector<8x1xf32>
    %100 = vector.broadcast %97 : vector<8x1xf32> to vector<8x8xf32>
    %101 = arith.subf %92, %100 : vector<8x8xf32>
    %102 = math.exp %101 : vector<8x8xf32>
    %103 = arith.mulf %99, %94 : vector<8x1xf32>
    %cst_58 = arith.constant dense<0.000000e+00> : vector<8xf32>
    %104 = vector.multi_reduction <add>, %102, %cst_58 [1] : vector<8x8xf32> to vector<8xf32>
    %105 = vector.shape_cast %104 : vector<8xf32> to vector<8x1xf32>
    %106 = arith.addf %103, %105 : vector<8x1xf32>
    %c0_59 = arith.constant 0 : index
    %c3_60 = arith.constant 3 : index
    %107 = vector.load %arg10[%c0_59, %c3_60] : memref<8x4xf32, #tpu.memory_space<vmem>>, vector<8x1xf32>
    tpu.vector_store %arg10[%c0_59, %c3_60], %106 {strides = array<i32>} : memref<8x4xf32, #tpu.memory_space<vmem>>, vector<8x1xf32>,
    %c0_61 = arith.constant 0 : index
    %c3_62 = arith.constant 3 : index
    %108 = vector.load %arg9[%c0_61, %c3_62] : memref<8x4xf32, #tpu.memory_space<vmem>>, vector<8x1xf32>
    tpu.vector_store %arg9[%c0_61, %c3_62], %97 {strides = array<i32>} : memref<8x4xf32, #tpu.memory_space<vmem>>, vector<8x1xf32>,
    %cst_63 = arith.constant dense<0.000000e+00> : vector<8x8xf32>
    %109 = tpu.matmul %102, %91, %cst_63 {dimension_numbers = #tpu.dot_dimension_numbers<[1], [0], [0], [1], [0, 0, 1, 1], [], []>} : vector<8x8xf32>, vector<8x8xf32>, vector<8x8xf32> -> vector<8x8xf32>
    %c0_64 = arith.constant 0 : index
    %c24 = arith.constant 24 : index
    %110 = vector.load %arg11[%c0_64, %c24] : memref<8x32xf32, #tpu.memory_space<vmem>>, vector<8x8xf32>
    %111 = vector.broadcast %99 : vector<8x1xf32> to vector<8x8xf32>
    %112 = arith.mulf %111, %110 : vector<8x8xf32>
    %113 = arith.addf %112, %109 : vector<8x8xf32>
    %c0_65 = arith.constant 0 : index
    %c24_66 = arith.constant 24 : index
    %114 = vector.load %arg11[%c0_65, %c24_66] : memref<8x32xf32, #tpu.memory_space<vmem>>, vector<8x8xf32>
    tpu.vector_store %arg11[%c0_65, %c24_66], %113 {strides = array<i32>} : memref<8x32xf32, #tpu.memory_space<vmem>>, vector<8x8xf32>,
    %c0_i32_67 = arith.constant 0 : i32
    %115 = arith.cmpi eq, %arg2, %c0_i32_67 : i32
    %116 = arith.extui %115 : i1 to i32
    %c0_i32_68 = arith.constant 0 : i32
    %117 = arith.cmpi ne, %116, %c0_i32_68 : i32
    scf.if %117 {
      %c0_69 = arith.constant 0 : index
      %c0_70 = arith.constant 0 : index
      %118 = vector.load %arg10[%c0_69, %c0_70] : memref<8x4xf32, #tpu.memory_space<vmem>>, vector<8x4xf32>
      %119 = tpu.reciprocal %118 {approx = true} : vector<8x4xf32> -> vector<8x4xf32>
      %c0_71 = arith.constant 0 : index
      %c0_72 = arith.constant 0 : index
      %120 = vector.load %arg11[%c0_71, %c0_72] : memref<8x32xf32, #tpu.memory_space<vmem>>, vector<8x8xf32>
      %121 = vector.extract_strided_slice %119 {offsets = [0, 0], sizes = [8, 1], strides = [1, 1]} : vector<8x4xf32> to vector<8x1xf32>
      %122 = vector.broadcast %121 : vector<8x1xf32> to vector<8x8xf32>
      %123 = arith.mulf %120, %122 : vector<8x8xf32>
      %c0_73 = arith.constant 0 : index
      %c0_74 = arith.constant 0 : index
      %124 = vector.load %arg11[%c0_73, %c0_74] : memref<8x32xf32, #tpu.memory_space<vmem>>, vector<8x8xf32>
      tpu.vector_store %arg11[%c0_73, %c0_74], %123 {strides = array<i32>} : memref<8x32xf32, #tpu.memory_space<vmem>>, vector<8x8xf32>,
      %c0_75 = arith.constant 0 : index
      %c8_76 = arith.constant 8 : index
      %125 = vector.load %arg11[%c0_75, %c8_76] : memref<8x32xf32, #tpu.memory_space<vmem>>, vector<8x8xf32>
      %126 = vector.extract_strided_slice %119 {offsets = [0, 1], sizes = [8, 1], strides = [1, 1]} : vector<8x4xf32> to vector<8x1xf32>
      %127 = vector.broadcast %126 : vector<8x1xf32> to vector<8x8xf32>
      %128 = arith.mulf %125, %127 : vector<8x8xf32>
      %c0_77 = arith.constant 0 : index
      %c8_78 = arith.constant 8 : index
      %129 = vector.load %arg11[%c0_77, %c8_78] : memref<8x32xf32, #tpu.memory_space<vmem>>, vector<8x8xf32>
      tpu.vector_store %arg11[%c0_77, %c8_78], %128 {strides = array<i32>} : memref<8x32xf32, #tpu.memory_space<vmem>>, vector<8x8xf32>,
      %c0_79 = arith.constant 0 : index
      %c16_80 = arith.constant 16 : index
      %130 = vector.load %arg11[%c0_79, %c16_80] : memref<8x32xf32, #tpu.memory_space<vmem>>, vector<8x8xf32>
      %131 = vector.extract_strided_slice %119 {offsets = [0, 2], sizes = [8, 1], strides = [1, 1]} : vector<8x4xf32> to vector<8x1xf32>
      %132 = vector.broadcast %131 : vector<8x1xf32> to vector<8x8xf32>
      %133 = arith.mulf %130, %132 : vector<8x8xf32>
      %c0_81 = arith.constant 0 : index
      %c16_82 = arith.constant 16 : index
      %134 = vector.load %arg11[%c0_81, %c16_82] : memref<8x32xf32, #tpu.memory_space<vmem>>, vector<8x8xf32>
      tpu.vector_store %arg11[%c0_81, %c16_82], %133 {strides = array<i32>} : memref<8x32xf32, #tpu.memory_space<vmem>>, vector<8x8xf32>,
      %c0_83 = arith.constant 0 : index
      %c24_84 = arith.constant 24 : index
      %135 = vector.load %arg11[%c0_83, %c24_84] : memref<8x32xf32, #tpu.memory_space<vmem>>, vector<8x8xf32>
      %136 = vector.extract_strided_slice %119 {offsets = [0, 3], sizes = [8, 1], strides = [1, 1]} : vector<8x4xf32> to vector<8x1xf32>
      %137 = vector.broadcast %136 : vector<8x1xf32> to vector<8x8xf32>
      %138 = arith.mulf %135, %137 : vector<8x8xf32>
      %c0_85 = arith.constant 0 : index
      %c24_86 = arith.constant 24 : index
      %139 = vector.load %arg11[%c0_85, %c24_86] : memref<8x32xf32, #tpu.memory_space<vmem>>, vector<8x8xf32>
      tpu.vector_store %arg11[%c0_85, %c24_86], %138 {strides = array<i32>} : memref<8x32xf32, #tpu.memory_space<vmem>>, vector<8x8xf32>,
      %c0_87 = arith.constant 0 : index
      %c0_88 = arith.constant 0 : index
      %140 = vector.load %arg11[%c0_87, %c0_88] : memref<8x32xf32, #tpu.memory_space<vmem>>, vector<8x32xf32>
      %c0_89 = arith.constant 0 : index
      %c0_90 = arith.constant 0 : index
      %141 = vector.load %arg6[%c0_89, %c0_90] : memref<32x32xf32, #tpu.memory_space<vmem>>, vector<32x32xf32>
      %cst_91 = arith.constant dense<0.000000e+00> : vector<8x32xf32>
      %142 = tpu.matmul %140, %141, %cst_91 {dimension_numbers = #tpu.dot_dimension_numbers<[1], [0], [0], [1], [0, 0, 1, 1], [], []>} : vector<8x32xf32>, vector<32x32xf32>, vector<8x32xf32> -> vector<8x32xf32>
      %c0_92 = arith.constant 0 : index
      %c0_93 = arith.constant 0 : index
      %143 = vector.load %arg7[%c0_92, %c0_93] : memref<1x32xf32, #tpu.memory_space<vmem>>, vector<1x32xf32>
      %144 = vector.broadcast %143 : vector<1x32xf32> to vector<8x32xf32>
      %145 = arith.addf %142, %144 : vector<8x32xf32>
      %c0_94 = arith.constant 0 : index
      %c0_95 = arith.constant 0 : index
      %c0_96 = arith.constant 0 : index
      %146 = vector.load %arg8[%c0_94, %c0_95, %c0_96] : memref<1x8x32xf32, #tpu.memory_space<vmem>>, vector<1x8x32xf32>
      %147 = vector.shape_cast %146 : vector<1x8x32xf32> to vector<8x32xf32>
      %148 = vector.shape_cast %145 : vector<8x32xf32> to vector<1x8x32xf32>
      tpu.vector_store %arg8[%c0_94, %c0_95, %c0_96], %148 {strides = array<i32>} : memref<1x8x32xf32, #tpu.memory_space<vmem>>, vector<1x8x32xf32>,
    } else {
    }
    return
  }
  func.func @transform_0(%arg0: i32, %arg1: i32, %arg2: i32) -> (i32, i32, i32) {
    %c0_i32 = arith.constant 0 : i32
    %c0_i32_0 = arith.constant 0 : i32
    return %arg0, %arg1, %c0_i32 : i32, i32, i32
  }
  func.func @transform_1(%arg0: i32, %arg1: i32, %arg2: i32) -> (i32, i32, i32) {
    %c0_i32 = arith.constant 0 : i32
    %c0_i32_0 = arith.constant 0 : i32
    return %arg0, %arg2, %c0_i32 : i32, i32, i32
  }
  func.func @transform_2(%arg0: i32, %arg1: i32, %arg2: i32) -> (i32, i32, i32) {
    %c0_i32 = arith.constant 0 : i32
    %c0_i32_0 = arith.constant 0 : i32
    return %arg0, %arg2, %c0_i32 : i32, i32, i32
  }
  func.func @transform_3(%arg0: i32, %arg1: i32, %arg2: i32) -> (i32, i32) {
    %c0_i32 = arith.constant 0 : i32
    %c0_i32_0 = arith.constant 0 : i32
    %c0_i32_1 = arith.constant 0 : i32
    return %c0_i32, %c0_i32_0 : i32, i32
  }
  func.func @transform_4(%arg0: i32, %arg1: i32, %arg2: i32) -> (i32, i32) {
    %c0_i32 = arith.constant 0 : i32
    %c0_i32_0 = arith.constant 0 : i32
    %c0_i32_1 = arith.constant 0 : i32
    return %c0_i32, %c0_i32_0 : i32, i32
  }
  func.func @transform_5(%arg0: i32, %arg1: i32, %arg2: i32) -> (i32, i32, i32) {
    %c0_i32 = arith.constant 0 : i32
    %c0_i32_0 = arith.constant 0 : i32
    return %arg0, %arg1, %c0_i32 : i32, i32, i32
  }
}

</mosaic_0001>

<llo_original>
// kernel: tpu_custom_call.1
$region0: #{tpu_custom_call.1}
  #allocation0 [shape = 'u32[]', space=smem, size = 0x4, offset = 0x4, fixed_abs, tag = 'smem constant byte address 0x4 - core index']
  #allocation1 [shape = 'u32[144,128]{1,0:T(1,128)}', space=vmem, size = 0x12000, scoped, tag = 'internal scratch']
  #allocation2 [shape = 'f32[8,4]{1,0:T(8,128)}', space=vmem, size = 0x1000, scoped, tag = 'scratch operand']
  #allocation3 [shape = 'f32[8,4]{1,0:T(8,128)}', space=vmem, size = 0x1000, scoped, tag = 'scratch operand']
  #allocation4 [shape = 'f32[8,32]{1,0:T(8,128)}', space=vmem, size = 0x1000, scoped, tag = 'scratch operand']
  %s0 = inlined_call_operand.hbm [shape: f32[2,8,32], index: 0, kind: input, shape index: {}]
  %s1 = inlined_call_operand.hbm [shape: f32[2,8,32], index: 1, kind: input, shape index: {}]
  %s2 = inlined_call_operand.hbm [shape: f32[2,8,32], index: 2, kind: input, shape index: {}]
  %s3 = inlined_call_operand.hbm [shape: f32[32,32], index: 3, kind: input, shape index: {}]
  %s4 = inlined_call_operand.vmem [shape: f32[1,32], index: 4, kind: input, shape index: {}]
  %s5 = inlined_call_operand.hbm [shape: f32[2,8,32], index: 5, kind: output, shape index: {}]
  %s6 = sld [smem:[#allocation0]]
  $region77: #{tpu_custom_call.1} parent=0
    _
  %s8 = ssub.s32 1, %s6
  %s9 = scalar_select 0, %s8, %s6
  $region1: #{tpu_custom_call.1} parent=0
    #allocation5 [shape = 'u8[8192]{0}', space=vmem, size = 0x2000, scoped, tag = 'input window, operand 0']
    #allocation6 [shape = 's32[2]{0}', space=sflag, size = 0x8, scoped, tag = 'scoped memory for tpu_custom_call.1']
    #allocation7 [shape = 's32[2]{0}', space=sflag, size = 0x8, scoped, tag = 'scoped memory for tpu_custom_call.1']
    #allocation8 [shape = 'u8[8192]{0}', space=vmem, size = 0x2000, scoped, tag = 'input window, operand 1']
    #allocation9 [shape = 's32[2]{0}', space=sflag, size = 0x8, scoped, tag = 'scoped memory for tpu_custom_call.1']
    #allocation10 [shape = 'u8[8192]{0}', space=vmem, size = 0x2000, scoped, tag = 'input window, operand 2']
    #allocation11 [shape = 'u8[16384]{0}', space=vmem, size = 0x4000, scoped, tag = 'input window, operand 3, single buffered']
    #allocation12 [shape = 's32[1]{0}', space=sflag, size = 0x4, scoped, tag = 'scoped memory for tpu_custom_call.1']
    #allocation13 [shape = 'u8[8192]{0}', space=vmem, size = 0x2000, scoped, tag = 'output window, operand 0']
    %10 = vsyncpa [#allocation6], 0
    %s11 = scalar_lea.sflag [#allocation6], 1
    %12 = vsyncpa %s11, 0
    %13 = vsyncpa [#allocation9], 0
    %s14 = scalar_lea.sflag [#allocation9], 1
    %15 = vsyncpa %s14, 0
    %16 = vsyncpa [#allocation12], 0
    %17 = vsyncpa [#allocation7], 0
    %s18 = scalar_lea.sflag [#allocation7], 1
    %19 = vsyncpa %s18, 0
    loop: start=0, step=1, limit=4
    $region2: #{tpu_custom_call.1} parent=1 // loop_pre_header
      _
    $region3: #{tpu_custom_call.1} parent=1 // loop_header
      %s21 = sphi 0, %s25
      %p22 = scmp.ge.s32.totalorder %s21, 4
      %s28 = sphi 0, %s47
      %s29 = sphi 0, %s43
      %s30 = sphi 0, %s39
      %s31 = sphi 0, %s28
      %s32 = sphi 0, %s29
      %s33 = sphi 0, %s30
      %s34 = sphi 0, %s31
      %s35 = sphi 0, %s32
      %s36 = sphi 0, %s33
      %s52 = sphi 0, %s54
      %s55 = sphi 0, %s52
      %s56 = sphi 0, %s55
      %s72 = sphi 0, %s56
      %s80 = sphi 0, %s82
      %s83 = sphi 0, %s80
      %s84 = sphi 0, %s83
      %s100 = sphi 0, %s84
      %s108 = sphi 0, %s110
      %s111 = sphi 0, %s108
      %s112 = sphi 0, %s111
      %s128 = sphi 0, %s112
      %s132 = sphi 0, %s132
      %s134 = sphi 0, %s132
      %s135 = sphi 0, %s134
      %s149 = sphi 0, %s135
      %s153 = sphi 0, %s153
      %s155 = sphi 0, %s153
      %s156 = sphi 0, %s155
      %s170 = sphi 0, %s156
      %s178 = sphi 0, %s180
      %s181 = sphi 0, %s178
      %s182 = sphi 0, %s181
      %s198 = sphi 0, %s182
    $region4: #{tpu_custom_call.1} parent=1 // loop_header_branch
      %24 = sbr.rel (%p22) target = $region8
    $region5: #{tpu_custom_call.1} parent=1 // loop_body
      %s26 = ssub.s32 %s21, 1
      %s27 = ssub.s32 %s21, 2
      %s37 = sadd.s32 1, %s30
      %p38 = scmp.ge.s32.totalorder %s37, 1
      %s39 = scalar_select %p38, 0, %s37
      %s40 = sadd.s32 1, %s29
      %s41 = scalar_select %p38, %s40, %s29
      %p42 = scmp.ge.s32.totalorder %s41, 1
      %s43 = scalar_select %p42, 0, %s41
      %s44 = sadd.s32 1, %s28
      %s45 = scalar_select %p42, %s44, %s28
      %p46 = scmp.ge.s32.totalorder %s45, 2
      %s47 = scalar_select %p46, 0, %s45
      %s48 = ssub.s32 %s28, %s47
      %s49 = ssub.s32 %s29, %s43
      %s50 = sor.u32 %s48, %s49
      %p51 = scmp.eq.s32.totalorder %s50, 0
      %s53 = sadd.s32 %s52, 1
      %s54 = scalar_select %p51, %s52, %s53
      %p57 = pneg %p51
      %p58 = scmp.eq.s32.totalorder %s21, 1
      %p59 = por %p57, %p58
      %p60 = scmp.ne.s32.totalorder %s52, %s55
      %p61 = scmp.eq.s32.totalorder %s21, 0
      %p62 = por %p60, %p61
      %p63 = scmp.ne.s32.totalorder %s52, %s55
      %p64 = scmp.eq.s32.totalorder %s26, 1
      %p65 = por %p63, %p64
      %p66 = scmp.ne.s32.totalorder %s55, %s56
      %p67 = scmp.eq.s32.totalorder %s26, 0
      %p68 = por %p66, %p67
      %p69 = scmp.ne.s32.totalorder %s55, %s56
      %p70 = scmp.eq.s32.totalorder %s27, 1
      %p71 = por %p69, %p70
      %p73 = scmp.ne.s32.totalorder %s56, %s72
      %p74 = scmp.eq.s32.totalorder %s27, 0
      %p75 = por %p73, %p74
      %s76 = ssub.s32 %s28, %s47
      %s77 = ssub.s32 %s30, %s39
      %s78 = sor.u32 %s76, %s77
      %p79 = scmp.eq.s32.totalorder %s78, 0
      %s81 = sadd.s32 %s80, 1
      %s82 = scalar_select %p79, %s80, %s81
      %p85 = pneg %p79
      %p86 = scmp.eq.s32.totalorder %s21, 1
      %p87 = por %p85, %p86
      %p88 = scmp.ne.s32.totalorder %s80, %s83
      %p89 = scmp.eq.s32.totalorder %s21, 0
      %p90 = por %p88, %p89
      %p91 = scmp.ne.s32.totalorder %s80, %s83
      %p92 = scmp.eq.s32.totalorder %s26, 1
      %p93 = por %p91, %p92
      %p94 = scmp.ne.s32.totalorder %s83, %s84
      %p95 = scmp.eq.s32.totalorder %s26, 0
      %p96 = por %p94, %p95
      %p97 = scmp.ne.s32.totalorder %s83, %s84
      %p98 = scmp.eq.s32.totalorder %s27, 1
      %p99 = por %p97, %p98
      %p101 = scmp.ne.s32.totalorder %s84, %s100
      %p102 = scmp.eq.s32.totalorder %s27, 0
      %p103 = por %p101, %p102
      %s104 = ssub.s32 %s28, %s47
      %s105 = ssub.s32 %s30, %s39
      %s106 = sor.u32 %s104, %s105
      %p107 = scmp.eq.s32.totalorder %s106, 0
      %s109 = sadd.s32 %s108, 1
      %s110 = scalar_select %p107, %s108, %s109
      %p113 = pneg %p107
      %p114 = scmp.eq.s32.totalorder %s21, 1
      %p115 = por %p113, %p114
      %p116 = scmp.ne.s32.totalorder %s108, %s111
      %p117 = scmp.eq.s32.totalorder %s21, 0
      %p118 = por %p116, %p117
      %p119 = scmp.ne.s32.totalorder %s108, %s111
      %p120 = scmp.eq.s32.totalorder %s26, 1
      %p121 = por %p119, %p120
      %p122 = scmp.ne.s32.totalorder %s111, %s112
      %p123 = scmp.eq.s32.totalorder %s26, 0
      %p124 = por %p122, %p123
      %p125 = scmp.ne.s32.totalorder %s111, %s112
      %p126 = scmp.eq.s32.totalorder %s27, 1
      %p127 = por %p125, %p126
      %p129 = scmp.ne.s32.totalorder %s112, %s128
      %p130 = scmp.eq.s32.totalorder %s27, 0
      %p131 = por %p129, %p130
      %s133 = sadd.s32 %s132, 1
      %p136 = scmp.eq.s32.totalorder %s21, 1
      %p137 = scmp.ne.s32.totalorder %s132, %s134
      %p138 = scmp.eq.s32.totalorder %s21, 0
      %p139 = por %p137, %p138
      %p140 = scmp.ne.s32.totalorder %s132, %s134
      %p141 = scmp.eq.s32.totalorder %s26, 1
      %p142 = por %p140, %p141
      %p143 = scmp.ne.s32.totalorder %s134, %s135
      %p144 = scmp.eq.s32.totalorder %s26, 0
      %p145 = por %p143, %p144
      %p146 = scmp.ne.s32.totalorder %s134, %s135
      %p147 = scmp.eq.s32.totalorder %s27, 1
      %p148 = por %p146, %p147
      %p150 = scmp.ne.s32.totalorder %s135, %s149
      %p151 = scmp.eq.s32.totalorder %s27, 0
      %p152 = por %p150, %p151
      %s154 = sadd.s32 %s153, 1
      %p157 = scmp.eq.s32.totalorder %s21, 1
      %p158 = scmp.ne.s32.totalorder %s153, %s155
      %p159 = scmp.eq.s32.totalorder %s21, 0
      %p160 = por %p158, %p159
      %p161 = scmp.ne.s32.totalorder %s153, %s155
      %p162 = scmp.eq.s32.totalorder %s26, 1
      %p163 = por %p161, %p162
      %p164 = scmp.ne.s32.totalorder %s155, %s156
      %p165 = scmp.eq.s32.totalorder %s26, 0
      %p166 = por %p164, %p165
      %p167 = scmp.ne.s32.totalorder %s155, %s156
      %p168 = scmp.eq.s32.totalorder %s27, 1
      %p169 = por %p167, %p168
      %p171 = scmp.ne.s32.totalorder %s156, %s170
      %p172 = scmp.eq.s32.totalorder %s27, 0
      %p173 = por %p171, %p172
      %s174 = ssub.s32 %s28, %s47
      %s175 = ssub.s32 %s29, %s43
      %s176 = sor.u32 %s174, %s175
      %p177 = scmp.eq.s32.totalorder %s176, 0
      %s179 = sadd.s32 %s178, 1
      %s180 = scalar_select %p177, %s178, %s179
      %p183 = pneg %p177
      %p184 = scmp.eq.s32.totalorder %s21, 1
      %p185 = por %p183, %p184
      %p186 = scmp.ne.s32.totalorder %s178, %s181
      %p187 = scmp.eq.s32.totalorder %s21, 0
      %p188 = por %p186, %p187
      %p189 = scmp.ne.s32.totalorder %s178, %s181
      %p190 = scmp.eq.s32.totalorder %s26, 1
      %p191 = por %p189, %p190
      %p192 = scmp.ne.s32.totalorder %s181, %s182
      %p193 = scmp.eq.s32.totalorder %s26, 0
      %p194 = por %p192, %p193
      %p195 = scmp.ne.s32.totalorder %s181, %s182
      %p196 = scmp.eq.s32.totalorder %s27, 1
      %p197 = por %p195, %p196
      %p199 = scmp.ne.s32.totalorder %s182, %s198
      %p200 = scmp.eq.s32.totalorder %s27, 0
      %p201 = por %p199, %p200
      %p202 = scmp.le.s32.totalorder 1, %s21
      %p203 = scmp.lt.s32.totalorder %s21, 3
      %p204 = pnand %p202, %p203
      %p205 = pneg %p204
      // Predicated region
      $region9: #{tpu_custom_call.1} parent=5 // pred_check
        _
      $region10: #{tpu_custom_call.1} parent=5 // pred_check_branch
        %207 = sbr.rel (%p204) target = $region12
      $region11: #{tpu_custom_call.1} parent=5 // pred_region
        %s208 = ssub.s32 %s21, 1
        // Predicated region
        $region13: #{tpu_custom_call.1} parent=11 // pred_check
          %p209 = pneg %p145
        $region14: #{tpu_custom_call.1} parent=11 // pred_check_branch
          %211 = sbr.rel (%p209) target = $region16
        $region15: #{tpu_custom_call.1} parent=11 // pred_region
          %s213 = ssub.s32 512, 512
          %214 = vsyncadd [#allocation12], %s213
          %s215 = sshll.u32 [#allocation11], 4
          %s216 = int_to_ptr.vmem [resolvable:$true] %s215
          %221 = dma.hbm_to_vmem [thread:$0]  %s3, 512, %s216, [#allocation12], 128, 128, 8
        $region16: #{tpu_custom_call.1} parent=11 // pred_fallthru
          _
        // Predicated region
        $region17: #{tpu_custom_call.1} parent=11 // pred_check
          %p222 = pneg %p166
        $region18: #{tpu_custom_call.1} parent=11 // pred_check_branch
          %224 = sbr.rel (%p222) target = $region20
        $region19: #{tpu_custom_call.1} parent=11 // pred_region
          _
        $region20: #{tpu_custom_call.1} parent=11 // pred_fallthru
          _
      $region12: #{tpu_custom_call.1} parent=5 // pred_fallthru
        _
      %p225 = scmp.lt.s32.totalorder %s21, 2
      // Predicated region
      $region21: #{tpu_custom_call.1} parent=5 // pred_check
        %p226 = pneg %p225
      $region22: #{tpu_custom_call.1} parent=5 // pred_check_branch
        %228 = sbr.rel (%p226) target = $region24
      $region23: #{tpu_custom_call.1} parent=5 // pred_region
        // Predicated region
        $region25: #{tpu_custom_call.1} parent=23 // pred_check
          %p229 = pneg %p62
        $region26: #{tpu_custom_call.1} parent=23 // pred_check_branch
          %231 = sbr.rel (%p229) target = $region28
        $region27: #{tpu_custom_call.1} parent=23 // pred_region
          %s232 = sand.u32 %s52, 1
          %s233 = scalar_lea.sflag [#allocation6], %s232
          %s234 = sand.u32 %s52, 1
          %s235 = smul.addr %s234, 8
          %s236 = scalar_lea.vmem [#allocation5], %s235
          %s238 = ssub.s32 128, 128
          %239 = vsyncadd %s233, %s238
          %s240 = sadd.s32 %s29, %s28
          %s241 = smul.addr %s240, 128
          %s242 = scalar_lea.hbm %s0, %s241
          %s244 = sshll.u32 %s236, 4
          %s245 = int_to_ptr.vmem [resolvable:$true] %s244
          %247 = dma.hbm_to_vmem [thread:$0]  %s242, 128, %s245, %s233
        $region28: #{tpu_custom_call.1} parent=23 // pred_fallthru
          _
        // Predicated region
        $region29: #{tpu_custom_call.1} parent=23 // pred_check
          %p248 = pneg %p90
        $region30: #{tpu_custom_call.1} parent=23 // pred_check_branch
          %250 = sbr.rel (%p248) target = $region32
        $region31: #{tpu_custom_call.1} parent=23 // pred_region
          %s251 = sand.u32 %s21, 1
          %s252 = scalar_lea.sflag [#allocation9], %s251
          %s253 = sand.u32 %s80, 1
          %s254 = smul.addr %s253, 8
          %s255 = scalar_lea.vmem [#allocation8], %s254
          %s257 = ssub.s32 128, 128
          %258 = vsyncadd %s252, %s257
          %s259 = sadd.s32 %s30, %s28
          %s260 = smul.addr %s259, 128
          %s261 = scalar_lea.hbm %s1, %s260
          %s263 = sshll.u32 %s255, 4
          %s264 = int_to_ptr.vmem [resolvable:$true] %s263
          %266 = dma.hbm_to_vmem [thread:$0]  %s261, 128, %s264, %s252
        $region32: #{tpu_custom_call.1} parent=23 // pred_fallthru
          _
        // Predicated region
        $region33: #{tpu_custom_call.1} parent=23 // pred_check
          %p267 = pneg %p118
        $region34: #{tpu_custom_call.1} parent=23 // pred_check_branch
          %269 = sbr.rel (%p267) target = $region36
        $region35: #{tpu_custom_call.1} parent=23 // pred_region
          %s270 = sand.u32 %s21, 1
          %s271 = scalar_lea.sflag [#allocation9], %s270
          %s272 = sand.u32 %s108, 1
          %s273 = smul.addr %s272, 8
          %s274 = scalar_lea.vmem [#allocation10], %s273
          %s276 = ssub.s32 128, 128
          %277 = vsyncadd %s271, %s276
          %s278 = sadd.s32 %s30, %s28
          %s279 = smul.addr %s278, 128
          %s280 = scalar_lea.hbm %s2, %s279
          %s282 = sshll.u32 %s274, 4
          %s283 = int_to_ptr.vmem [resolvable:$true] %s282
          %285 = dma.hbm_to_vmem [thread:$0]  %s280, 128, %s283, %s271
        $region36: #{tpu_custom_call.1} parent=23 // pred_fallthru
          _
      $region24: #{tpu_custom_call.1} parent=5 // pred_fallthru
        _
      %p286 = scmp.le.s32.totalorder 1, %s21
      %p287 = scmp.lt.s32.totalorder %s21, 3
      %p288 = pnand %p286, %p287
      %p289 = pneg %p288
      // Predicated region
      $region37: #{tpu_custom_call.1} parent=5 // pred_check
        _
      $region38: #{tpu_custom_call.1} parent=5 // pred_check_branch
        %291 = sbr.rel (%p288) target = $region40
      $region39: #{tpu_custom_call.1} parent=5 // pred_region
        %s292 = ssub.s32 %s21, 1
        %s293 = sand.u32 %s55, 1
        %s294 = scalar_lea.sflag [#allocation6], %s293
        %s295 = sand.u32 %s55, 1
        %s296 = smul.addr %s295, 8
        %s297 = scalar_lea.vmem [#allocation5], %s296
        // Predicated region
        $region41: #{tpu_custom_call.1} parent=39 // pred_check
          %p298 = pneg %p68
        $region42: #{tpu_custom_call.1} parent=39 // pred_check_branch
          %300 = sbr.rel (%p298) target = $region44
        $region43: #{tpu_custom_call.1} parent=39 // pred_region
          %301 = dma.done %s294, 128
        $region44: #{tpu_custom_call.1} parent=39 // pred_fallthru
          _
        %s302 = sand.u32 %s26, 1
        %s303 = scalar_lea.sflag [#allocation9], %s302
        %s304 = sand.u32 %s83, 1
        %s305 = smul.addr %s304, 8
        %s306 = scalar_lea.vmem [#allocation8], %s305
        // Predicated region
        $region45: #{tpu_custom_call.1} parent=39 // pred_check
          %p307 = pneg %p96
        $region46: #{tpu_custom_call.1} parent=39 // pred_check_branch
          %309 = sbr.rel (%p307) target = $region48
        $region47: #{tpu_custom_call.1} parent=39 // pred_region
          %310 = dma.done %s303, 128
        $region48: #{tpu_custom_call.1} parent=39 // pred_fallthru
          _
        %s311 = sand.u32 %s26, 1
        %s312 = scalar_lea.sflag [#allocation9], %s311
        %s313 = sand.u32 %s111, 1
        %s314 = smul.addr %s313, 8
        %s315 = scalar_lea.vmem [#allocation10], %s314
        // Predicated region
        $region49: #{tpu_custom_call.1} parent=39 // pred_check
          %p316 = pneg %p124
        $region50: #{tpu_custom_call.1} parent=39 // pred_check_branch
          %318 = sbr.rel (%p316) target = $region52
        $region51: #{tpu_custom_call.1} parent=39 // pred_region
          %319 = dma.done %s312, 128
        $region52: #{tpu_custom_call.1} parent=39 // pred_fallthru
          _
        // Predicated region
        $region53: #{tpu_custom_call.1} parent=39 // pred_check
          %p320 = pneg %p145
        $region54: #{tpu_custom_call.1} parent=39 // pred_check_branch
          %322 = sbr.rel (%p320) target = $region56
        $region55: #{tpu_custom_call.1} parent=39 // pred_region
          %323 = dma.done [#allocation12], 512
        $region56: #{tpu_custom_call.1} parent=39 // pred_fallthru
          _
        %s324 = sand.u32 %s55, 1
        %s325 = scalar_lea.sflag [#allocation6], %s324
        %s326 = sand.u32 %s55, 1
        %s327 = smul.addr %s326, 8
        %s328 = scalar_lea.vmem [#allocation5], %s327
        %p329 = pneg %p68
        %p330 = pneg %p65
        %s331 = sand.u32 %s26, 1
        %s332 = scalar_lea.sflag [#allocation9], %s331
        %s333 = sand.u32 %s83, 1
        %s334 = smul.addr %s333, 8
        %s335 = scalar_lea.vmem [#allocation8], %s334
        %p336 = pneg %p96
        %p337 = pneg %p93
        %s338 = sand.u32 %s26, 1
        %s339 = scalar_lea.sflag [#allocation9], %s338
        %s340 = sand.u32 %s111, 1
        %s341 = smul.addr %s340, 8
        %s342 = scalar_lea.vmem [#allocation10], %s341
        %p343 = pneg %p124
        %p344 = pneg %p121
        %p345 = pneg %p145
        %p346 = pneg %p142
        %p347 = pneg %p166
        %p348 = pneg %p163
        %p349 = pneg %p194
        %p350 = pneg %p191
        %s351 = sand.u32 %s181, 1
        %s352 = scalar_lea.sflag [#allocation7], %s351
        %s353 = sand.u32 %s181, 1
        %s354 = smul.addr %s353, 8
        %s355 = scalar_lea.vmem [#allocation13], %s354
        %p356 = scmp.eq.s32.totalorder %s33, 0
        // Predicated region
        $region57: #{tpu_custom_call.1} parent=39 // pred_check
          %p357 = pneg %p356
        $region58: #{tpu_custom_call.1} parent=39 // pred_check_branch
          %359 = sbr.rel (%p357) target = $region60
        $region59: #{tpu_custom_call.1} parent=39 // pred_region
          %vm360 = vcmask 31744
          %361 = vst.msk [vmem:[#allocation2] sm:$0xff] %vm360, -inf
          %362 = vst.msk [vmem:[#allocation3] sm:$0xff] %vm360, 0.0
          %vm363 = vcmask 261120
          %364 = vst.msk [vmem:[#allocation4] sm:$0xff] %vm363, 0.0
        $region60: #{tpu_custom_call.1} parent=39 // pred_fallthru
          _
        %v365 = vld [vmem:[%s297] sm:$0xff]
        %v366 = vmul.f32 %v365, 0.35355338
        %v367 = vld [vmem:[%s306] sm:$0xff]
        %v368 = vld [vmem:[%s315] sm:$0xff]
        %vm369 = vcmask 64512
        %v371 = vsel %vm369, %v366, 0
        %v374 = vsel %vm369, %v367, 0
        %376 = vmatprep.subr.mxu0 0.0
        %377 = vmatpush1.xpose.msra.mxu0 %v374
        %378 = vmatprep.subr.mxu0 0.0
        %379 = vmatpush1.xpose.msra.mxu0 0.0
        %380 = vmatprep.subr.mxu0 0.0
        %381 = vmatpush1.xpose.msra.mxu0 0.0
        %382 = vmatprep.subr.mxu0 0.0
        %383 = vmatpush1.xpose.msra.mxu0 0.0
        %384 = vmatprep.subr.mxu0 0.0
        %385 = vmatpush1.xpose.msra.mxu0 0.0
        %386 = vmatprep.subr.mxu0 0.0
        %387 = vmatpush1.xpose.msra.mxu0 0.0
        %388 = vmatprep.subr.mxu0 0.0
        %389 = vmatpush1.xpose.msra.mxu0 0.0
        %390 = vmatprep.subr.mxu0 0.0
        %391 = vmatpush1.xpose.msra.mxu0 0.0
        %392 = vmatprep.subr.mxu0 0.0
        %393 = vmatpush1.xpose.msra.mxu0 0.0
        %394 = vmatprep.subr.mxu0 0.0
        %395 = vmatpush1.xpose.msra.mxu0 0.0
        %396 = vmatprep.subr.mxu0 0.0
        %397 = vmatpush1.xpose.msra.mxu0 0.0
        %398 = vmatprep.subr.mxu0 0.0
        %399 = vmatpush1.xpose.msra.mxu0 0.0
        %400 = vmatprep.subr.mxu0 0.0
        %401 = vmatpush1.xpose.msra.mxu0 0.0
        %402 = vmatprep.subr.mxu0 0.0
        %403 = vmatpush1.xpose.msra.mxu0 0.0
        %404 = vmatprep.subr.mxu0 0.0
        %405 = vmatpush1.xpose.msra.mxu0 0.0
        %406 = vmatprep.subr.mxu0 0.0
        %407 = vmatpush1.xpose.msra.mxu0 0.0
        %408 = vmatprep.subr.mxu0 0.0
        %409 = vmatpush1.xpose.msra.mxu0 0.0
        %410 = vmatprep.subr.mxu0 0.0
        %411 = vmatpush1.xpose.msra.mxu0 0.0
        %412 = vmatprep.subr.mxu0 0.0
        %413 = vmatpush1.xpose.msra.mxu0 0.0
        %414 = vmatprep.subr.mxu0 0.0
        %415 = vmatpush1.xpose.msra.mxu0 0.0
        %416 = vmatprep.subr.mxu0 0.0
        %417 = vmatpush1.xpose.msra.mxu0 0.0
        %418 = vmatprep.subr.mxu0 0.0
        %419 = vmatpush1.xpose.msra.mxu0 0.0
        %420 = vmatprep.subr.mxu0 0.0
        %421 = vmatpush1.xpose.msra.mxu0 0.0
        %422 = vmatprep.subr.mxu0 0.0
        %423 = vmatpush1.xpose.msra.mxu0 0.0
        %424 = vmatprep.subr.mxu0 0.0
        %425 = vmatpush1.xpose.msra.mxu0 0.0
        %426 = vmatprep.subr.mxu0 0.0
        %427 = vmatpush1.xpose.msra.mxu0 0.0
        %428 = vmatprep.subr.mxu0 0.0
        %429 = vmatpush1.xpose.msra.mxu0 0.0
        %430 = vmatprep.subr.mxu0 0.0
        %431 = vmatpush1.xpose.msra.mxu0 0.0
        %432 = vmatprep.subr.mxu0 0.0
        %433 = vmatpush1.xpose.msra.mxu0 0.0
        %434 = vmatprep.subr.mxu0 0.0
        %435 = vmatpush1.xpose.msra.mxu0 0.0
        %436 = vmatprep.subr.mxu0 0.0
        %437 = vmatpush1.xpose.msra.mxu0 0.0
        %438 = vmatprep.subr.mxu0 0.0
        %439 = vmatpush1.xpose.msra.mxu0 0.0
        %440 = vmatprep.mubr.f32.mxu0 0.0
        %441 = vmatmul.mubr.f32.gmra.mrb[0].mxu0 %v371
        %v442 = vpop.f32.mrb[0].mxu0
        %v443 = vadd.f32 0.0, %v442
        %v444 = vpop.f32.mrb[0].mxu0
        %445 = vdwg.mxu0
        %v446 = vld [vmem:[#allocation2] sm:$0xff]
        %v447 = vld [vmem:[#allocation3] sm:$0xff]
        %v448 = vsel %vm369, %v443, -inf
        %449 = vmax.xlane.f32.xlu0 %v448
        %v450 = vpop.xlane.xlu0 %449
        %v451 = vmax.f32 %v446, %v450
        %v452 = vsub.f32 %v446, %v451
        %v453 = vmul.f32 %v452, 1.442695
        %v454 = vpow.pop %v453
        %456 = vset.pattern.permute.xlu0 0
        %457 = vperm.xlu0 %456, %v451
        %v458 = vpop.permute.xlu0 %457
        %v460 = vsub.f32 %v443, %v458
        %v461 = vmul.f32 %v460, 1.442695
        %v462 = vpow.pop %v461
        %v463 = vmul.f32 %v454, %v447
        %v464 = vsel %vm369, %v462, 0.0
        %465 = vadd.xlane.f32.xlu0 %v464
        %v466 = vpop.xlane.xlu0 %465
        %v467 = vadd.f32 %v463, %v466
        %vm468 = vcmask 7168
        %469 = vst.msk [vmem:[#allocation3] sm:$0xff] %vm468, %v467
        %470 = vst.msk [vmem:[#allocation2] sm:$0xff] %vm468, %v451
        %v472 = vsel %vm369, %v462, 0
        %474 = vmatprep.subr.mxu0 0.0
        %475 = vmatpush1.msra.mxu0 %v368
        %476 = vmatprep.subr.mxu0 0.0
        %477 = vmatpush1.msra.mxu0 0.0
        %478 = vmatprep.subr.mxu0 0.0
        %479 = vmatpush1.msra.mxu0 0.0
        %480 = vmatprep.subr.mxu0 0.0
        %481 = vmatpush1.msra.mxu0 0.0
        %482 = vmatprep.subr.mxu0 0.0
        %483 = vmatpush1.msra.mxu0 0.0
        %484 = vmatprep.subr.mxu0 0.0
        %485 = vmatpush1.msra.mxu0 0.0
        %486 = vmatprep.subr.mxu0 0.0
        %487 = vmatpush1.msra.mxu0 0.0
        %488 = vmatprep.subr.mxu0 0.0
        %489 = vmatpush1.msra.mxu0 0.0
        %490 = vmatprep.subr.mxu0 0.0
        %491 = vmatpush1.msra.mxu0 0.0
        %492 = vmatprep.subr.mxu0 0.0
        %493 = vmatpush1.msra.mxu0 0.0
        %494 = vmatprep.subr.mxu0 0.0
        %495 = vmatpush1.msra.mxu0 0.0
        %496 = vmatprep.subr.mxu0 0.0
        %497 = vmatpush1.msra.mxu0 0.0
        %498 = vmatprep.subr.mxu0 0.0
        %499 = vmatpush1.msra.mxu0 0.0
        %500 = vmatprep.subr.mxu0 0.0
        %501 = vmatpush1.msra.mxu0 0.0
        %502 = vmatprep.subr.mxu0 0.0
        %503 = vmatpush1.msra.mxu0 0.0
        %504 = vmatprep.subr.mxu0 0.0
        %505 = vmatpush1.msra.mxu0 0.0
        %506 = vmatprep.subr.mxu0 0.0
        %507 = vmatpush1.msra.mxu0 0.0
        %508 = vmatprep.subr.mxu0 0.0
        %509 = vmatpush1.msra.mxu0 0.0
        %510 = vmatprep.subr.mxu0 0.0
        %511 = vmatpush1.msra.mxu0 0.0
        %512 = vmatprep.subr.mxu0 0.0
        %513 = vmatpush1.msra.mxu0 0.0
        %514 = vmatprep.subr.mxu0 0.0
        %515 = vmatpush1.msra.mxu0 0.0
        %516 = vmatprep.subr.mxu0 0.0
        %517 = vmatpush1.msra.mxu0 0.0
        %518 = vmatprep.subr.mxu0 0.0
        %519 = vmatpush1.msra.mxu0 0.0
        %520 = vmatprep.subr.mxu0 0.0
        %521 = vmatpush1.msra.mxu0 0.0
        %522 = vmatprep.subr.mxu0 0.0
        %523 = vmatpush1.msra.mxu0 0.0
        %524 = vmatprep.subr.mxu0 0.0
        %525 = vmatpush1.msra.mxu0 0.0
        %526 = vmatprep.subr.mxu0 0.0
        %527 = vmatpush1.msra.mxu0 0.0
        %528 = vmatprep.subr.mxu0 0.0
        %529 = vmatpush1.msra.mxu0 0.0
        %530 = vmatprep.subr.mxu0 0.0
        %531 = vmatpush1.msra.mxu0 0.0
        %532 = vmatprep.subr.mxu0 0.0
        %533 = vmatpush1.msra.mxu0 0.0
        %534 = vmatprep.subr.mxu0 0.0
        %535 = vmatpush1.msra.mxu0 0.0
        %536 = vmatprep.subr.mxu0 0.0
        %537 = vmatpush1.msra.mxu0 0.0
        %538 = vmatprep.mubr.f32.mxu0 0.0
        %539 = vmatmul.mubr.f32.gmra.mrb[0].mxu0 %v472
        %v540 = vpop.f32.mrb[0].mxu0
        %v541 = vadd.f32 0.0, %v540
        %v542 = vpop.f32.mrb[0].mxu0
        %543 = vdwg.mxu0
        %v544 = vld [vmem:[#allocation4] sm:$0xff]
        %546 = vset.pattern.permute.xlu0 0
        %547 = vperm.xlu0 %546, %v454
        %v548 = vpop.permute.xlu0 %547
        %v550 = vmul.f32 %v548, %v544
        %v551 = vadd.f32 %v550, %v541
        %552 = vst.msk [vmem:[#allocation4] sm:$0xff] %vm369, %v551
        %553 = vrot.lane.b32.xlu0 %v366, 120
        %v554 = vpop.permute.xlu0 %553
        %555 = vrot.lane.b32.xlu0 %v367, 120
        %v556 = vpop.permute.xlu0 %555
        %v557 = vsel %vm369, %v554, 0
        %v559 = vsel %vm369, %v556, 0
        %561 = vmatprep.subr.mxu0 0.0
        %562 = vmatpush1.xpose.msra.mxu0 %v559
        %563 = vmatprep.subr.mxu0 0.0
        %564 = vmatpush1.xpose.msra.mxu0 0.0
        %565 = vmatprep.subr.mxu0 0.0
        %566 = vmatpush1.xpose.msra.mxu0 0.0
        %567 = vmatprep.subr.mxu0 0.0
        %568 = vmatpush1.xpose.msra.mxu0 0.0
        %569 = vmatprep.subr.mxu0 0.0
        %570 = vmatpush1.xpose.msra.mxu0 0.0
        %571 = vmatprep.subr.mxu0 0.0
        %572 = vmatpush1.xpose.msra.mxu0 0.0
        %573 = vmatprep.subr.mxu0 0.0
        %574 = vmatpush1.xpose.msra.mxu0 0.0
        %575 = vmatprep.subr.mxu0 0.0
        %576 = vmatpush1.xpose.msra.mxu0 0.0
        %577 = vmatprep.subr.mxu0 0.0
        %578 = vmatpush1.xpose.msra.mxu0 0.0
        %579 = vmatprep.subr.mxu0 0.0
        %580 = vmatpush1.xpose.msra.mxu0 0.0
        %581 = vmatprep.subr.mxu0 0.0
        %582 = vmatpush1.xpose.msra.mxu0 0.0
        %583 = vmatprep.subr.mxu0 0.0
        %584 = vmatpush1.xpose.msra.mxu0 0.0
        %585 = vmatprep.subr.mxu0 0.0
        %586 = vmatpush1.xpose.msra.mxu0 0.0
        %587 = vmatprep.subr.mxu0 0.0
        %588 = vmatpush1.xpose.msra.mxu0 0.0
        %589 = vmatprep.subr.mxu0 0.0
        %590 = vmatpush1.xpose.msra.mxu0 0.0
        %591 = vmatprep.subr.mxu0 0.0
        %592 = vmatpush1.xpose.msra.mxu0 0.0
        %593 = vmatprep.subr.mxu0 0.0
        %594 = vmatpush1.xpose.msra.mxu0 0.0
        %595 = vmatprep.subr.mxu0 0.0
        %596 = vmatpush1.xpose.msra.mxu0 0.0
        %597 = vmatprep.subr.mxu0 0.0
        %598 = vmatpush1.xpose.msra.mxu0 0.0
        %599 = vmatprep.subr.mxu0 0.0
        %600 = vmatpush1.xpose.msra.mxu0 0.0
        %601 = vmatprep.subr.mxu0 0.0
        %602 = vmatpush1.xpose.msra.mxu0 0.0
        %603 = vmatprep.subr.mxu0 0.0
        %604 = vmatpush1.xpose.msra.mxu0 0.0
        %605 = vmatprep.subr.mxu0 0.0
        %606 = vmatpush1.xpose.msra.mxu0 0.0
        %607 = vmatprep.subr.mxu0 0.0
        %608 = vmatpush1.xpose.msra.mxu0 0.0
        %609 = vmatprep.subr.mxu0 0.0
        %610 = vmatpush1.xpose.msra.mxu0 0.0
        %611 = vmatprep.subr.mxu0 0.0
        %612 = vmatpush1.xpose.msra.mxu0 0.0
        %613 = vmatprep.subr.mxu0 0.0
        %614 = vmatpush1.xpose.msra.mxu0 0.0
        %615 = vmatprep.subr.mxu0 0.0
        %616 = vmatpush1.xpose.msra.mxu0 0.0
        %617 = vmatprep.subr.mxu0 0.0
        %618 = vmatpush1.xpose.msra.mxu0 0.0
        %619 = vmatprep.subr.mxu0 0.0
        %620 = vmatpush1.xpose.msra.mxu0 0.0
        %621 = vmatprep.subr.mxu0 0.0
        %622 = vmatpush1.xpose.msra.mxu0 0.0
        %623 = vmatprep.subr.mxu0 0.0
        %624 = vmatpush1.xpose.msra.mxu0 0.0
        %625 = vmatprep.mubr.f32.mxu0 0.0
        %626 = vmatmul.mubr.f32.gmra.mrb[0].mxu0 %v557
        %v627 = vpop.f32.mrb[0].mxu0
        %v628 = vadd.f32 0.0, %v627
        %v629 = vpop.f32.mrb[0].mxu0
        %630 = vdwg.mxu0
        %v631 = vld [vmem:[#allocation2] sm:$0xff]
        %v632 = vld [vmem:[#allocation3] sm:$0xff]
        %v633 = vsel %vm369, %v628, -inf
        %634 = vmax.xlane.f32.xlu0 %v633
        %v635 = vpop.xlane.xlu0 %634
        %v636 = vmax.f32 %v631, %v635
        %v637 = vsub.f32 %v631, %v636
        %v638 = vmul.f32 %v637, 1.442695
        %v639 = vpow.pop %v638
        %641 = vset.pattern.permute.xlu0 1
        %642 = vperm.xlu0 %641, %v636
        %v643 = vpop.permute.xlu0 %642
        %v645 = vsub.f32 %v628, %v643
        %v646 = vmul.f32 %v645, 1.442695
        %v647 = vpow.pop %v646
        %v648 = vmul.f32 %v639, %v632
        %v649 = vsel %vm369, %v647, 0.0
        %650 = vadd.xlane.f32.xlu0 %v649
        %v651 = vpop.xlane.xlu0 %650
        %v652 = vadd.f32 %v648, %v651
        %vm653 = vcmask 15368
        %654 = vst.msk [vmem:[#allocation3] sm:$0xff] %vm653, %v652
        %655 = vst.msk [vmem:[#allocation2] sm:$0xff] %vm653, %v636
        %657 = vrot.lane.b32.xlu0 %v368, 120
        %v658 = vpop.permute.xlu0 %657
        %v661 = vsel %vm369, %v647, 0
        %663 = vmatprep.subr.mxu0 0.0
        %664 = vmatpush1.msra.mxu0 %v658
        %665 = vmatprep.subr.mxu0 0.0
        %666 = vmatpush1.msra.mxu0 0.0
        %667 = vmatprep.subr.mxu0 0.0
        %668 = vmatpush1.msra.mxu0 0.0
        %669 = vmatprep.subr.mxu0 0.0
        %670 = vmatpush1.msra.mxu0 0.0
        %671 = vmatprep.subr.mxu0 0.0
        %672 = vmatpush1.msra.mxu0 0.0
        %673 = vmatprep.subr.mxu0 0.0
        %674 = vmatpush1.msra.mxu0 0.0
        %675 = vmatprep.subr.mxu0 0.0
        %676 = vmatpush1.msra.mxu0 0.0
        %677 = vmatprep.subr.mxu0 0.0
        %678 = vmatpush1.msra.mxu0 0.0
        %679 = vmatprep.subr.mxu0 0.0
        %680 = vmatpush1.msra.mxu0 0.0
        %681 = vmatprep.subr.mxu0 0.0
        %682 = vmatpush1.msra.mxu0 0.0
        %683 = vmatprep.subr.mxu0 0.0
        %684 = vmatpush1.msra.mxu0 0.0
        %685 = vmatprep.subr.mxu0 0.0
        %686 = vmatpush1.msra.mxu0 0.0
        %687 = vmatprep.subr.mxu0 0.0
        %688 = vmatpush1.msra.mxu0 0.0
        %689 = vmatprep.subr.mxu0 0.0
        %690 = vmatpush1.msra.mxu0 0.0
        %691 = vmatprep.subr.mxu0 0.0
        %692 = vmatpush1.msra.mxu0 0.0
        %693 = vmatprep.subr.mxu0 0.0
        %694 = vmatpush1.msra.mxu0 0.0
        %695 = vmatprep.subr.mxu0 0.0
        %696 = vmatpush1.msra.mxu0 0.0
        %697 = vmatprep.subr.mxu0 0.0
        %698 = vmatpush1.msra.mxu0 0.0
        %699 = vmatprep.subr.mxu0 0.0
        %700 = vmatpush1.msra.mxu0 0.0
        %701 = vmatprep.subr.mxu0 0.0
        %702 = vmatpush1.msra.mxu0 0.0
        %703 = vmatprep.subr.mxu0 0.0
        %704 = vmatpush1.msra.mxu0 0.0
        %705 = vmatprep.subr.mxu0 0.0
        %706 = vmatpush1.msra.mxu0 0.0
        %707 = vmatprep.subr.mxu0 0.0
        %708 = vmatpush1.msra.mxu0 0.0
        %709 = vmatprep.subr.mxu0 0.0
        %710 = vmatpush1.msra.mxu0 0.0
        %711 = vmatprep.subr.mxu0 0.0
        %712 = vmatpush1.msra.mxu0 0.0
        %713 = vmatprep.subr.mxu0 0.0
        %714 = vmatpush1.msra.mxu0 0.0
        %715 = vmatprep.subr.mxu0 0.0
        %716 = vmatpush1.msra.mxu0 0.0
        %717 = vmatprep.subr.mxu0 0.0
        %718 = vmatpush1.msra.mxu0 0.0
        %719 = vmatprep.subr.mxu0 0.0
        %720 = vmatpush1.msra.mxu0 0.0
        %721 = vmatprep.subr.mxu0 0.0
        %722 = vmatpush1.msra.mxu0 0.0
        %723 = vmatprep.subr.mxu0 0.0
        %724 = vmatpush1.msra.mxu0 0.0
        %725 = vmatprep.subr.mxu0 0.0
        %726 = vmatpush1.msra.mxu0 0.0
        %727 = vmatprep.mubr.f32.mxu0 0.0
        %728 = vmatmul.mubr.f32.gmra.mrb[0].mxu0 %v661
        %v729 = vpop.f32.mrb[0].mxu0
        %v730 = vadd.f32 0.0, %v729
        %v731 = vpop.f32.mrb[0].mxu0
        %732 = vdwg.mxu0
        %v733 = vld [vmem:[#allocation4] sm:$0xff]
        %735 = vset.pattern.permute.xlu0 1
        %736 = vperm.xlu0 %735, %v639
        %v737 = vpop.permute.xlu0 %736
        %v739 = vmul.f32 %v737, %v733
        %741 = vrot.lane.b32.xlu0 %v730, 8
        %v742 = vpop.permute.xlu0 %741
        %v744 = vadd.f32 %v739, %v742
        %vm745 = vcmask 130112
        %746 = vst.msk [vmem:[#allocation4] sm:$0xff] %vm745, %v744
        %747 = vrot.lane.b32.xlu0 %v366, 112
        %v748 = vpop.permute.xlu0 %747
        %749 = vrot.lane.b32.xlu0 %v367, 112
        %v750 = vpop.permute.xlu0 %749
        %v751 = vsel %vm369, %v748, 0
        %v753 = vsel %vm369, %v750, 0
        %755 = vmatprep.subr.mxu0 0.0
        %756 = vmatpush1.xpose.msra.mxu0 %v753
        %757 = vmatprep.subr.mxu0 0.0
        %758 = vmatpush1.xpose.msra.mxu0 0.0
        %759 = vmatprep.subr.mxu0 0.0
        %760 = vmatpush1.xpose.msra.mxu0 0.0
        %761 = vmatprep.subr.mxu0 0.0
        %762 = vmatpush1.xpose.msra.mxu0 0.0
        %763 = vmatprep.subr.mxu0 0.0
        %764 = vmatpush1.xpose.msra.mxu0 0.0
        %765 = vmatprep.subr.mxu0 0.0
        %766 = vmatpush1.xpose.msra.mxu0 0.0
        %767 = vmatprep.subr.mxu0 0.0
        %768 = vmatpush1.xpose.msra.mxu0 0.0
        %769 = vmatprep.subr.mxu0 0.0
        %770 = vmatpush1.xpose.msra.mxu0 0.0
        %771 = vmatprep.subr.mxu0 0.0
        %772 = vmatpush1.xpose.msra.mxu0 0.0
        %773 = vmatprep.subr.mxu0 0.0
        %774 = vmatpush1.xpose.msra.mxu0 0.0
        %775 = vmatprep.subr.mxu0 0.0
        %776 = vmatpush1.xpose.msra.mxu0 0.0
        %777 = vmatprep.subr.mxu0 0.0
        %778 = vmatpush1.xpose.msra.mxu0 0.0
        %779 = vmatprep.subr.mxu0 0.0
        %780 = vmatpush1.xpose.msra.mxu0 0.0
        %781 = vmatprep.subr.mxu0 0.0
        %782 = vmatpush1.xpose.msra.mxu0 0.0
        %783 = vmatprep.subr.mxu0 0.0
        %784 = vmatpush1.xpose.msra.mxu0 0.0
        %785 = vmatprep.subr.mxu0 0.0
        %786 = vmatpush1.xpose.msra.mxu0 0.0
        %787 = vmatprep.subr.mxu0 0.0
        %788 = vmatpush1.xpose.msra.mxu0 0.0
        %789 = vmatprep.subr.mxu0 0.0
        %790 = vmatpush1.xpose.msra.mxu0 0.0
        %791 = vmatprep.subr.mxu0 0.0
        %792 = vmatpush1.xpose.msra.mxu0 0.0
        %793 = vmatprep.subr.mxu0 0.0
        %794 = vmatpush1.xpose.msra.mxu0 0.0
        %795 = vmatprep.subr.mxu0 0.0
        %796 = vmatpush1.xpose.msra.mxu0 0.0
        %797 = vmatprep.subr.mxu0 0.0
        %798 = vmatpush1.xpose.msra.mxu0 0.0
        %799 = vmatprep.subr.mxu0 0.0
        %800 = vmatpush1.xpose.msra.mxu0 0.0
        %801 = vmatprep.subr.mxu0 0.0
        %802 = vmatpush1.xpose.msra.mxu0 0.0
        %803 = vmatprep.subr.mxu0 0.0
        %804 = vmatpush1.xpose.msra.mxu0 0.0
        %805 = vmatprep.subr.mxu0 0.0
        %806 = vmatpush1.xpose.msra.mxu0 0.0
        %807 = vmatprep.subr.mxu0 0.0
        %808 = vmatpush1.xpose.msra.mxu0 0.0
        %809 = vmatprep.subr.mxu0 0.0
        %810 = vmatpush1.xpose.msra.mxu0 0.0
        %811 = vmatprep.subr.mxu0 0.0
        %812 = vmatpush1.xpose.msra.mxu0 0.0
        %813 = vmatprep.subr.mxu0 0.0
        %814 = vmatpush1.xpose.msra.mxu0 0.0
        %815 = vmatprep.subr.mxu0 0.0
        %816 = vmatpush1.xpose.msra.mxu0 0.0
        %817 = vmatprep.subr.mxu0 0.0
        %818 = vmatpush1.xpose.msra.mxu0 0.0
        %819 = vmatprep.mubr.f32.mxu0 0.0
        %820 = vmatmul.mubr.f32.gmra.mrb[0].mxu0 %v751
        %v821 = vpop.f32.mrb[0].mxu0
        %v822 = vadd.f32 0.0, %v821
        %v823 = vpop.f32.mrb[0].mxu0
        %824 = vdwg.mxu0
        %v825 = vld [vmem:[#allocation2] sm:$0xff]
        %v826 = vld [vmem:[#allocation3] sm:$0xff]
        %v827 = vsel %vm369, %v822, -inf
        %828 = vmax.xlane.f32.xlu0 %v827
        %v829 = vpop.xlane.xlu0 %828
        %v830 = vmax.f32 %v825, %v829
        %v831 = vsub.f32 %v825, %v830
        %v832 = vmul.f32 %v831, 1.442695
        %v833 = vpow.pop %v832
        %835 = vset.pattern.permute.xlu0 2
        %836 = vperm.xlu0 %835, %v830
        %v837 = vpop.permute.xlu0 %836
        %v839 = vsub.f32 %v822, %v837
        %v840 = vmul.f32 %v839, 1.442695
        %v841 = vpow.pop %v840
        %v842 = vmul.f32 %v833, %v826
        %v843 = vsel %vm369, %v841, 0.0
        %844 = vadd.xlane.f32.xlu0 %v843
        %v845 = vpop.xlane.xlu0 %844
        %v846 = vadd.f32 %v842, %v845
        %vm847 = vcmask 23568
        %848 = vst.msk [vmem:[#allocation3] sm:$0xff] %vm847, %v846
        %849 = vst.msk [vmem:[#allocation2] sm:$0xff] %vm847, %v830
        %850 = vrot.lane.b32.xlu0 %v368, 112
        %v851 = vpop.permute.xlu0 %850
        %v854 = vsel %vm369, %v841, 0
        %856 = vmatprep.subr.mxu0 0.0
        %857 = vmatpush1.msra.mxu0 %v851
        %858 = vmatprep.subr.mxu0 0.0
        %859 = vmatpush1.msra.mxu0 0.0
        %860 = vmatprep.subr.mxu0 0.0
        %861 = vmatpush1.msra.mxu0 0.0
        %862 = vmatprep.subr.mxu0 0.0
        %863 = vmatpush1.msra.mxu0 0.0
        %864 = vmatprep.subr.mxu0 0.0
        %865 = vmatpush1.msra.mxu0 0.0
        %866 = vmatprep.subr.mxu0 0.0
        %867 = vmatpush1.msra.mxu0 0.0
        %868 = vmatprep.subr.mxu0 0.0
        %869 = vmatpush1.msra.mxu0 0.0
        %870 = vmatprep.subr.mxu0 0.0
        %871 = vmatpush1.msra.mxu0 0.0
        %872 = vmatprep.subr.mxu0 0.0
        %873 = vmatpush1.msra.mxu0 0.0
        %874 = vmatprep.subr.mxu0 0.0
        %875 = vmatpush1.msra.mxu0 0.0
        %876 = vmatprep.subr.mxu0 0.0
        %877 = vmatpush1.msra.mxu0 0.0
        %878 = vmatprep.subr.mxu0 0.0
        %879 = vmatpush1.msra.mxu0 0.0
        %880 = vmatprep.subr.mxu0 0.0
        %881 = vmatpush1.msra.mxu0 0.0
        %882 = vmatprep.subr.mxu0 0.0
        %883 = vmatpush1.msra.mxu0 0.0
        %884 = vmatprep.subr.mxu0 0.0
        %885 = vmatpush1.msra.mxu0 0.0
        %886 = vmatprep.subr.mxu0 0.0
        %887 = vmatpush1.msra.mxu0 0.0
        %888 = vmatprep.subr.mxu0 0.0
        %889 = vmatpush1.msra.mxu0 0.0
        %890 = vmatprep.subr.mxu0 0.0
        %891 = vmatpush1.msra.mxu0 0.0
        %892 = vmatprep.subr.mxu0 0.0
        %893 = vmatpush1.msra.mxu0 0.0
        %894 = vmatprep.subr.mxu0 0.0
        %895 = vmatpush1.msra.mxu0 0.0
        %896 = vmatprep.subr.mxu0 0.0
        %897 = vmatpush1.msra.mxu0 0.0
        %898 = vmatprep.subr.mxu0 0.0
        %899 = vmatpush1.msra.mxu0 0.0
        %900 = vmatprep.subr.mxu0 0.0
        %901 = vmatpush1.msra.mxu0 0.0
        %902 = vmatprep.subr.mxu0 0.0
        %903 = vmatpush1.msra.mxu0 0.0
        %904 = vmatprep.subr.mxu0 0.0
        %905 = vmatpush1.msra.mxu0 0.0
        %906 = vmatprep.subr.mxu0 0.0
        %907 = vmatpush1.msra.mxu0 0.0
        %908 = vmatprep.subr.mxu0 0.0
        %909 = vmatpush1.msra.mxu0 0.0
        %910 = vmatprep.subr.mxu0 0.0
        %911 = vmatpush1.msra.mxu0 0.0
        %912 = vmatprep.subr.mxu0 0.0
        %913 = vmatpush1.msra.mxu0 0.0
        %914 = vmatprep.subr.mxu0 0.0
        %915 = vmatpush1.msra.mxu0 0.0
        %916 = vmatprep.subr.mxu0 0.0
        %917 = vmatpush1.msra.mxu0 0.0
        %918 = vmatprep.subr.mxu0 0.0
        %919 = vmatpush1.msra.mxu0 0.0
        %920 = vmatprep.mubr.f32.mxu0 0.0
        %921 = vmatmul.mubr.f32.gmra.mrb[0].mxu0 %v854
        %v922 = vpop.f32.mrb[0].mxu0
        %v923 = vadd.f32 0.0, %v922
        %v924 = vpop.f32.mrb[0].mxu0
        %925 = vdwg.mxu0
        %v926 = vld [vmem:[#allocation4] sm:$0xff]
        %928 = vset.pattern.permute.xlu0 2
        %929 = vperm.xlu0 %928, %v833
        %v930 = vpop.permute.xlu0 %929
        %v932 = vmul.f32 %v930, %v926
        %934 = vrot.lane.b32.xlu0 %v923, 16
        %v935 = vpop.permute.xlu0 %934
        %v937 = vadd.f32 %v932, %v935
        %vm938 = vcmask 195712
        %939 = vst.msk [vmem:[#allocation4] sm:$0xff] %vm938, %v937
        %940 = vrot.lane.b32.xlu0 %v366, 104
        %v941 = vpop.permute.xlu0 %940
        %942 = vrot.lane.b32.xlu0 %v367, 104
        %v943 = vpop.permute.xlu0 %942
        %v944 = vsel %vm369, %v941, 0
        %v946 = vsel %vm369, %v943, 0
        %948 = vmatprep.subr.mxu0 0.0
        %949 = vmatpush1.xpose.msra.mxu0 %v946
        %950 = vmatprep.subr.mxu0 0.0
        %951 = vmatpush1.xpose.msra.mxu0 0.0
        %952 = vmatprep.subr.mxu0 0.0
        %953 = vmatpush1.xpose.msra.mxu0 0.0
        %954 = vmatprep.subr.mxu0 0.0
        %955 = vmatpush1.xpose.msra.mxu0 0.0
        %956 = vmatprep.subr.mxu0 0.0
        %957 = vmatpush1.xpose.msra.mxu0 0.0
        %958 = vmatprep.subr.mxu0 0.0
        %959 = vmatpush1.xpose.msra.mxu0 0.0
        %960 = vmatprep.subr.mxu0 0.0
        %961 = vmatpush1.xpose.msra.mxu0 0.0
        %962 = vmatprep.subr.mxu0 0.0
        %963 = vmatpush1.xpose.msra.mxu0 0.0
        %964 = vmatprep.subr.mxu0 0.0
        %965 = vmatpush1.xpose.msra.mxu0 0.0
        %966 = vmatprep.subr.mxu0 0.0
        %967 = vmatpush1.xpose.msra.mxu0 0.0
        %968 = vmatprep.subr.mxu0 0.0
        %969 = vmatpush1.xpose.msra.mxu0 0.0
        %970 = vmatprep.subr.mxu0 0.0
        %971 = vmatpush1.xpose.msra.mxu0 0.0
        %972 = vmatprep.subr.mxu0 0.0
        %973 = vmatpush1.xpose.msra.mxu0 0.0
        %974 = vmatprep.subr.mxu0 0.0
        %975 = vmatpush1.xpose.msra.mxu0 0.0
        %976 = vmatprep.subr.mxu0 0.0
        %977 = vmatpush1.xpose.msra.mxu0 0.0
        %978 = vmatprep.subr.mxu0 0.0
        %979 = vmatpush1.xpose.msra.mxu0 0.0
        %980 = vmatprep.subr.mxu0 0.0
        %981 = vmatpush1.xpose.msra.mxu0 0.0
        %982 = vmatprep.subr.mxu0 0.0
        %983 = vmatpush1.xpose.msra.mxu0 0.0
        %984 = vmatprep.subr.mxu0 0.0
        %985 = vmatpush1.xpose.msra.mxu0 0.0
        %986 = vmatprep.subr.mxu0 0.0
        %987 = vmatpush1.xpose.msra.mxu0 0.0
        %988 = vmatprep.subr.mxu0 0.0
        %989 = vmatpush1.xpose.msra.mxu0 0.0
        %990 = vmatprep.subr.mxu0 0.0
        %991 = vmatpush1.xpose.msra.mxu0 0.0
        %992 = vmatprep.subr.mxu0 0.0
        %993 = vmatpush1.xpose.msra.mxu0 0.0
        %994 = vmatprep.subr.mxu0 0.0
        %995 = vmatpush1.xpose.msra.mxu0 0.0
        %996 = vmatprep.subr.mxu0 0.0
        %997 = vmatpush1.xpose.msra.mxu0 0.0
        %998 = vmatprep.subr.mxu0 0.0
        %999 = vmatpush1.xpose.msra.mxu0 0.0
        %1000 = vmatprep.subr.mxu0 0.0
        %1001 = vmatpush1.xpose.msra.mxu0 0.0
        %1002 = vmatprep.subr.mxu0 0.0
        %1003 = vmatpush1.xpose.msra.mxu0 0.0
        %1004 = vmatprep.subr.mxu0 0.0
        %1005 = vmatpush1.xpose.msra.mxu0 0.0
        %1006 = vmatprep.subr.mxu0 0.0
        %1007 = vmatpush1.xpose.msra.mxu0 0.0
        %1008 = vmatprep.subr.mxu0 0.0
        %1009 = vmatpush1.xpose.msra.mxu0 0.0
        %1010 = vmatprep.subr.mxu0 0.0
        %1011 = vmatpush1.xpose.msra.mxu0 0.0
        %1012 = vmatprep.mubr.f32.mxu0 0.0
        %1013 = vmatmul.mubr.f32.gmra.mrb[0].mxu0 %v944
        %v1014 = vpop.f32.mrb[0].mxu0
        %v1015 = vadd.f32 0.0, %v1014
        %v1016 = vpop.f32.mrb[0].mxu0
        %1017 = vdwg.mxu0
        %v1018 = vld [vmem:[#allocation2] sm:$0xff]
        %v1019 = vld [vmem:[#allocation3] sm:$0xff]
        %v1020 = vsel %vm369, %v1015, -inf
        %1021 = vmax.xlane.f32.xlu0 %v1020
        %v1022 = vpop.xlane.xlu0 %1021
        %v1023 = vmax.f32 %v1018, %v1022
        %v1024 = vsub.f32 %v1018, %v1023
        %v1025 = vmul.f32 %v1024, 1.442695
        %v1026 = vpow.pop %v1025
        %1028 = vset.pattern.permute.xlu0 3
        %1029 = vperm.xlu0 %1028, %v1023
        %v1030 = vpop.permute.xlu0 %1029
        %v1032 = vsub.f32 %v1015, %v1030
        %v1033 = vmul.f32 %v1032, 1.442695
        %v1034 = vpow.pop %v1033
        %v1035 = vmul.f32 %v1026, %v1019
        %v1036 = vsel %vm369, %v1034, 0.0
        %1037 = vadd.xlane.f32.xlu0 %v1036
        %v1038 = vpop.xlane.xlu0 %1037
        %v1039 = vadd.f32 %v1035, %v1038
        %vm1040 = vcmask 31768
        %1041 = vst.msk [vmem:[#allocation3] sm:$0xff] %vm1040, %v1039
        %1042 = vst.msk [vmem:[#allocation2] sm:$0xff] %vm1040, %v1023
        %1043 = vrot.lane.b32.xlu0 %v368, 104
        %v1044 = vpop.permute.xlu0 %1043
        %v1047 = vsel %vm369, %v1034, 0
        %1049 = vmatprep.subr.mxu0 0.0
        %1050 = vmatpush1.msra.mxu0 %v1044
        %1051 = vmatprep.subr.mxu0 0.0
        %1052 = vmatpush1.msra.mxu0 0.0
        %1053 = vmatprep.subr.mxu0 0.0
        %1054 = vmatpush1.msra.mxu0 0.0
        %1055 = vmatprep.subr.mxu0 0.0
        %1056 = vmatpush1.msra.mxu0 0.0
        %1057 = vmatprep.subr.mxu0 0.0
        %1058 = vmatpush1.msra.mxu0 0.0
        %1059 = vmatprep.subr.mxu0 0.0
        %1060 = vmatpush1.msra.mxu0 0.0
        %1061 = vmatprep.subr.mxu0 0.0
        %1062 = vmatpush1.msra.mxu0 0.0
        %1063 = vmatprep.subr.mxu0 0.0
        %1064 = vmatpush1.msra.mxu0 0.0
        %1065 = vmatprep.subr.mxu0 0.0
        %1066 = vmatpush1.msra.mxu0 0.0
        %1067 = vmatprep.subr.mxu0 0.0
        %1068 = vmatpush1.msra.mxu0 0.0
        %1069 = vmatprep.subr.mxu0 0.0
        %1070 = vmatpush1.msra.mxu0 0.0
        %1071 = vmatprep.subr.mxu0 0.0
        %1072 = vmatpush1.msra.mxu0 0.0
        %1073 = vmatprep.subr.mxu0 0.0
        %1074 = vmatpush1.msra.mxu0 0.0
        %1075 = vmatprep.subr.mxu0 0.0
        %1076 = vmatpush1.msra.mxu0 0.0
        %1077 = vmatprep.subr.mxu0 0.0
        %1078 = vmatpush1.msra.mxu0 0.0
        %1079 = vmatprep.subr.mxu0 0.0
        %1080 = vmatpush1.msra.mxu0 0.0
        %1081 = vmatprep.subr.mxu0 0.0
        %1082 = vmatpush1.msra.mxu0 0.0
        %1083 = vmatprep.subr.mxu0 0.0
        %1084 = vmatpush1.msra.mxu0 0.0
        %1085 = vmatprep.subr.mxu0 0.0
        %1086 = vmatpush1.msra.mxu0 0.0
        %1087 = vmatprep.subr.mxu0 0.0
        %1088 = vmatpush1.msra.mxu0 0.0
        %1089 = vmatprep.subr.mxu0 0.0
        %1090 = vmatpush1.msra.mxu0 0.0
        %1091 = vmatprep.subr.mxu0 0.0
        %1092 = vmatpush1.msra.mxu0 0.0
        %1093 = vmatprep.subr.mxu0 0.0
        %1094 = vmatpush1.msra.mxu0 0.0
        %1095 = vmatprep.subr.mxu0 0.0
        %1096 = vmatpush1.msra.mxu0 0.0
        %1097 = vmatprep.subr.mxu0 0.0
        %1098 = vmatpush1.msra.mxu0 0.0
        %1099 = vmatprep.subr.mxu0 0.0
        %1100 = vmatpush1.msra.mxu0 0.0
        %1101 = vmatprep.subr.mxu0 0.0
        %1102 = vmatpush1.msra.mxu0 0.0
        %1103 = vmatprep.subr.mxu0 0.0
        %1104 = vmatpush1.msra.mxu0 0.0
        %1105 = vmatprep.subr.mxu0 0.0
        %1106 = vmatpush1.msra.mxu0 0.0
        %1107 = vmatprep.subr.mxu0 0.0
        %1108 = vmatpush1.msra.mxu0 0.0
        %1109 = vmatprep.subr.mxu0 0.0
        %1110 = vmatpush1.msra.mxu0 0.0
        %1111 = vmatprep.subr.mxu0 0.0
        %1112 = vmatpush1.msra.mxu0 0.0
        %1113 = vmatprep.mubr.f32.mxu0 0.0
        %1114 = vmatmul.mubr.f32.gmra.mrb[0].mxu0 %v1047
        %v1115 = vpop.f32.mrb[0].mxu0
        %v1116 = vadd.f32 0.0, %v1115
        %v1117 = vpop.f32.mrb[0].mxu0
        %1118 = vdwg.mxu0
        %v1119 = vld [vmem:[#allocation4] sm:$0xff]
        %1121 = vset.pattern.permute.xlu0 3
        %1122 = vperm.xlu0 %1121, %v1026
        %v1123 = vpop.permute.xlu0 %1122
        %v1125 = vmul.f32 %v1123, %v1119
        %1127 = vrot.lane.b32.xlu0 %v1116, 24
        %v1128 = vpop.permute.xlu0 %1127
        %v1130 = vadd.f32 %v1125, %v1128
        %vm1131 = vcmask 261312
        %1132 = vst.msk [vmem:[#allocation4] sm:$0xff] %vm1131, %v1130
        // Predicated region
        $region61: #{tpu_custom_call.1} parent=39 // pred_check
          %p1133 = pneg %p356
        $region62: #{tpu_custom_call.1} parent=39 // pred_check_branch
          %1135 = sbr.rel (%p1133) target = $region64
        $region63: #{tpu_custom_call.1} parent=39 // pred_region
          %v1136 = vld [vmem:[#allocation3] sm:$0xff]
          %v1137 = vrcp.pop %v1136
          %v1138 = vld [vmem:[#allocation4] sm:$0xff]
          %1140 = vset.pattern.permute.xlu0 0
          %1141 = vperm.xlu0 %1140, %v1137
          %v1142 = vpop.permute.xlu0 %1141
          %v1144 = vmul.f32 %v1138, %v1142
          %1145 = vst.msk [vmem:[#allocation4] sm:$0xff] %vm369, %v1144
          %v1146 = vld [vmem:[#allocation4] sm:$0xff]
          %1147 = vset.pattern.permute.xlu0 1
          %1148 = vperm.xlu0 %1147, %v1137
          %v1149 = vpop.permute.xlu0 %1148
          %v1151 = vmul.f32 %v1146, %v1149
          %1152 = vst.msk [vmem:[#allocation4] sm:$0xff] %vm745, %v1151
          %v1153 = vld [vmem:[#allocation4] sm:$0xff]
          %1154 = vset.pattern.permute.xlu0 2
          %1155 = vperm.xlu0 %1154, %v1137
          %v1156 = vpop.permute.xlu0 %1155
          %v1158 = vmul.f32 %v1153, %v1156
          %1159 = vst.msk [vmem:[#allocation4] sm:$0xff] %vm938, %v1158
          %v1160 = vld [vmem:[#allocation4] sm:$0xff]
          %1161 = vset.pattern.permute.xlu0 3
          %1162 = vperm.xlu0 %1161, %v1137
          %v1163 = vpop.permute.xlu0 %1162
          %v1165 = vmul.f32 %v1160, %v1163
          %1166 = vst.msk [vmem:[#allocation4] sm:$0xff] %vm1131, %v1165
          %v1167 = vld [vmem:[#allocation4] sm:$0xff]
          %v1168 = vld [vmem:[#allocation11] sm:$0xff]
          %v1169 = vld [vmem:[#allocation11 + $0x8] sm:$0xff]
          %v1170 = vld [vmem:[#allocation11 + $0x10] sm:$0xff]
          %v1171 = vld [vmem:[#allocation11 + $0x18] sm:$0xff]
          %v1172 = vld [vmem:[%s4] sm:$0x1]
          %v1174 = vlaneseq
          %v1175 = vshrl.u32 %v1174, 7
          %v1176 = vsub.s32 0, %v1175
          %v1177 = vrot.slane %v1172, %v1176
          %vm1179 = vcmask 261120
          %v1181 = vsel %vm1179, %v1167, 0
          %1183 = vmatprep.subr.mxu0 0.0
          %1184 = vmatpush1.msra.mxu0 %v1168
          %1185 = vmatprep.subr.mxu0 0.0
          %1186 = vmatpush1.msra.mxu0 %v1169
          %1187 = vmatprep.subr.mxu0 0.0
          %1188 = vmatpush1.msra.mxu0 %v1170
          %1189 = vmatprep.subr.mxu0 0.0
          %1190 = vmatpush1.msra.mxu0 %v1171
          %1191 = vmatprep.subr.mxu0 0.0
          %1192 = vmatpush1.msra.mxu0 0.0
          %1193 = vmatprep.subr.mxu0 0.0
          %1194 = vmatpush1.msra.mxu0 0.0
          %1195 = vmatprep.subr.mxu0 0.0
          %1196 = vmatpush1.msra.mxu0 0.0
          %1197 = vmatprep.subr.mxu0 0.0
          %1198 = vmatpush1.msra.mxu0 0.0
          %1199 = vmatprep.subr.mxu0 0.0
          %1200 = vmatpush1.msra.mxu0 0.0
          %1201 = vmatprep.subr.mxu0 0.0
          %1202 = vmatpush1.msra.mxu0 0.0
          %1203 = vmatprep.subr.mxu0 0.0
          %1204 = vmatpush1.msra.mxu0 0.0
          %1205 = vmatprep.subr.mxu0 0.0
          %1206 = vmatpush1.msra.mxu0 0.0
          %1207 = vmatprep.subr.mxu0 0.0
          %1208 = vmatpush1.msra.mxu0 0.0
          %1209 = vmatprep.subr.mxu0 0.0
          %1210 = vmatpush1.msra.mxu0 0.0
          %1211 = vmatprep.subr.mxu0 0.0
          %1212 = vmatpush1.msra.mxu0 0.0
          %1213 = vmatprep.subr.mxu0 0.0
          %1214 = vmatpush1.msra.mxu0 0.0
          %1215 = vmatprep.subr.mxu0 0.0
          %1216 = vmatpush1.msra.mxu0 0.0
          %1217 = vmatprep.subr.mxu0 0.0
          %1218 = vmatpush1.msra.mxu0 0.0
          %1219 = vmatprep.subr.mxu0 0.0
          %1220 = vmatpush1.msra.mxu0 0.0
          %1221 = vmatprep.subr.mxu0 0.0
          %1222 = vmatpush1.msra.mxu0 0.0
          %1223 = vmatprep.subr.mxu0 0.0
          %1224 = vmatpush1.msra.mxu0 0.0
          %1225 = vmatprep.subr.mxu0 0.0
          %1226 = vmatpush1.msra.mxu0 0.0
          %1227 = vmatprep.subr.mxu0 0.0
          %1228 = vmatpush1.msra.mxu0 0.0
          %1229 = vmatprep.subr.mxu0 0.0
          %1230 = vmatpush1.msra.mxu0 0.0
          %1231 = vmatprep.subr.mxu0 0.0
          %1232 = vmatpush1.msra.mxu0 0.0
          %1233 = vmatprep.subr.mxu0 0.0
          %1234 = vmatpush1.msra.mxu0 0.0
          %1235 = vmatprep.subr.mxu0 0.0
          %1236 = vmatpush1.msra.mxu0 0.0
          %1237 = vmatprep.subr.mxu0 0.0
          %1238 = vmatpush1.msra.mxu0 0.0
          %1239 = vmatprep.subr.mxu0 0.0
          %1240 = vmatpush1.msra.mxu0 0.0
          %1241 = vmatprep.subr.mxu0 0.0
          %1242 = vmatpush1.msra.mxu0 0.0
          %1243 = vmatprep.subr.mxu0 0.0
          %1244 = vmatpush1.msra.mxu0 0.0
          %1245 = vmatprep.subr.mxu0 0.0
          %1246 = vmatpush1.msra.mxu0 0.0
          %1247 = vmatprep.mubr.f32.mxu0 0.0
          %1248 = vmatmul.mubr.f32.gmra.mrb[0].mxu0 %v1181
          %v1249 = vpop.f32.mrb[0].mxu0
          %v1250 = vadd.f32 %v1177, %v1249
          %v1251 = vpop.f32.mrb[0].mxu0
          %1252 = vdwg.mxu0
          %1253 = vst.msk [vmem:[%s355] sm:$0xff] %vm1179, %v1250
        $region64: #{tpu_custom_call.1} parent=39 // pred_fallthru
          _
        %s1254 = sand.u32 %s181, 1
        %s1255 = scalar_lea.sflag [#allocation7], %s1254
        %s1256 = sand.u32 %s181, 1
        %s1257 = smul.addr %s1256, 8
        %s1258 = scalar_lea.vmem [#allocation13], %s1257
        // Predicated region
        $region65: #{tpu_custom_call.1} parent=39 // pred_check
          %p1259 = pneg %p191
        $region66: #{tpu_custom_call.1} parent=39 // pred_check_branch
          %1261 = sbr.rel (%p1259) target = $region68
        $region67: #{tpu_custom_call.1} parent=39 // pred_region
          %s1263 = ssub.s32 128, 128
          %1264 = vsyncadd %s1255, %s1263
          %s1265 = sadd.s32 %s32, %s31
          %s1266 = smul.addr %s1265, 128
          %s1267 = scalar_lea.hbm %s5, %s1266
          %s1269 = sshll.u32 %s1258, 4
          %s1270 = int_to_ptr.vmem [resolvable:$true] %s1269
          %1272 = dma.vmem_to_hbm [thread:$0]  %s1270, 128, %s1267, %s1255
        $region68: #{tpu_custom_call.1} parent=39 // pred_fallthru
          _
      $region40: #{tpu_custom_call.1} parent=5 // pred_fallthru
        _
      %p1273 = scmp.le.s32.totalorder 2, %s21
      // Predicated region
      $region69: #{tpu_custom_call.1} parent=5 // pred_check
        %p1274 = pneg %p1273
      $region70: #{tpu_custom_call.1} parent=5 // pred_check_branch
        %1276 = sbr.rel (%p1274) target = $region72
      $region71: #{tpu_custom_call.1} parent=5 // pred_region
        %s1277 = ssub.s32 %s21, 2
        // Predicated region
        $region73: #{tpu_custom_call.1} parent=71 // pred_check
          %p1278 = pneg %p197
        $region74: #{tpu_custom_call.1} parent=71 // pred_check_branch
          %1280 = sbr.rel (%p1278) target = $region76
        $region75: #{tpu_custom_call.1} parent=71 // pred_region
          %s1281 = sand.u32 %s182, 1
          %s1282 = scalar_lea.sflag [#allocation7], %s1281
          %s1283 = sand.u32 %s182, 1
          %s1284 = smul.addr %s1283, 8
          %s1285 = scalar_lea.vmem [#allocation13], %s1284
          %1286 = dma.done %s1282, 128
        $region76: #{tpu_custom_call.1} parent=71 // pred_fallthru
          _
      $region72: #{tpu_custom_call.1} parent=5 // pred_fallthru
        _
    $region6: #{tpu_custom_call.1} parent=1 // loop_footer
      %s25 = sadd.s32 1, %s21
    $region7: #{tpu_custom_call.1} parent=1 // loop_footer_branch
      %20 = sbr.rel target = $region3
    $region8: #{tpu_custom_call.1} parent=1 // loop_exit
      _
    %1287 = vsyncpa [#allocation6], 1
    %s1288 = scalar_lea.sflag [#allocation6], 1
    %1289 = vsyncpa %s1288, 1
    %1290 = vsyncpa [#allocation9], 1
    %s1291 = scalar_lea.sflag [#allocation9], 1
    %1292 = vsyncpa %s1291, 1
    %1293 = vsyncpa [#allocation12], 1
    %1294 = vsyncpa [#allocation7], 1
    %s1295 = scalar_lea.sflag [#allocation7], 1
    %1296 = vsyncpa %s1295, 1

// kernel: tpu_custom_call.1
$region0: #{tpu_custom_call.1}
  #allocation0 [shape = 'u32[]', space=smem, size = 0x4, offset = 0x4, fixed_abs, tag = 'smem constant byte address 0x4 - core index']
  #allocation1 [shape = 'u32[144,128]{1,0:T(1,128)}', space=vmem, size = 0x12000, scoped, tag = 'internal scratch']
  #allocation2 [shape = 'f32[8,4]{1,0:T(8,128)}', space=vmem, size = 0x1000, scoped, tag = 'scratch operand']
  #allocation3 [shape = 'f32[8,4]{1,0:T(8,128)}', space=vmem, size = 0x1000, scoped, tag = 'scratch operand']
  #allocation4 [shape = 'f32[8,32]{1,0:T(8,128)}', space=vmem, size = 0x1000, scoped, tag = 'scratch operand']
  %s0 = inlined_call_operand.hbm [shape: f32[2,8,32], index: 0, kind: input, shape index: {}]
  %s1 = inlined_call_operand.hbm [shape: f32[2,8,32], index: 1, kind: input, shape index: {}]
  %s2 = inlined_call_operand.hbm [shape: f32[2,8,32], index: 2, kind: input, shape index: {}]
  %s3 = inlined_call_operand.hbm [shape: f32[32,32], index: 3, kind: input, shape index: {}]
  %s4 = inlined_call_operand.vmem [shape: f32[1,32], index: 4, kind: input, shape index: {}]
  %s5 = inlined_call_operand.hbm [shape: f32[2,8,32], index: 5, kind: output, shape index: {}]
  %s6 = sld [smem:[#allocation0]]
  $region77: #{tpu_custom_call.1} parent=0
    _
  %s8 = ssub.s32 1, %s6
  %s9 = scalar_select 0, %s8, %s6
  $region1: #{tpu_custom_call.1} parent=0
    #allocation5 [shape = 'u8[8192]{0}', space=vmem, size = 0x2000, scoped, tag = 'input window, operand 0']
    #allocation6 [shape = 's32[2]{0}', space=sflag, size = 0x8, scoped, tag = 'scoped memory for tpu_custom_call.1']
    #allocation7 [shape = 's32[2]{0}', space=sflag, size = 0x8, scoped, tag = 'scoped memory for tpu_custom_call.1']
    #allocation8 [shape = 'u8[8192]{0}', space=vmem, size = 0x2000, scoped, tag = 'input window, operand 1']
    #allocation9 [shape = 's32[2]{0}', space=sflag, size = 0x8, scoped, tag = 'scoped memory for tpu_custom_call.1']
    #allocation10 [shape = 'u8[8192]{0}', space=vmem, size = 0x2000, scoped, tag = 'input window, operand 2']
    #allocation11 [shape = 'u8[16384]{0}', space=vmem, size = 0x4000, scoped, tag = 'input window, operand 3, single buffered']
    #allocation12 [shape = 's32[1]{0}', space=sflag, size = 0x4, scoped, tag = 'scoped memory for tpu_custom_call.1']
    #allocation13 [shape = 'u8[8192]{0}', space=vmem, size = 0x2000, scoped, tag = 'output window, operand 0']
    %10 = vsyncpa [#allocation6], 0
    %s11 = scalar_lea.sflag [#allocation6], 1
    %12 = vsyncpa %s11, 0
    %13 = vsyncpa [#allocation9], 0
    %s14 = scalar_lea.sflag [#allocation9], 1
    %15 = vsyncpa %s14, 0
    %16 = vsyncpa [#allocation12], 0
    %17 = vsyncpa [#allocation7], 0
    %s18 = scalar_lea.sflag [#allocation7], 1
    %19 = vsyncpa %s18, 0
    loop: start=0, step=1, limit=4
    $region2: #{tpu_custom_call.1} parent=1 // loop_pre_header
      _
    $region3: #{tpu_custom_call.1} parent=1 // loop_header
      %s21 = sphi 0, %s25
      %p22 = scmp.ge.s32.totalorder %s21, 4
      %s28 = sphi 0, %s47
      %s29 = sphi 0, %s43
      %s30 = sphi 0, %s39
      %s31 = sphi 0, %s28
      %s32 = sphi 0, %s29
      %s33 = sphi 0, %s30
      %s34 = sphi 0, %s31
      %s35 = sphi 0, %s32
      %s36 = sphi 0, %s33
      %s52 = sphi 0, %s54
      %s55 = sphi 0, %s52
      %s56 = sphi 0, %s55
      %s72 = sphi 0, %s56
      %s80 = sphi 0, %s82
      %s83 = sphi 0, %s80
      %s84 = sphi 0, %s83
      %s100 = sphi 0, %s84
      %s108 = sphi 0, %s110
      %s111 = sphi 0, %s108
      %s112 = sphi 0, %s111
      %s128 = sphi 0, %s112
      %s132 = sphi 0, %s132
      %s134 = sphi 0, %s132
      %s135 = sphi 0, %s134
      %s149 = sphi 0, %s135
      %s153 = sphi 0, %s153
      %s155 = sphi 0, %s153
      %s156 = sphi 0, %s155
      %s170 = sphi 0, %s156
      %s178 = sphi 0, %s180
      %s181 = sphi 0, %s178
      %s182 = sphi 0, %s181
      %s198 = sphi 0, %s182
    $region4: #{tpu_custom_call.1} parent=1 // loop_header_branch
      %24 = sbr.rel (%p22) target = $region8
    $region5: #{tpu_custom_call.1} parent=1 // loop_body
      %s26 = ssub.s32 %s21, 1
      %s27 = ssub.s32 %s21, 2
      %s37 = sadd.s32 1, %s30
      %p38 = scmp.ge.s32.totalorder %s37, 1
      %s39 = scalar_select %p38, 0, %s37
      %s40 = sadd.s32 1, %s29
      %s41 = scalar_select %p38, %s40, %s29
      %p42 = scmp.ge.s32.totalorder %s41, 1
      %s43 = scalar_select %p42, 0, %s41
      %s44 = sadd.s32 1, %s28
      %s45 = scalar_select %p42, %s44, %s28
      %p46 = scmp.ge.s32.totalorder %s45, 2
      %s47 = scalar_select %p46, 0, %s45
      %s48 = ssub.s32 %s28, %s47
      %s49 = ssub.s32 %s29, %s43
      %s50 = sor.u32 %s48, %s49
      %p51 = scmp.eq.s32.totalorder %s50, 0
      %s53 = sadd.s32 %s52, 1
      %s54 = scalar_select %p51, %s52, %s53
      %p57 = pneg %p51
      %p58 = scmp.eq.s32.totalorder %s21, 1
      %p59 = por %p57, %p58
      %p60 = scmp.ne.s32.totalorder %s52, %s55
      %p61 = scmp.eq.s32.totalorder %s21, 0
      %p62 = por %p60, %p61
      %p63 = scmp.ne.s32.totalorder %s52, %s55
      %p64 = scmp.eq.s32.totalorder %s26, 1
      %p65 = por %p63, %p64
      %p66 = scmp.ne.s32.totalorder %s55, %s56
      %p67 = scmp.eq.s32.totalorder %s26, 0
      %p68 = por %p66, %p67
      %p69 = scmp.ne.s32.totalorder %s55, %s56
      %p70 = scmp.eq.s32.totalorder %s27, 1
      %p71 = por %p69, %p70
      %p73 = scmp.ne.s32.totalorder %s56, %s72
      %p74 = scmp.eq.s32.totalorder %s27, 0
      %p75 = por %p73, %p74
      %s76 = ssub.s32 %s28, %s47
      %s77 = ssub.s32 %s30, %s39
      %s78 = sor.u32 %s76, %s77
      %p79 = scmp.eq.s32.totalorder %s78, 0
      %s81 = sadd.s32 %s80, 1
      %s82 = scalar_select %p79, %s80, %s81
      %p85 = pneg %p79
      %p86 = scmp.eq.s32.totalorder %s21, 1
      %p87 = por %p85, %p86
      %p88 = scmp.ne.s32.totalorder %s80, %s83
      %p89 = scmp.eq.s32.totalorder %s21, 0
      %p90 = por %p88, %p89
      %p91 = scmp.ne.s32.totalorder %s80, %s83
      %p92 = scmp.eq.s32.totalorder %s26, 1
      %p93 = por %p91, %p92
      %p94 = scmp.ne.s32.totalorder %s83, %s84
      %p95 = scmp.eq.s32.totalorder %s26, 0
      %p96 = por %p94, %p95
      %p97 = scmp.ne.s32.totalorder %s83, %s84
      %p98 = scmp.eq.s32.totalorder %s27, 1
      %p99 = por %p97, %p98
      %p101 = scmp.ne.s32.totalorder %s84, %s100
      %p102 = scmp.eq.s32.totalorder %s27, 0
      %p103 = por %p101, %p102
      %s104 = ssub.s32 %s28, %s47
      %s105 = ssub.s32 %s30, %s39
      %s106 = sor.u32 %s104, %s105
      %p107 = scmp.eq.s32.totalorder %s106, 0
      %s109 = sadd.s32 %s108, 1
      %s110 = scalar_select %p107, %s108, %s109
      %p113 = pneg %p107
      %p114 = scmp.eq.s32.totalorder %s21, 1
      %p115 = por %p113, %p114
      %p116 = scmp.ne.s32.totalorder %s108, %s111
      %p117 = scmp.eq.s32.totalorder %s21, 0
      %p118 = por %p116, %p117
      %p119 = scmp.ne.s32.totalorder %s108, %s111
      %p120 = scmp.eq.s32.totalorder %s26, 1
      %p121 = por %p119, %p120
      %p122 = scmp.ne.s32.totalorder %s111, %s112
      %p123 = scmp.eq.s32.totalorder %s26, 0
      %p124 = por %p122, %p123
      %p125 = scmp.ne.s32.totalorder %s111, %s112
      %p126 = scmp.eq.s32.totalorder %s27, 1
      %p127 = por %p125, %p126
      %p129 = scmp.ne.s32.totalorder %s112, %s128
      %p130 = scmp.eq.s32.totalorder %s27, 0
      %p131 = por %p129, %p130
      %s133 = sadd.s32 %s132, 1
      %p136 = scmp.eq.s32.totalorder %s21, 1
      %p137 = scmp.ne.s32.totalorder %s132, %s134
      %p138 = scmp.eq.s32.totalorder %s21, 0
      %p139 = por %p137, %p138
      %p140 = scmp.ne.s32.totalorder %s132, %s134
      %p141 = scmp.eq.s32.totalorder %s26, 1
      %p142 = por %p140, %p141
      %p143 = scmp.ne.s32.totalorder %s134, %s135
      %p144 = scmp.eq.s32.totalorder %s26, 0
      %p145 = por %p143, %p144
      %p146 = scmp.ne.s32.totalorder %s134, %s135
      %p147 = scmp.eq.s32.totalorder %s27, 1
      %p148 = por %p146, %p147
      %p150 = scmp.ne.s32.totalorder %s135, %s149
      %p151 = scmp.eq.s32.totalorder %s27, 0
      %p152 = por %p150, %p151
      %s154 = sadd.s32 %s153, 1
      %p157 = scmp.eq.s32.totalorder %s21, 1
      %p158 = scmp.ne.s32.totalorder %s153, %s155
      %p159 = scmp.eq.s32.totalorder %s21, 0
      %p160 = por %p158, %p159
      %p161 = scmp.ne.s32.totalorder %s153, %s155
      %p162 = scmp.eq.s32.totalorder %s26, 1
      %p163 = por %p161, %p162
      %p164 = scmp.ne.s32.totalorder %s155, %s156
      %p165 = scmp.eq.s32.totalorder %s26, 0
      %p166 = por %p164, %p165
      %p167 = scmp.ne.s32.totalorder %s155, %s156
      %p168 = scmp.eq.s32.totalorder %s27, 1
      %p169 = por %p167, %p168
      %p171 = scmp.ne.s32.totalorder %s156, %s170
      %p172 = scmp.eq.s32.totalorder %s27, 0
      %p173 = por %p171, %p172
      %s174 = ssub.s32 %s28, %s47
      %s175 = ssub.s32 %s29, %s43
      %s176 = sor.u32 %s174, %s175
      %p177 = scmp.eq.s32.totalorder %s176, 0
      %s179 = sadd.s32 %s178, 1
      %s180 = scalar_select %p177, %s178, %s179
      %p183 = pneg %p177
      %p184 = scmp.eq.s32.totalorder %s21, 1
      %p185 = por %p183, %p184
      %p186 = scmp.ne.s32.totalorder %s178, %s181
      %p187 = scmp.eq.s32.totalorder %s21, 0
      %p188 = por %p186, %p187
      %p189 = scmp.ne.s32.totalorder %s178, %s181
      %p190 = scmp.eq.s32.totalorder %s26, 1
      %p191 = por %p189, %p190
      %p192 = scmp.ne.s32.totalorder %s181, %s182
      %p193 = scmp.eq.s32.totalorder %s26, 0
      %p194 = por %p192, %p193
      %p195 = scmp.ne.s32.totalorder %s181, %s182
      %p196 = scmp.eq.s32.totalorder %s27, 1
      %p197 = por %p195, %p196
      %p199 = scmp.ne.s32.totalorder %s182, %s198
      %p200 = scmp.eq.s32.totalorder %s27, 0
      %p201 = por %p199, %p200
      %p202 = scmp.le.s32.totalorder 1, %s21
      %p203 = scmp.lt.s32.totalorder %s21, 3
      %p204 = pnand %p202, %p203
      %p205 = pneg %p204
      // Predicated region
      $region9: #{tpu_custom_call.1} parent=5 // pred_check
        _
      $region10: #{tpu_custom_call.1} parent=5 // pred_check_branch
        %207 = sbr.rel (%p204) target = $region12
      $region11: #{tpu_custom_call.1} parent=5 // pred_region
        %s208 = ssub.s32 %s21, 1
        // Predicated region
        $region13: #{tpu_custom_call.1} parent=11 // pred_check
          %p209 = pneg %p145
        $region14: #{tpu_custom_call.1} parent=11 // pred_check_branch
          %211 = sbr.rel (%p209) target = $region16
        $region15: #{tpu_custom_call.1} parent=11 // pred_region
          %s213 = ssub.s32 512, 512
          %214 = vsyncadd [#allocation12], %s213
          %s215 = sshll.u32 [#allocation11], 4
          %s216 = int_to_ptr.vmem [resolvable:$true] %s215
          %221 = dma.hbm_to_vmem [thread:$0]  %s3, 512, %s216, [#allocation12], 128, 128, 8
        $region16: #{tpu_custom_call.1} parent=11 // pred_fallthru
          _
        // Predicated region
        $region17: #{tpu_custom_call.1} parent=11 // pred_check
          %p222 = pneg %p166
        $region18: #{tpu_custom_call.1} parent=11 // pred_check_branch
          %224 = sbr.rel (%p222) target = $region20
        $region19: #{tpu_custom_call.1} parent=11 // pred_region
          _
        $region20: #{tpu_custom_call.1} parent=11 // pred_fallthru
          _
      $region12: #{tpu_custom_call.1} parent=5 // pred_fallthru
        _
      %p225 = scmp.lt.s32.totalorder %s21, 2
      // Predicated region
      $region21: #{tpu_custom_call.1} parent=5 // pred_check
        %p226 = pneg %p225
      $region22: #{tpu_custom_call.1} parent=5 // pred_check_branch
        %228 = sbr.rel (%p226) target = $region24
      $region23: #{tpu_custom_call.1} parent=5 // pred_region
        // Predicated region
        $region25: #{tpu_custom_call.1} parent=23 // pred_check
          %p229 = pneg %p62
        $region26: #{tpu_custom_call.1} parent=23 // pred_check_branch
          %231 = sbr.rel (%p229) target = $region28
        $region27: #{tpu_custom_call.1} parent=23 // pred_region
          %s232 = sand.u32 %s52, 1
          %s233 = scalar_lea.sflag [#allocation6], %s232
          %s234 = sand.u32 %s52, 1
          %s235 = smul.addr %s234, 8
          %s236 = scalar_lea.vmem [#allocation5], %s235
          %s238 = ssub.s32 128, 128
          %239 = vsyncadd %s233, %s238
          %s240 = sadd.s32 %s29, %s28
          %s241 = smul.addr %s240, 128
          %s242 = scalar_lea.hbm %s0, %s241
          %s244 = sshll.u32 %s236, 4
          %s245 = int_to_ptr.vmem [resolvable:$true] %s244
          %247 = dma.hbm_to_vmem [thread:$0]  %s242, 128, %s245, %s233
        $region28: #{tpu_custom_call.1} parent=23 // pred_fallthru
          _
        // Predicated region
        $region29: #{tpu_custom_call.1} parent=23 // pred_check
          %p248 = pneg %p90
        $region30: #{tpu_custom_call.1} parent=23 // pred_check_branch
          %250 = sbr.rel (%p248) target = $region32
        $region31: #{tpu_custom_call.1} parent=23 // pred_region
          %s251 = sand.u32 %s21, 1
          %s252 = scalar_lea.sflag [#allocation9], %s251
          %s253 = sand.u32 %s80, 1
          %s254 = smul.addr %s253, 8
          %s255 = scalar_lea.vmem [#allocation8], %s254
          %s257 = ssub.s32 128, 128
          %258 = vsyncadd %s252, %s257
          %s259 = sadd.s32 %s30, %s28
          %s260 = smul.addr %s259, 128
          %s261 = scalar_lea.hbm %s1, %s260
          %s263 = sshll.u32 %s255, 4
          %s264 = int_to_ptr.vmem [resolvable:$true] %s263
          %266 = dma.hbm_to_vmem [thread:$0]  %s261, 128, %s264, %s252
        $region32: #{tpu_custom_call.1} parent=23 // pred_fallthru
          _
        // Predicated region
        $region33: #{tpu_custom_call.1} parent=23 // pred_check
          %p267 = pneg %p118
        $region34: #{tpu_custom_call.1} parent=23 // pred_check_branch
          %269 = sbr.rel (%p267) target = $region36
        $region35: #{tpu_custom_call.1} parent=23 // pred_region
          %s270 = sand.u32 %s21, 1
          %s271 = scalar_lea.sflag [#allocation9], %s270
          %s272 = sand.u32 %s108, 1
          %s273 = smul.addr %s272, 8
          %s274 = scalar_lea.vmem [#allocation10], %s273
          %s276 = ssub.s32 128, 128
          %277 = vsyncadd %s271, %s276
          %s278 = sadd.s32 %s30, %s28
          %s279 = smul.addr %s278, 128
          %s280 = scalar_lea.hbm %s2, %s279
          %s282 = sshll.u32 %s274, 4
          %s283 = int_to_ptr.vmem [resolvable:$true] %s282
          %285 = dma.hbm_to_vmem [thread:$0]  %s280, 128, %s283, %s271
        $region36: #{tpu_custom_call.1} parent=23 // pred_fallthru
          _
      $region24: #{tpu_custom_call.1} parent=5 // pred_fallthru
        _
      %p286 = scmp.le.s32.totalorder 1, %s21
      %p287 = scmp.lt.s32.totalorder %s21, 3
      %p288 = pnand %p286, %p287
      %p289 = pneg %p288
      // Predicated region
      $region37: #{tpu_custom_call.1} parent=5 // pred_check
        _
      $region38: #{tpu_custom_call.1} parent=5 // pred_check_branch
        %291 = sbr.rel (%p288) target = $region40
      $region39: #{tpu_custom_call.1} parent=5 // pred_region
        %s292 = ssub.s32 %s21, 1
        %s293 = sand.u32 %s55, 1
        %s294 = scalar_lea.sflag [#allocation6], %s293
        %s295 = sand.u32 %s55, 1
        %s296 = smul.addr %s295, 8
        %s297 = scalar_lea.vmem [#allocation5], %s296
        // Predicated region
        $region41: #{tpu_custom_call.1} parent=39 // pred_check
          %p298 = pneg %p68
        $region42: #{tpu_custom_call.1} parent=39 // pred_check_branch
          %300 = sbr.rel (%p298) target = $region44
        $region43: #{tpu_custom_call.1} parent=39 // pred_region
          %301 = dma.done %s294, 128
        $region44: #{tpu_custom_call.1} parent=39 // pred_fallthru
          _
        %s302 = sand.u32 %s26, 1
        %s303 = scalar_lea.sflag [#allocation9], %s302
        %s304 = sand.u32 %s83, 1
        %s305 = smul.addr %s304, 8
        %s306 = scalar_lea.vmem [#allocation8], %s305
        // Predicated region
        $region45: #{tpu_custom_call.1} parent=39 // pred_check
          %p307 = pneg %p96
        $region46: #{tpu_custom_call.1} parent=39 // pred_check_branch
          %309 = sbr.rel (%p307) target = $region48
        $region47: #{tpu_custom_call.1} parent=39 // pred_region
          %310 = dma.done %s303, 128
        $region48: #{tpu_custom_call.1} parent=39 // pred_fallthru
          _
        %s311 = sand.u32 %s26, 1
        %s312 = scalar_lea.sflag [#allocation9], %s311
        %s313 = sand.u32 %s111, 1
        %s314 = smul.addr %s313, 8
        %s315 = scalar_lea.vmem [#allocation10], %s314
        // Predicated region
        $region49: #{tpu_custom_call.1} parent=39 // pred_check
          %p316 = pneg %p124
        $region50: #{tpu_custom_call.1} parent=39 // pred_check_branch
          %318 = sbr.rel (%p316) target = $region52
        $region51: #{tpu_custom_call.1} parent=39 // pred_region
          %319 = dma.done %s312, 128
        $region52: #{tpu_custom_call.1} parent=39 // pred_fallthru
          _
        // Predicated region
        $region53: #{tpu_custom_call.1} parent=39 // pred_check
          %p320 = pneg %p145
        $region54: #{tpu_custom_call.1} parent=39 // pred_check_branch
          %322 = sbr.rel (%p320) target = $region56
        $region55: #{tpu_custom_call.1} parent=39 // pred_region
          %323 = dma.done [#allocation12], 512
        $region56: #{tpu_custom_call.1} parent=39 // pred_fallthru
          _
        %s324 = sand.u32 %s55, 1
        %s325 = scalar_lea.sflag [#allocation6], %s324
        %s326 = sand.u32 %s55, 1
        %s327 = smul.addr %s326, 8
        %s328 = scalar_lea.vmem [#allocation5], %s327
        %p329 = pneg %p68
        %p330 = pneg %p65
        %s331 = sand.u32 %s26, 1
        %s332 = scalar_lea.sflag [#allocation9], %s331
        %s333 = sand.u32 %s83, 1
        %s334 = smul.addr %s333, 8
        %s335 = scalar_lea.vmem [#allocation8], %s334
        %p336 = pneg %p96
        %p337 = pneg %p93
        %s338 = sand.u32 %s26, 1
        %s339 = scalar_lea.sflag [#allocation9], %s338
        %s340 = sand.u32 %s111, 1
        %s341 = smul.addr %s340, 8
        %s342 = scalar_lea.vmem [#allocation10], %s341
        %p343 = pneg %p124
        %p344 = pneg %p121
        %p345 = pneg %p145
        %p346 = pneg %p142
        %p347 = pneg %p166
        %p348 = pneg %p163
        %p349 = pneg %p194
        %p350 = pneg %p191
        %s351 = sand.u32 %s181, 1
        %s352 = scalar_lea.sflag [#allocation7], %s351
        %s353 = sand.u32 %s181, 1
        %s354 = smul.addr %s353, 8
        %s355 = scalar_lea.vmem [#allocation13], %s354
        %p356 = scmp.eq.s32.totalorder %s33, 0
        // Predicated region
        $region57: #{tpu_custom_call.1} parent=39 // pred_check
          %p357 = pneg %p356
        $region58: #{tpu_custom_call.1} parent=39 // pred_check_branch
          %359 = sbr.rel (%p357) target = $region60
        $region59: #{tpu_custom_call.1} parent=39 // pred_region
          %vm360 = vcmask 31744
          %361 = vst.msk [vmem:[#allocation2] sm:$0xff] %vm360, -inf
          %362 = vst.msk [vmem:[#allocation3] sm:$0xff] %vm360, 0.0
          %vm363 = vcmask 261120
          %364 = vst.msk [vmem:[#allocation4] sm:$0xff] %vm363, 0.0
        $region60: #{tpu_custom_call.1} parent=39 // pred_fallthru
          _
        %v365 = vld [vmem:[%s297] sm:$0xff]
        %v366 = vmul.f32 %v365, 0.35355338
        %v367 = vld [vmem:[%s306] sm:$0xff]
        %v368 = vld [vmem:[%s315] sm:$0xff]
        %vm369 = vcmask 64512
        %v371 = vsel %vm369, %v366, 0
        %v374 = vsel %vm369, %v367, 0
        %376 = vmatprep.subr.mxu0 0.0
        %377 = vmatpush1.xpose.msra.mxu0 %v374
        %378 = vmatprep.subr.mxu0 0.0
        %379 = vmatpush1.xpose.msra.mxu0 0.0
        %380 = vmatprep.subr.mxu0 0.0
        %381 = vmatpush1.xpose.msra.mxu0 0.0
        %382 = vmatprep.subr.mxu0 0.0
        %383 = vmatpush1.xpose.msra.mxu0 0.0
        %384 = vmatprep.subr.mxu0 0.0
        %385 = vmatpush1.xpose.msra.mxu0 0.0
        %386 = vmatprep.subr.mxu0 0.0
        %387 = vmatpush1.xpose.msra.mxu0 0.0
        %388 = vmatprep.subr.mxu0 0.0
        %389 = vmatpush1.xpose.msra.mxu0 0.0
        %390 = vmatprep.subr.mxu0 0.0
        %391 = vmatpush1.xpose.msra.mxu0 0.0
        %392 = vmatprep.subr.mxu0 0.0
        %393 = vmatpush1.xpose.msra.mxu0 0.0
        %394 = vmatprep.subr.mxu0 0.0
        %395 = vmatpush1.xpose.msra.mxu0 0.0
        %396 = vmatprep.subr.mxu0 0.0
        %397 = vmatpush1.xpose.msra.mxu0 0.0
        %398 = vmatprep.subr.mxu0 0.0
        %399 = vmatpush1.xpose.msra.mxu0 0.0
        %400 = vmatprep.subr.mxu0 0.0
        %401 = vmatpush1.xpose.msra.mxu0 0.0
        %402 = vmatprep.subr.mxu0 0.0
        %403 = vmatpush1.xpose.msra.mxu0 0.0
        %404 = vmatprep.subr.mxu0 0.0
        %405 = vmatpush1.xpose.msra.mxu0 0.0
        %406 = vmatprep.subr.mxu0 0.0
        %407 = vmatpush1.xpose.msra.mxu0 0.0
        %408 = vmatprep.subr.mxu0 0.0
        %409 = vmatpush1.xpose.msra.mxu0 0.0
        %410 = vmatprep.subr.mxu0 0.0
        %411 = vmatpush1.xpose.msra.mxu0 0.0
        %412 = vmatprep.subr.mxu0 0.0
        %413 = vmatpush1.xpose.msra.mxu0 0.0
        %414 = vmatprep.subr.mxu0 0.0
        %415 = vmatpush1.xpose.msra.mxu0 0.0
        %416 = vmatprep.subr.mxu0 0.0
        %417 = vmatpush1.xpose.msra.mxu0 0.0
        %418 = vmatprep.subr.mxu0 0.0
        %419 = vmatpush1.xpose.msra.mxu0 0.0
        %420 = vmatprep.subr.mxu0 0.0
        %421 = vmatpush1.xpose.msra.mxu0 0.0
        %422 = vmatprep.subr.mxu0 0.0
        %423 = vmatpush1.xpose.msra.mxu0 0.0
        %424 = vmatprep.subr.mxu0 0.0
        %425 = vmatpush1.xpose.msra.mxu0 0.0
        %426 = vmatprep.subr.mxu0 0.0
        %427 = vmatpush1.xpose.msra.mxu0 0.0
        %428 = vmatprep.subr.mxu0 0.0
        %429 = vmatpush1.xpose.msra.mxu0 0.0
        %430 = vmatprep.subr.mxu0 0.0
        %431 = vmatpush1.xpose.msra.mxu0 0.0
        %432 = vmatprep.subr.mxu0 0.0
        %433 = vmatpush1.xpose.msra.mxu0 0.0
        %434 = vmatprep.subr.mxu0 0.0
        %435 = vmatpush1.xpose.msra.mxu0 0.0
        %436 = vmatprep.subr.mxu0 0.0
        %437 = vmatpush1.xpose.msra.mxu0 0.0
        %438 = vmatprep.subr.mxu0 0.0
        %439 = vmatpush1.xpose.msra.mxu0 0.0
        %440 = vmatprep.mubr.f32.mxu0 0.0
        %441 = vmatmul.mubr.f32.gmra.mrb[0].mxu0 %v371
        %v442 = vpop.f32.mrb[0].mxu0
        %v443 = vadd.f32 0.0, %v442
        %v444 = vpop.f32.mrb[0].mxu0
        %445 = vdwg.mxu0
        %v446 = vld [vmem:[#allocation2] sm:$0xff]
        %v447 = vld [vmem:[#allocation3] sm:$0xff]
        %v448 = vsel %vm369, %v443, -inf
        %449 = vmax.xlane.f32.xlu0 %v448
        %v450 = vpop.xlane.xlu0 %449
        %v451 = vmax.f32 %v446, %v450
        %v452 = vsub.f32 %v446, %v451
        %v453 = vmul.f32 %v452, 1.442695
        %v454 = vpow.pop %v453
        %456 = vset.pattern.permute.xlu0 0
        %457 = vperm.xlu0 %456, %v451
        %v458 = vpop.permute.xlu0 %457
        %v460 = vsub.f32 %v443, %v458
        %v461 = vmul.f32 %v460, 1.442695
        %v462 = vpow.pop %v461
        %v463 = vmul.f32 %v454, %v447
        %v464 = vsel %vm369, %v462, 0.0
        %465 = vadd.xlane.f32.xlu0 %v464
        %v466 = vpop.xlane.xlu0 %465
        %v467 = vadd.f32 %v463, %v466
        %vm468 = vcmask 7168
        %469 = vst.msk [vmem:[#allocation3] sm:$0xff] %vm468, %v467
        %470 = vst.msk [vmem:[#allocation2] sm:$0xff] %vm468, %v451
        %v472 = vsel %vm369, %v462, 0
        %474 = vmatprep.subr.mxu0 0.0
        %475 = vmatpush1.msra.mxu0 %v368
        %476 = vmatprep.subr.mxu0 0.0
        %477 = vmatpush1.msra.mxu0 0.0
        %478 = vmatprep.subr.mxu0 0.0
        %479 = vmatpush1.msra.mxu0 0.0
        %480 = vmatprep.subr.mxu0 0.0
        %481 = vmatpush1.msra.mxu0 0.0
        %482 = vmatprep.subr.mxu0 0.0
        %483 = vmatpush1.msra.mxu0 0.0
        %484 = vmatprep.subr.mxu0 0.0
        %485 = vmatpush1.msra.mxu0 0.0
        %486 = vmatprep.subr.mxu0 0.0
        %487 = vmatpush1.msra.mxu0 0.0
        %488 = vmatprep.subr.mxu0 0.0
        %489 = vmatpush1.msra.mxu0 0.0
        %490 = vmatprep.subr.mxu0 0.0
        %491 = vmatpush1.msra.mxu0 0.0
        %492 = vmatprep.subr.mxu0 0.0
        %493 = vmatpush1.msra.mxu0 0.0
        %494 = vmatprep.subr.mxu0 0.0
        %495 = vmatpush1.msra.mxu0 0.0
        %496 = vmatprep.subr.mxu0 0.0
        %497 = vmatpush1.msra.mxu0 0.0
        %498 = vmatprep.subr.mxu0 0.0
        %499 = vmatpush1.msra.mxu0 0.0
        %500 = vmatprep.subr.mxu0 0.0
        %501 = vmatpush1.msra.mxu0 0.0
        %502 = vmatprep.subr.mxu0 0.0
        %503 = vmatpush1.msra.mxu0 0.0
        %504 = vmatprep.subr.mxu0 0.0
        %505 = vmatpush1.msra.mxu0 0.0
        %506 = vmatprep.subr.mxu0 0.0
        %507 = vmatpush1.msra.mxu0 0.0
        %508 = vmatprep.subr.mxu0 0.0
        %509 = vmatpush1.msra.mxu0 0.0
        %510 = vmatprep.subr.mxu0 0.0
        %511 = vmatpush1.msra.mxu0 0.0
        %512 = vmatprep.subr.mxu0 0.0
        %513 = vmatpush1.msra.mxu0 0.0
        %514 = vmatprep.subr.mxu0 0.0
        %515 = vmatpush1.msra.mxu0 0.0
        %516 = vmatprep.subr.mxu0 0.0
        %517 = vmatpush1.msra.mxu0 0.0
        %518 = vmatprep.subr.mxu0 0.0
        %519 = vmatpush1.msra.mxu0 0.0
        %520 = vmatprep.subr.mxu0 0.0
        %521 = vmatpush1.msra.mxu0 0.0
        %522 = vmatprep.subr.mxu0 0.0
        %523 = vmatpush1.msra.mxu0 0.0
        %524 = vmatprep.subr.mxu0 0.0
        %525 = vmatpush1.msra.mxu0 0.0
        %526 = vmatprep.subr.mxu0 0.0
        %527 = vmatpush1.msra.mxu0 0.0
        %528 = vmatprep.subr.mxu0 0.0
        %529 = vmatpush1.msra.mxu0 0.0
        %530 = vmatprep.subr.mxu0 0.0
        %531 = vmatpush1.msra.mxu0 0.0
        %532 = vmatprep.subr.mxu0 0.0
        %533 = vmatpush1.msra.mxu0 0.0
        %534 = vmatprep.subr.mxu0 0.0
        %535 = vmatpush1.msra.mxu0 0.0
        %536 = vmatprep.subr.mxu0 0.0
        %537 = vmatpush1.msra.mxu0 0.0
        %538 = vmatprep.mubr.f32.mxu0 0.0
        %539 = vmatmul.mubr.f32.gmra.mrb[0].mxu0 %v472
        %v540 = vpop.f32.mrb[0].mxu0
        %v541 = vadd.f32 0.0, %v540
        %v542 = vpop.f32.mrb[0].mxu0
        %543 = vdwg.mxu0
        %v544 = vld [vmem:[#allocation4] sm:$0xff]
        %546 = vset.pattern.permute.xlu0 0
        %547 = vperm.xlu0 %546, %v454
        %v548 = vpop.permute.xlu0 %547
        %v550 = vmul.f32 %v548, %v544
        %v551 = vadd.f32 %v550, %v541
        %552 = vst.msk [vmem:[#allocation4] sm:$0xff] %vm369, %v551
        %553 = vrot.lane.b32.xlu0 %v366, 120
        %v554 = vpop.permute.xlu0 %553
        %555 = vrot.lane.b32.xlu0 %v367, 120
        %v556 = vpop.permute.xlu0 %555
        %v557 = vsel %vm369, %v554, 0
        %v559 = vsel %vm369, %v556, 0
        %561 = vmatprep.subr.mxu0 0.0
        %562 = vmatpush1.xpose.msra.mxu0 %v559
        %563 = vmatprep.subr.mxu0 0.0
        %564 = vmatpush1.xpose.msra.mxu0 0.0
        %565 = vmatprep.subr.mxu0 0.0
        %566 = vmatpush1.xpose.msra.mxu0 0.0
        %567 = vmatprep.subr.mxu0 0.0
        %568 = vmatpush1.xpose.msra.mxu0 0.0
        %569 = vmatprep.subr.mxu0 0.0
        %570 = vmatpush1.xpose.msra.mxu0 0.0
        %571 = vmatprep.subr.mxu0 0.0
        %572 = vmatpush1.xpose.msra.mxu0 0.0
        %573 = vmatprep.subr.mxu0 0.0
        %574 = vmatpush1.xpose.msra.mxu0 0.0
        %575 = vmatprep.subr.mxu0 0.0
        %576 = vmatpush1.xpose.msra.mxu0 0.0
        %577 = vmatprep.subr.mxu0 0.0
        %578 = vmatpush1.xpose.msra.mxu0 0.0
        %579 = vmatprep.subr.mxu0 0.0
        %580 = vmatpush1.xpose.msra.mxu0 0.0
        %581 = vmatprep.subr.mxu0 0.0
        %582 = vmatpush1.xpose.msra.mxu0 0.0
        %583 = vmatprep.subr.mxu0 0.0
        %584 = vmatpush1.xpose.msra.mxu0 0.0
        %585 = vmatprep.subr.mxu0 0.0
        %586 = vmatpush1.xpose.msra.mxu0 0.0
        %587 = vmatprep.subr.mxu0 0.0
        %588 = vmatpush1.xpose.msra.mxu0 0.0
        %589 = vmatprep.subr.mxu0 0.0
        %590 = vmatpush1.xpose.msra.mxu0 0.0
        %591 = vmatprep.subr.mxu0 0.0
        %592 = vmatpush1.xpose.msra.mxu0 0.0
        %593 = vmatprep.subr.mxu0 0.0
        %594 = vmatpush1.xpose.msra.mxu0 0.0
        %595 = vmatprep.subr.mxu0 0.0
        %596 = vmatpush1.xpose.msra.mxu0 0.0
        %597 = vmatprep.subr.mxu0 0.0
        %598 = vmatpush1.xpose.msra.mxu0 0.0
        %599 = vmatprep.subr.mxu0 0.0
        %600 = vmatpush1.xpose.msra.mxu0 0.0
        %601 = vmatprep.subr.mxu0 0.0
        %602 = vmatpush1.xpose.msra.mxu0 0.0
        %603 = vmatprep.subr.mxu0 0.0
        %604 = vmatpush1.xpose.msra.mxu0 0.0
        %605 = vmatprep.subr.mxu0 0.0
        %606 = vmatpush1.xpose.msra.mxu0 0.0
        %607 = vmatprep.subr.mxu0 0.0
        %608 = vmatpush1.xpose.msra.mxu0 0.0
        %609 = vmatprep.subr.mxu0 0.0
        %610 = vmatpush1.xpose.msra.mxu0 0.0
        %611 = vmatprep.subr.mxu0 0.0
        %612 = vmatpush1.xpose.msra.mxu0 0.0
        %613 = vmatprep.subr.mxu0 0.0
        %614 = vmatpush1.xpose.msra.mxu0 0.0
        %615 = vmatprep.subr.mxu0 0.0
        %616 = vmatpush1.xpose.msra.mxu0 0.0
        %617 = vmatprep.subr.mxu0 0.0
        %618 = vmatpush1.xpose.msra.mxu0 0.0
        %619 = vmatprep.subr.mxu0 0.0
        %620 = vmatpush1.xpose.msra.mxu0 0.0
        %621 = vmatprep.subr.mxu0 0.0
        %622 = vmatpush1.xpose.msra.mxu0 0.0
        %623 = vmatprep.subr.mxu0 0.0
        %624 = vmatpush1.xpose.msra.mxu0 0.0
        %625 = vmatprep.mubr.f32.mxu0 0.0
        %626 = vmatmul.mubr.f32.gmra.mrb[0].mxu0 %v557
        %v627 = vpop.f32.mrb[0].mxu0
        %v628 = vadd.f32 0.0, %v627
        %v629 = vpop.f32.mrb[0].mxu0
        %630 = vdwg.mxu0
        %v631 = vld [vmem:[#allocation2] sm:$0xff]
        %v632 = vld [vmem:[#allocation3] sm:$0xff]
        %v633 = vsel %vm369, %v628, -inf
        %634 = vmax.xlane.f32.xlu0 %v633
        %v635 = vpop.xlane.xlu0 %634
        %v636 = vmax.f32 %v631, %v635
        %v637 = vsub.f32 %v631, %v636
        %v638 = vmul.f32 %v637, 1.442695
        %v639 = vpow.pop %v638
        %641 = vset.pattern.permute.xlu0 1
        %642 = vperm.xlu0 %641, %v636
        %v643 = vpop.permute.xlu0 %642
        %v645 = vsub.f32 %v628, %v643
        %v646 = vmul.f32 %v645, 1.442695
        %v647 = vpow.pop %v646
        %v648 = vmul.f32 %v639, %v632
        %v649 = vsel %vm369, %v647, 0.0
        %650 = vadd.xlane.f32.xlu0 %v649
        %v651 = vpop.xlane.xlu0 %650
        %v652 = vadd.f32 %v648, %v651
        %vm653 = vcmask 15368
        %654 = vst.msk [vmem:[#allocation3] sm:$0xff] %vm653, %v652
        %655 = vst.msk [vmem:[#allocation2] sm:$0xff] %vm653, %v636
        %657 = vrot.lane.b32.xlu0 %v368, 120
        %v658 = vpop.permute.xlu0 %657
        %v661 = vsel %vm369, %v647, 0
        %663 = vmatprep.subr.mxu0 0.0
        %664 = vmatpush1.msra.mxu0 %v658
        %665 = vmatprep.subr.mxu0 0.0
        %666 = vmatpush1.msra.mxu0 0.0
        %667 = vmatprep.subr.mxu0 0.0
        %668 = vmatpush1.msra.mxu0 0.0
        %669 = vmatprep.subr.mxu0 0.0
        %670 = vmatpush1.msra.mxu0 0.0
        %671 = vmatprep.subr.mxu0 0.0
        %672 = vmatpush1.msra.mxu0 0.0
        %673 = vmatprep.subr.mxu0 0.0
        %674 = vmatpush1.msra.mxu0 0.0
        %675 = vmatprep.subr.mxu0 0.0
        %676 = vmatpush1.msra.mxu0 0.0
        %677 = vmatprep.subr.mxu0 0.0
        %678 = vmatpush1.msra.mxu0 0.0
        %679 = vmatprep.subr.mxu0 0.0
        %680 = vmatpush1.msra.mxu0 0.0
        %681 = vmatprep.subr.mxu0 0.0
        %682 = vmatpush1.msra.mxu0 0.0
        %683 = vmatprep.subr.mxu0 0.0
        %684 = vmatpush1.msra.mxu0 0.0
        %685 = vmatprep.subr.mxu0 0.0
        %686 = vmatpush1.msra.mxu0 0.0
        %687 = vmatprep.subr.mxu0 0.0
        %688 = vmatpush1.msra.mxu0 0.0
        %689 = vmatprep.subr.mxu0 0.0
        %690 = vmatpush1.msra.mxu0 0.0
        %691 = vmatprep.subr.mxu0 0.0
        %692 = vmatpush1.msra.mxu0 0.0
        %693 = vmatprep.subr.mxu0 0.0
        %694 = vmatpush1.msra.mxu0 0.0
        %695 = vmatprep.subr.mxu0 0.0
        %696 = vmatpush1.msra.mxu0 0.0
        %697 = vmatprep.subr.mxu0 0.0
        %698 = vmatpush1.msra.mxu0 0.0
        %699 = vmatprep.subr.mxu0 0.0
        %700 = vmatpush1.msra.mxu0 0.0
        %701 = vmatprep.subr.mxu0 0.0
        %702 = vmatpush1.msra.mxu0 0.0
        %703 = vmatprep.subr.mxu0 0.0
        %704 = vmatpush1.msra.mxu0 0.0
        %705 = vmatprep.subr.mxu0 0.0
        %706 = vmatpush1.msra.mxu0 0.0
        %707 = vmatprep.subr.mxu0 0.0
        %708 = vmatpush1.msra.mxu0 0.0
        %709 = vmatprep.subr.mxu0 0.0
        %710 = vmatpush1.msra.mxu0 0.0
        %711 = vmatprep.subr.mxu0 0.0
        %712 = vmatpush1.msra.mxu0 0.0
        %713 = vmatprep.subr.mxu0 0.0
        %714 = vmatpush1.msra.mxu0 0.0
        %715 = vmatprep.subr.mxu0 0.0
        %716 = vmatpush1.msra.mxu0 0.0
        %717 = vmatprep.subr.mxu0 0.0
        %718 = vmatpush1.msra.mxu0 0.0
        %719 = vmatprep.subr.mxu0 0.0
        %720 = vmatpush1.msra.mxu0 0.0
        %721 = vmatprep.subr.mxu0 0.0
        %722 = vmatpush1.msra.mxu0 0.0
        %723 = vmatprep.subr.mxu0 0.0
        %724 = vmatpush1.msra.mxu0 0.0
        %725 = vmatprep.subr.mxu0 0.0
        %726 = vmatpush1.msra.mxu0 0.0
        %727 = vmatprep.mubr.f32.mxu0 0.0
        %728 = vmatmul.mubr.f32.gmra.mrb[0].mxu0 %v661
        %v729 = vpop.f32.mrb[0].mxu0
        %v730 = vadd.f32 0.0, %v729
        %v731 = vpop.f32.mrb[0].mxu0
        %732 = vdwg.mxu0
        %v733 = vld [vmem:[#allocation4] sm:$0xff]
        %735 = vset.pattern.permute.xlu0 1
        %736 = vperm.xlu0 %735, %v639
        %v737 = vpop.permute.xlu0 %736
        %v739 = vmul.f32 %v737, %v733
        %741 = vrot.lane.b32.xlu0 %v730, 8
        %v742 = vpop.permute.xlu0 %741
        %v744 = vadd.f32 %v739, %v742
        %vm745 = vcmask 130112
        %746 = vst.msk [vmem:[#allocation4] sm:$0xff] %vm745, %v744
        %747 = vrot.lane.b32.xlu0 %v366, 112
        %v748 = vpop.permute.xlu0 %747
        %749 = vrot.lane.b32.xlu0 %v367, 112
        %v750 = vpop.permute.xlu0 %749
        %v751 = vsel %vm369, %v748, 0
        %v753 = vsel %vm369, %v750, 0
        %755 = vmatprep.subr.mxu0 0.0
        %756 = vmatpush1.xpose.msra.mxu0 %v753
        %757 = vmatprep.subr.mxu0 0.0
        %758 = vmatpush1.xpose.msra.mxu0 0.0
        %759 = vmatprep.subr.mxu0 0.0
        %760 = vmatpush1.xpose.msra.mxu0 0.0
        %761 = vmatprep.subr.mxu0 0.0
        %762 = vmatpush1.xpose.msra.mxu0 0.0
        %763 = vmatprep.subr.mxu0 0.0
        %764 = vmatpush1.xpose.msra.mxu0 0.0
        %765 = vmatprep.subr.mxu0 0.0
        %766 = vmatpush1.xpose.msra.mxu0 0.0
        %767 = vmatprep.subr.mxu0 0.0
        %768 = vmatpush1.xpose.msra.mxu0 0.0
        %769 = vmatprep.subr.mxu0 0.0
        %770 = vmatpush1.xpose.msra.mxu0 0.0
        %771 = vmatprep.subr.mxu0 0.0
        %772 = vmatpush1.xpose.msra.mxu0 0.0
        %773 = vmatprep.subr.mxu0 0.0
        %774 = vmatpush1.xpose.msra.mxu0 0.0
        %775 = vmatprep.subr.mxu0 0.0
        %776 = vmatpush1.xpose.msra.mxu0 0.0
        %777 = vmatprep.subr.mxu0 0.0
        %778 = vmatpush1.xpose.msra.mxu0 0.0
        %779 = vmatprep.subr.mxu0 0.0
        %780 = vmatpush1.xpose.msra.mxu0 0.0
        %781 = vmatprep.subr.mxu0 0.0
        %782 = vmatpush1.xpose.msra.mxu0 0.0
        %783 = vmatprep.subr.mxu0 0.0
        %784 = vmatpush1.xpose.msra.mxu0 0.0
        %785 = vmatprep.subr.mxu0 0.0
        %786 = vmatpush1.xpose.msra.mxu0 0.0
        %787 = vmatprep.subr.mxu0 0.0
        %788 = vmatpush1.xpose.msra.mxu0 0.0
        %789 = vmatprep.subr.mxu0 0.0
        %790 = vmatpush1.xpose.msra.mxu0 0.0
        %791 = vmatprep.subr.mxu0 0.0
        %792 = vmatpush1.xpose.msra.mxu0 0.0
        %793 = vmatprep.subr.mxu0 0.0
        %794 = vmatpush1.xpose.msra.mxu0 0.0
        %795 = vmatprep.subr.mxu0 0.0
        %796 = vmatpush1.xpose.msra.mxu0 0.0
        %797 = vmatprep.subr.mxu0 0.0
        %798 = vmatpush1.xpose.msra.mxu0 0.0
        %799 = vmatprep.subr.mxu0 0.0
        %800 = vmatpush1.xpose.msra.mxu0 0.0
        %801 = vmatprep.subr.mxu0 0.0
        %802 = vmatpush1.xpose.msra.mxu0 0.0
        %803 = vmatprep.subr.mxu0 0.0
        %804 = vmatpush1.xpose.msra.mxu0 0.0
        %805 = vmatprep.subr.mxu0 0.0
        %806 = vmatpush1.xpose.msra.mxu0 0.0
        %807 = vmatprep.subr.mxu0 0.0
        %808 = vmatpush1.xpose.msra.mxu0 0.0
        %809 = vmatprep.subr.mxu0 0.0
        %810 = vmatpush1.xpose.msra.mxu0 0.0
        %811 = vmatprep.subr.mxu0 0.0
        %812 = vmatpush1.xpose.msra.mxu0 0.0
        %813 = vmatprep.subr.mxu0 0.0
        %814 = vmatpush1.xpose.msra.mxu0 0.0
        %815 = vmatprep.subr.mxu0 0.0
        %816 = vmatpush1.xpose.msra.mxu0 0.0
        %817 = vmatprep.subr.mxu0 0.0
        %818 = vmatpush1.xpose.msra.mxu0 0.0
        %819 = vmatprep.mubr.f32.mxu0 0.0
        %820 = vmatmul.mubr.f32.gmra.mrb[0].mxu0 %v751
        %v821 = vpop.f32.mrb[0].mxu0
        %v822 = vadd.f32 0.0, %v821
        %v823 = vpop.f32.mrb[0].mxu0
        %824 = vdwg.mxu0
        %v825 = vld [vmem:[#allocation2] sm:$0xff]
        %v826 = vld [vmem:[#allocation3] sm:$0xff]
        %v827 = vsel %vm369, %v822, -inf
        %828 = vmax.xlane.f32.xlu0 %v827
        %v829 = vpop.xlane.xlu0 %828
        %v830 = vmax.f32 %v825, %v829
        %v831 = vsub.f32 %v825, %v830
        %v832 = vmul.f32 %v831, 1.442695
        %v833 = vpow.pop %v832
        %835 = vset.pattern.permute.xlu0 2
        %836 = vperm.xlu0 %835, %v830
        %v837 = vpop.permute.xlu0 %836
        %v839 = vsub.f32 %v822, %v837
        %v840 = vmul.f32 %v839, 1.442695
        %v841 = vpow.pop %v840
        %v842 = vmul.f32 %v833, %v826
        %v843 = vsel %vm369, %v841, 0.0
        %844 = vadd.xlane.f32.xlu0 %v843
        %v845 = vpop.xlane.xlu0 %844
        %v846 = vadd.f32 %v842, %v845
        %vm847 = vcmask 23568
        %848 = vst.msk [vmem:[#allocation3] sm:$0xff] %vm847, %v846
        %849 = vst.msk [vmem:[#allocation2] sm:$0xff] %vm847, %v830
        %850 = vrot.lane.b32.xlu0 %v368, 112
        %v851 = vpop.permute.xlu0 %850
        %v854 = vsel %vm369, %v841, 0
        %856 = vmatprep.subr.mxu0 0.0
        %857 = vmatpush1.msra.mxu0 %v851
        %858 = vmatprep.subr.mxu0 0.0
        %859 = vmatpush1.msra.mxu0 0.0
        %860 = vmatprep.subr.mxu0 0.0
        %861 = vmatpush1.msra.mxu0 0.0
        %862 = vmatprep.subr.mxu0 0.0
        %863 = vmatpush1.msra.mxu0 0.0
        %864 = vmatprep.subr.mxu0 0.0
        %865 = vmatpush1.msra.mxu0 0.0
        %866 = vmatprep.subr.mxu0 0.0
        %867 = vmatpush1.msra.mxu0 0.0
        %868 = vmatprep.subr.mxu0 0.0
        %869 = vmatpush1.msra.mxu0 0.0
        %870 = vmatprep.subr.mxu0 0.0
        %871 = vmatpush1.msra.mxu0 0.0
        %872 = vmatprep.subr.mxu0 0.0
        %873 = vmatpush1.msra.mxu0 0.0
        %874 = vmatprep.subr.mxu0 0.0
        %875 = vmatpush1.msra.mxu0 0.0
        %876 = vmatprep.subr.mxu0 0.0
        %877 = vmatpush1.msra.mxu0 0.0
        %878 = vmatprep.subr.mxu0 0.0
        %879 = vmatpush1.msra.mxu0 0.0
        %880 = vmatprep.subr.mxu0 0.0
        %881 = vmatpush1.msra.mxu0 0.0
        %882 = vmatprep.subr.mxu0 0.0
        %883 = vmatpush1.msra.mxu0 0.0
        %884 = vmatprep.subr.mxu0 0.0
        %885 = vmatpush1.msra.mxu0 0.0
        %886 = vmatprep.subr.mxu0 0.0
        %887 = vmatpush1.msra.mxu0 0.0
        %888 = vmatprep.subr.mxu0 0.0
        %889 = vmatpush1.msra.mxu0 0.0
        %890 = vmatprep.subr.mxu0 0.0
        %891 = vmatpush1.msra.mxu0 0.0
        %892 = vmatprep.subr.mxu0 0.0
        %893 = vmatpush1.msra.mxu0 0.0
        %894 = vmatprep.subr.mxu0 0.0
        %895 = vmatpush1.msra.mxu0 0.0
        %896 = vmatprep.subr.mxu0 0.0
        %897 = vmatpush1.msra.mxu0 0.0
        %898 = vmatprep.subr.mxu0 0.0
        %899 = vmatpush1.msra.mxu0 0.0
        %900 = vmatprep.subr.mxu0 0.0
        %901 = vmatpush1.msra.mxu0 0.0
        %902 = vmatprep.subr.mxu0 0.0
        %903 = vmatpush1.msra.mxu0 0.0
        %904 = vmatprep.subr.mxu0 0.0
        %905 = vmatpush1.msra.mxu0 0.0
        %906 = vmatprep.subr.mxu0 0.0
        %907 = vmatpush1.msra.mxu0 0.0
        %908 = vmatprep.subr.mxu0 0.0
        %909 = vmatpush1.msra.mxu0 0.0
        %910 = vmatprep.subr.mxu0 0.0
        %911 = vmatpush1.msra.mxu0 0.0
        %912 = vmatprep.subr.mxu0 0.0
        %913 = vmatpush1.msra.mxu0 0.0
        %914 = vmatprep.subr.mxu0 0.0
        %915 = vmatpush1.msra.mxu0 0.0
        %916 = vmatprep.subr.mxu0 0.0
        %917 = vmatpush1.msra.mxu0 0.0
        %918 = vmatprep.subr.mxu0 0.0
        %919 = vmatpush1.msra.mxu0 0.0
        %920 = vmatprep.mubr.f32.mxu0 0.0
        %921 = vmatmul.mubr.f32.gmra.mrb[0].mxu0 %v854
        %v922 = vpop.f32.mrb[0].mxu0
        %v923 = vadd.f32 0.0, %v922
        %v924 = vpop.f32.mrb[0].mxu0
        %925 = vdwg.mxu0
        %v926 = vld [vmem:[#allocation4] sm:$0xff]
        %928 = vset.pattern.permute.xlu0 2
        %929 = vperm.xlu0 %928, %v833
        %v930 = vpop.permute.xlu0 %929
        %v932 = vmul.f32 %v930, %v926
        %934 = vrot.lane.b32.xlu0 %v923, 16
        %v935 = vpop.permute.xlu0 %934
        %v937 = vadd.f32 %v932, %v935
        %vm938 = vcmask 195712
        %939 = vst.msk [vmem:[#allocation4] sm:$0xff] %vm938, %v937
        %940 = vrot.lane.b32.xlu0 %v366, 104
        %v941 = vpop.permute.xlu0 %940
        %942 = vrot.lane.b32.xlu0 %v367, 104
        %v943 = vpop.permute.xlu0 %942
        %v944 = vsel %vm369, %v941, 0
        %v946 = vsel %vm369, %v943, 0
        %948 = vmatprep.subr.mxu0 0.0
        %949 = vmatpush1.xpose.msra.mxu0 %v946
        %950 = vmatprep.subr.mxu0 0.0
        %951 = vmatpush1.xpose.msra.mxu0 0.0
        %952 = vmatprep.subr.mxu0 0.0
        %953 = vmatpush1.xpose.msra.mxu0 0.0
        %954 = vmatprep.subr.mxu0 0.0
        %955 = vmatpush1.xpose.msra.mxu0 0.0
        %956 = vmatprep.subr.mxu0 0.0
        %957 = vmatpush1.xpose.msra.mxu0 0.0
        %958 = vmatprep.subr.mxu0 0.0
        %959 = vmatpush1.xpose.msra.mxu0 0.0
        %960 = vmatprep.subr.mxu0 0.0
        %961 = vmatpush1.xpose.msra.mxu0 0.0
        %962 = vmatprep.subr.mxu0 0.0
        %963 = vmatpush1.xpose.msra.mxu0 0.0
        %964 = vmatprep.subr.mxu0 0.0
        %965 = vmatpush1.xpose.msra.mxu0 0.0
        %966 = vmatprep.subr.mxu0 0.0
        %967 = vmatpush1.xpose.msra.mxu0 0.0
        %968 = vmatprep.subr.mxu0 0.0
        %969 = vmatpush1.xpose.msra.mxu0 0.0
        %970 = vmatprep.subr.mxu0 0.0
        %971 = vmatpush1.xpose.msra.mxu0 0.0
        %972 = vmatprep.subr.mxu0 0.0
        %973 = vmatpush1.xpose.msra.mxu0 0.0
        %974 = vmatprep.subr.mxu0 0.0
        %975 = vmatpush1.xpose.msra.mxu0 0.0
        %976 = vmatprep.subr.mxu0 0.0
        %977 = vmatpush1.xpose.msra.mxu0 0.0
        %978 = vmatprep.subr.mxu0 0.0
        %979 = vmatpush1.xpose.msra.mxu0 0.0
        %980 = vmatprep.subr.mxu0 0.0
        %981 = vmatpush1.xpose.msra.mxu0 0.0
        %982 = vmatprep.subr.mxu0 0.0
        %983 = vmatpush1.xpose.msra.mxu0 0.0
        %984 = vmatprep.subr.mxu0 0.0
        %985 = vmatpush1.xpose.msra.mxu0 0.0
        %986 = vmatprep.subr.mxu0 0.0
        %987 = vmatpush1.xpose.msra.mxu0 0.0
        %988 = vmatprep.subr.mxu0 0.0
        %989 = vmatpush1.xpose.msra.mxu0 0.0
        %990 = vmatprep.subr.mxu0 0.0
        %991 = vmatpush1.xpose.msra.mxu0 0.0
        %992 = vmatprep.subr.mxu0 0.0
        %993 = vmatpush1.xpose.msra.mxu0 0.0
        %994 = vmatprep.subr.mxu0 0.0
        %995 = vmatpush1.xpose.msra.mxu0 0.0
        %996 = vmatprep.subr.mxu0 0.0
        %997 = vmatpush1.xpose.msra.mxu0 0.0
        %998 = vmatprep.subr.mxu0 0.0
        %999 = vmatpush1.xpose.msra.mxu0 0.0
        %1000 = vmatprep.subr.mxu0 0.0
        %1001 = vmatpush1.xpose.msra.mxu0 0.0
        %1002 = vmatprep.subr.mxu0 0.0
        %1003 = vmatpush1.xpose.msra.mxu0 0.0
        %1004 = vmatprep.subr.mxu0 0.0
        %1005 = vmatpush1.xpose.msra.mxu0 0.0
        %1006 = vmatprep.subr.mxu0 0.0
        %1007 = vmatpush1.xpose.msra.mxu0 0.0
        %1008 = vmatprep.subr.mxu0 0.0
        %1009 = vmatpush1.xpose.msra.mxu0 0.0
        %1010 = vmatprep.subr.mxu0 0.0
        %1011 = vmatpush1.xpose.msra.mxu0 0.0
        %1012 = vmatprep.mubr.f32.mxu0 0.0
        %1013 = vmatmul.mubr.f32.gmra.mrb[0].mxu0 %v944
        %v1014 = vpop.f32.mrb[0].mxu0
        %v1015 = vadd.f32 0.0, %v1014
        %v1016 = vpop.f32.mrb[0].mxu0
        %1017 = vdwg.mxu0
        %v1018 = vld [vmem:[#allocation2] sm:$0xff]
        %v1019 = vld [vmem:[#allocation3] sm:$0xff]
        %v1020 = vsel %vm369, %v1015, -inf
        %1021 = vmax.xlane.f32.xlu0 %v1020
        %v1022 = vpop.xlane.xlu0 %1021
        %v1023 = vmax.f32 %v1018, %v1022
        %v1024 = vsub.f32 %v1018, %v1023
        %v1025 = vmul.f32 %v1024, 1.442695
        %v1026 = vpow.pop %v1025
        %1028 = vset.pattern.permute.xlu0 3
        %1029 = vperm.xlu0 %1028, %v1023
        %v1030 = vpop.permute.xlu0 %1029
        %v1032 = vsub.f32 %v1015, %v1030
        %v1033 = vmul.f32 %v1032, 1.442695
        %v1034 = vpow.pop %v1033
        %v1035 = vmul.f32 %v1026, %v1019
        %v1036 = vsel %vm369, %v1034, 0.0
        %1037 = vadd.xlane.f32.xlu0 %v1036
        %v1038 = vpop.xlane.xlu0 %1037
        %v1039 = vadd.f32 %v1035, %v1038
        %vm1040 = vcmask 31768
        %1041 = vst.msk [vmem:[#allocation3] sm:$0xff] %vm1040, %v1039
        %1042 = vst.msk [vmem:[#allocation2] sm:$0xff] %vm1040, %v1023
        %1043 = vrot.lane.b32.xlu0 %v368, 104
        %v1044 = vpop.permute.xlu0 %1043
        %v1047 = vsel %vm369, %v1034, 0
        %1049 = vmatprep.subr.mxu0 0.0
        %1050 = vmatpush1.msra.mxu0 %v1044
        %1051 = vmatprep.subr.mxu0 0.0
        %1052 = vmatpush1.msra.mxu0 0.0
        %1053 = vmatprep.subr.mxu0 0.0
        %1054 = vmatpush1.msra.mxu0 0.0
        %1055 = vmatprep.subr.mxu0 0.0
        %1056 = vmatpush1.msra.mxu0 0.0
        %1057 = vmatprep.subr.mxu0 0.0
        %1058 = vmatpush1.msra.mxu0 0.0
        %1059 = vmatprep.subr.mxu0 0.0
        %1060 = vmatpush1.msra.mxu0 0.0
        %1061 = vmatprep.subr.mxu0 0.0
        %1062 = vmatpush1.msra.mxu0 0.0
        %1063 = vmatprep.subr.mxu0 0.0
        %1064 = vmatpush1.msra.mxu0 0.0
        %1065 = vmatprep.subr.mxu0 0.0
        %1066 = vmatpush1.msra.mxu0 0.0
        %1067 = vmatprep.subr.mxu0 0.0
        %1068 = vmatpush1.msra.mxu0 0.0
        %1069 = vmatprep.subr.mxu0 0.0
        %1070 = vmatpush1.msra.mxu0 0.0
        %1071 = vmatprep.subr.mxu0 0.0
        %1072 = vmatpush1.msra.mxu0 0.0
        %1073 = vmatprep.subr.mxu0 0.0
        %1074 = vmatpush1.msra.mxu0 0.0
        %1075 = vmatprep.subr.mxu0 0.0
        %1076 = vmatpush1.msra.mxu0 0.0
        %1077 = vmatprep.subr.mxu0 0.0
        %1078 = vmatpush1.msra.mxu0 0.0
        %1079 = vmatprep.subr.mxu0 0.0
        %1080 = vmatpush1.msra.mxu0 0.0
        %1081 = vmatprep.subr.mxu0 0.0
        %1082 = vmatpush1.msra.mxu0 0.0
        %1083 = vmatprep.subr.mxu0 0.0
        %1084 = vmatpush1.msra.mxu0 0.0
        %1085 = vmatprep.subr.mxu0 0.0
        %1086 = vmatpush1.msra.mxu0 0.0
        %1087 = vmatprep.subr.mxu0 0.0
        %1088 = vmatpush1.msra.mxu0 0.0
        %1089 = vmatprep.subr.mxu0 0.0
        %1090 = vmatpush1.msra.mxu0 0.0
        %1091 = vmatprep.subr.mxu0 0.0
        %1092 = vmatpush1.msra.mxu0 0.0
        %1093 = vmatprep.subr.mxu0 0.0
        %1094 = vmatpush1.msra.mxu0 0.0
        %1095 = vmatprep.subr.mxu0 0.0
        %1096 = vmatpush1.msra.mxu0 0.0
        %1097 = vmatprep.subr.mxu0 0.0
        %1098 = vmatpush1.msra.mxu0 0.0
        %1099 = vmatprep.subr.mxu0 0.0
        %1100 = vmatpush1.msra.mxu0 0.0
        %1101 = vmatprep.subr.mxu0 0.0
        %1102 = vmatpush1.msra.mxu0 0.0
        %1103 = vmatprep.subr.mxu0 0.0
        %1104 = vmatpush1.msra.mxu0 0.0
        %1105 = vmatprep.subr.mxu0 0.0
        %1106 = vmatpush1.msra.mxu0 0.0
        %1107 = vmatprep.subr.mxu0 0.0
        %1108 = vmatpush1.msra.mxu0 0.0
        %1109 = vmatprep.subr.mxu0 0.0
        %1110 = vmatpush1.msra.mxu0 0.0
        %1111 = vmatprep.subr.mxu0 0.0
        %1112 = vmatpush1.msra.mxu0 0.0
        %1113 = vmatprep.mubr.f32.mxu0 0.0
        %1114 = vmatmul.mubr.f32.gmra.mrb[0].mxu0 %v1047
        %v1115 = vpop.f32.mrb[0].mxu0
        %v1116 = vadd.f32 0.0, %v1115
        %v1117 = vpop.f32.mrb[0].mxu0
        %1118 = vdwg.mxu0
        %v1119 = vld [vmem:[#allocation4] sm:$0xff]
        %1121 = vset.pattern.permute.xlu0 3
        %1122 = vperm.xlu0 %1121, %v1026
        %v1123 = vpop.permute.xlu0 %1122
        %v1125 = vmul.f32 %v1123, %v1119
        %1127 = vrot.lane.b32.xlu0 %v1116, 24
        %v1128 = vpop.permute.xlu0 %1127
        %v1130 = vadd.f32 %v1125, %v1128
        %vm1131 = vcmask 261312
        %1132 = vst.msk [vmem:[#allocation4] sm:$0xff] %vm1131, %v1130
        // Predicated region
        $region61: #{tpu_custom_call.1} parent=39 // pred_check
          %p1133 = pneg %p356
        $region62: #{tpu_custom_call.1} parent=39 // pred_check_branch
          %1135 = sbr.rel (%p1133) target = $region64
        $region63: #{tpu_custom_call.1} parent=39 // pred_region
          %v1136 = vld [vmem:[#allocation3] sm:$0xff]
          %v1137 = vrcp.pop %v1136
          %v1138 = vld [vmem:[#allocation4] sm:$0xff]
          %1140 = vset.pattern.permute.xlu0 0
          %1141 = vperm.xlu0 %1140, %v1137
          %v1142 = vpop.permute.xlu0 %1141
          %v1144 = vmul.f32 %v1138, %v1142
          %1145 = vst.msk [vmem:[#allocation4] sm:$0xff] %vm369, %v1144
          %v1146 = vld [vmem:[#allocation4] sm:$0xff]
          %1147 = vset.pattern.permute.xlu0 1
          %1148 = vperm.xlu0 %1147, %v1137
          %v1149 = vpop.permute.xlu0 %1148
          %v1151 = vmul.f32 %v1146, %v1149
          %1152 = vst.msk [vmem:[#allocation4] sm:$0xff] %vm745, %v1151
          %v1153 = vld [vmem:[#allocation4] sm:$0xff]
          %1154 = vset.pattern.permute.xlu0 2
          %1155 = vperm.xlu0 %1154, %v1137
          %v1156 = vpop.permute.xlu0 %1155
          %v1158 = vmul.f32 %v1153, %v1156
          %1159 = vst.msk [vmem:[#allocation4] sm:$0xff] %vm938, %v1158
          %v1160 = vld [vmem:[#allocation4] sm:$0xff]
          %1161 = vset.pattern.permute.xlu0 3
          %1162 = vperm.xlu0 %1161, %v1137
          %v1163 = vpop.permute.xlu0 %1162
          %v1165 = vmul.f32 %v1160, %v1163
          %1166 = vst.msk [vmem:[#allocation4] sm:$0xff] %vm1131, %v1165
          %v1167 = vld [vmem:[#allocation4] sm:$0xff]
          %v1168 = vld [vmem:[#allocation11] sm:$0xff]
          %v1169 = vld [vmem:[#allocation11 + $0x8] sm:$0xff]
          %v1170 = vld [vmem:[#allocation11 + $0x10] sm:$0xff]
          %v1171 = vld [vmem:[#allocation11 + $0x18] sm:$0xff]
          %v1172 = vld [vmem:[%s4] sm:$0x1]
          %v1174 = vlaneseq
          %v1175 = vshrl.u32 %v1174, 7
          %v1176 = vsub.s32 0, %v1175
          %v1177 = vrot.slane %v1172, %v1176
          %vm1179 = vcmask 261120
          %v1181 = vsel %vm1179, %v1167, 0
          %1183 = vmatprep.subr.mxu0 0.0
          %1184 = vmatpush1.msra.mxu0 %v1168
          %1185 = vmatprep.subr.mxu0 0.0
          %1186 = vmatpush1.msra.mxu0 %v1169
          %1187 = vmatprep.subr.mxu0 0.0
          %1188 = vmatpush1.msra.mxu0 %v1170
          %1189 = vmatprep.subr.mxu0 0.0
          %1190 = vmatpush1.msra.mxu0 %v1171
          %1191 = vmatprep.subr.mxu0 0.0
          %1192 = vmatpush1.msra.mxu0 0.0
          %1193 = vmatprep.subr.mxu0 0.0
          %1194 = vmatpush1.msra.mxu0 0.0
          %1195 = vmatprep.subr.mxu0 0.0
          %1196 = vmatpush1.msra.mxu0 0.0
          %1197 = vmatprep.subr.mxu0 0.0
          %1198 = vmatpush1.msra.mxu0 0.0
          %1199 = vmatprep.subr.mxu0 0.0
          %1200 = vmatpush1.msra.mxu0 0.0
          %1201 = vmatprep.subr.mxu0 0.0
          %1202 = vmatpush1.msra.mxu0 0.0
          %1203 = vmatprep.subr.mxu0 0.0
          %1204 = vmatpush1.msra.mxu0 0.0
          %1205 = vmatprep.subr.mxu0 0.0
          %1206 = vmatpush1.msra.mxu0 0.0
          %1207 = vmatprep.subr.mxu0 0.0
          %1208 = vmatpush1.msra.mxu0 0.0
          %1209 = vmatprep.subr.mxu0 0.0
          %1210 = vmatpush1.msra.mxu0 0.0
          %1211 = vmatprep.subr.mxu0 0.0
          %1212 = vmatpush1.msra.mxu0 0.0
          %1213 = vmatprep.subr.mxu0 0.0
          %1214 = vmatpush1.msra.mxu0 0.0
          %1215 = vmatprep.subr.mxu0 0.0
          %1216 = vmatpush1.msra.mxu0 0.0
          %1217 = vmatprep.subr.mxu0 0.0
          %1218 = vmatpush1.msra.mxu0 0.0
          %1219 = vmatprep.subr.mxu0 0.0
          %1220 = vmatpush1.msra.mxu0 0.0
          %1221 = vmatprep.subr.mxu0 0.0
          %1222 = vmatpush1.msra.mxu0 0.0
          %1223 = vmatprep.subr.mxu0 0.0
          %1224 = vmatpush1.msra.mxu0 0.0
          %1225 = vmatprep.subr.mxu0 0.0
          %1226 = vmatpush1.msra.mxu0 0.0
          %1227 = vmatprep.subr.mxu0 0.0
          %1228 = vmatpush1.msra.mxu0 0.0
          %1229 = vmatprep.subr.mxu0 0.0
          %1230 = vmatpush1.msra.mxu0 0.0
          %1231 = vmatprep.subr.mxu0 0.0
          %1232 = vmatpush1.msra.mxu0 0.0
          %1233 = vmatprep.subr.mxu0 0.0
          %1234 = vmatpush1.msra.mxu0 0.0
          %1235 = vmatprep.subr.mxu0 0.0
          %1236 = vmatpush1.msra.mxu0 0.0
          %1237 = vmatprep.subr.mxu0 0.0
          %1238 = vmatpush1.msra.mxu0 0.0
          %1239 = vmatprep.subr.mxu0 0.0
          %1240 = vmatpush1.msra.mxu0 0.0
          %1241 = vmatprep.subr.mxu0 0.0
          %1242 = vmatpush1.msra.mxu0 0.0
          %1243 = vmatprep.subr.mxu0 0.0
          %1244 = vmatpush1.msra.mxu0 0.0
          %1245 = vmatprep.subr.mxu0 0.0
          %1246 = vmatpush1.msra.mxu0 0.0
          %1247 = vmatprep.mubr.f32.mxu0 0.0
          %1248 = vmatmul.mubr.f32.gmra.mrb[0].mxu0 %v1181
          %v1249 = vpop.f32.mrb[0].mxu0
          %v1250 = vadd.f32 %v1177, %v1249
          %v1251 = vpop.f32.mrb[0].mxu0
          %1252 = vdwg.mxu0
          %1253 = vst.msk [vmem:[%s355] sm:$0xff] %vm1179, %v1250
        $region64: #{tpu_custom_call.1} parent=39 // pred_fallthru
          _
        %s1254 = sand.u32 %s181, 1
        %s1255 = scalar_lea.sflag [#allocation7], %s1254
        %s1256 = sand.u32 %s181, 1
        %s1257 = smul.addr %s1256, 8
        %s1258 = scalar_lea.vmem [#allocation13], %s1257
        // Predicated region
        $region65: #{tpu_custom_call.1} parent=39 // pred_check
          %p1259 = pneg %p191
        $region66: #{tpu_custom_call.1} parent=39 // pred_check_branch
          %1261 = sbr.rel (%p1259) target = $region68
        $region67: #{tpu_custom_call.1} parent=39 // pred_region
          %s1263 = ssub.s32 128, 128
          %1264 = vsyncadd %s1255, %s1263
          %s1265 = sadd.s32 %s32, %s31
          %s1266 = smul.addr %s1265, 128
          %s1267 = scalar_lea.hbm %s5, %s1266
          %s1269 = sshll.u32 %s1258, 4
          %s1270 = int_to_ptr.vmem [resolvable:$true] %s1269
          %1272 = dma.vmem_to_hbm [thread:$0]  %s1270, 128, %s1267, %s1255
        $region68: #{tpu_custom_call.1} parent=39 // pred_fallthru
          _
      $region40: #{tpu_custom_call.1} parent=5 // pred_fallthru
        _
      %p1273 = scmp.le.s32.totalorder 2, %s21
      // Predicated region
      $region69: #{tpu_custom_call.1} parent=5 // pred_check
        %p1274 = pneg %p1273
      $region70: #{tpu_custom_call.1} parent=5 // pred_check_branch
        %1276 = sbr.rel (%p1274) target = $region72
      $region71: #{tpu_custom_call.1} parent=5 // pred_region
        %s1277 = ssub.s32 %s21, 2
        // Predicated region
        $region73: #{tpu_custom_call.1} parent=71 // pred_check
          %p1278 = pneg %p197
        $region74: #{tpu_custom_call.1} parent=71 // pred_check_branch
          %1280 = sbr.rel (%p1278) target = $region76
        $region75: #{tpu_custom_call.1} parent=71 // pred_region
          %s1281 = sand.u32 %s182, 1
          %s1282 = scalar_lea.sflag [#allocation7], %s1281
          %s1283 = sand.u32 %s182, 1
          %s1284 = smul.addr %s1283, 8
          %s1285 = scalar_lea.vmem [#allocation13], %s1284
          %1286 = dma.done %s1282, 128
        $region76: #{tpu_custom_call.1} parent=71 // pred_fallthru
          _
      $region72: #{tpu_custom_call.1} parent=5 // pred_fallthru
        _
    $region6: #{tpu_custom_call.1} parent=1 // loop_footer
      %s25 = sadd.s32 1, %s21
    $region7: #{tpu_custom_call.1} parent=1 // loop_footer_branch
      %20 = sbr.rel target = $region3
    $region8: #{tpu_custom_call.1} parent=1 // loop_exit
      _
    %1287 = vsyncpa [#allocation6], 1
    %s1288 = scalar_lea.sflag [#allocation6], 1
    %1289 = vsyncpa %s1288, 1
    %1290 = vsyncpa [#allocation9], 1
    %s1291 = scalar_lea.sflag [#allocation9], 1
    %1292 = vsyncpa %s1291, 1
    %1293 = vsyncpa [#allocation12], 1
    %1294 = vsyncpa [#allocation7], 1
    %s1295 = scalar_lea.sflag [#allocation7], 1
    %1296 = vsyncpa %s1295, 1

</llo_original>
